<compile_context>
chip_gen: v6e
topology: v6e:2x2x1
jax: 0.10.0
libtpu: 0.0.40
codegen_flags: <defaults>
</compile_context>

<pallas_src>
import functools

import jax
import jax.numpy as jnp
from jax import lax
from jax.experimental import pallas as pl
from jax.experimental.pallas import tpu as pltpu

_LANE = 128


def _round_up(x, m):
    return (x + m - 1) // m * m


def _res_layer_kernel(x_ref, m1_ref, w1_ref, s1_ref, b1_ref,
                      w2_ref, s2_ref, b2_ref, o_ref, *, H, W, add_residual):
    # x_ref : (1, (H+4)*(W+4), Cp)  flat input, spatially padded by 2, channel-padded
    # m1_ref: (M1, 1)               0/1 mask of valid conv1 outputs on run1
    # w1_ref: (9*Cp, Cop)           conv1 weights, row = (dy*3+dx)*Cp + cin
    # s1/b1 : (1, Cop)              folded BN1 scale / bias (incl. conv bias)
    # w2_ref: (9*Cop, Cop)          conv2 weights, row = (dy*3+dx)*Cop + c
    # s2/b2 : (1, Cop)
    # o_ref : (1, M2, Cop)          flat run of final outputs (lane-dense)
    Wp2 = W + 4
    M1 = (H + 2) * Wp2 - 2          # conv1 output run: covers h1's padded-by-1 grid
    M2 = (H - 1) * Wp2 + W          # conv2 output run: covers all H*W image pixels
    p1 = Wp2 + 1                    # flat index of padded-grid pixel (1, 1)
    p2 = 2 * Wp2 + 2                # flat index of padded-grid pixel (2, 2) = image (0, 0)

    # ---- conv1: im2row via 9 contiguous shifted slabs, ONE matmul with K = 9*Cp ----
    slabs1 = []
    for dy in range(3):
        for dx in range(3):
            s = (dy - 1) * Wp2 + (dx - 1)           # flat shift of this tap
            slabs1.append(x_ref[0, p1 + s:p1 + s + M1, :])
    patches1 = jnp.concatenate(slabs1, axis=-1)                     # (M1, 9*Cp)
    acc1 = jnp.dot(patches1, w1_ref[...],
                   preferred_element_type=jnp.float32)              # (M1, Cop) f32

    # BN1 (folded) + ReLU, applied once to the whole accumulator; then zero the
    # padding ring so conv2 sees proper zero padding (also kills garbage rows).
    h1 = jnp.maximum(acc1 * s1_ref[...] + b1_ref[...], 0.0)
    h1 = h1 * m1_ref[...]
    h1 = h1.astype(w2_ref.dtype)

    # ---- conv2: shifted taps are plain value slices of h1 (no scratch round trip) ----
    slabs2 = []
    for dy in range(3):
        for dx in range(3):
            s = (dy - 1) * Wp2 + (dx - 1)
            r0 = (p2 + s) - p1                      # offset of this tap inside run1
            slabs2.append(h1[r0:r0 + M2, :])
    patches2 = jnp.concatenate(slabs2, axis=-1)                     # (M2, 9*Cop)
    acc2 = jnp.dot(patches2, w2_ref[...],
                   preferred_element_type=jnp.float32)              # (M2, Cop) f32

    h2 = acc2 * s2_ref[...] + b2_ref[...]
    if add_residual:  # static (trace-time) gate on ORIGINAL channel counts
        h2 = h2 + x_ref[0, p2:p2 + M2, :].astype(jnp.float32)
    o_ref[0] = jnp.maximum(h2, 0.0).astype(o_ref.dtype)


def _fold_bn(conv_bias, gamma, beta, running_mean, running_var, eps=1e-5):
    """Fold conv bias + inference-mode BatchNorm into (scale, bias)."""
    inv_std = 1.0 / jnp.sqrt(running_var + eps)
    scale = gamma * inv_std
    bias = scale * (conv_bias - running_mean) + beta
    return scale, bias


def res_layer_forward(x_nhwc, params, compute_dtype=jnp.float32):
    """x_nhwc: (N, H, W, Cin) float32 -> (N, H, W, Cout) float32.

    compute_dtype: dtype fed to the MXU (f32 or bf16); accumulation is always f32.
    """
    N, H, W, Cin = x_nhwc.shape
    w1 = params["w1"]                      # (3, 3, Cin, Cout)
    w2 = params["w2"]                      # (3, 3, Cout, Cout)
    Cout = w1.shape[-1]

    Cp = _round_up(Cin, _LANE)             # lane-dense channel padding
    Cop = _round_up(Cout, _LANE)

    Wp2 = W + 4
    Mg = (H + 4) * Wp2
    M1 = (H + 2) * Wp2 - 2
    M2 = (H - 1) * Wp2 + W
    p1 = Wp2 + 1

    # fold conv bias + BN into per-channel scale/bias; pad channels to 128 lanes.
    s1, b1 = _fold_bn(params["cb1"], params["g1"], params["beta1"],
                      params["rm1"], params["rv1"])
    s2, b2 = _fold_bn(params["cb2"], params["g2"], params["beta2"],
                      params["rm2"], params["rv2"])
    pad_c = lambda v: jnp.pad(v, (0, Cop - Cout)).reshape(1, Cop).astype(jnp.float32)
    s1, b1, s2, b2 = pad_c(s1), pad_c(b1), pad_c(s2), pad_c(b2)

    # weights: pad channels, flatten the 3x3 taps into the contraction dim (K = 9*C).
    w1r = jnp.pad(w1, ((0, 0), (0, 0), (0, Cp - Cin), (0, Cop - Cout)))
    w1r = w1r.reshape(9 * Cp, Cop).astype(compute_dtype)
    w2r = jnp.pad(w2, ((0, 0), (0, 0), (0, Cop - Cout), (0, Cop - Cout)))
    w2r = w2r.reshape(9 * Cop, Cop).astype(compute_dtype)

    # activations: spatial pad by 2, channel pad to 128, flatten H/W (lane-dense).
    x_pad = jnp.pad(x_nhwc, ((0, 0), (2, 2), (2, 2), (0, Cp - Cin)))
    x_flat = x_pad.reshape(N, Mg, Cp).astype(compute_dtype)

    # 0/1 mask of true conv1 output pixels over run1 (zeros the padding ring).
    r = jnp.arange(M1) + p1
    row, col = r // Wp2, r % Wp2
    m1 = ((row >= 2) & (row <= H + 1) & (col >= 2) & (col <= W + 1))
    m1 = m1.astype(jnp.float32).reshape(M1, 1)

    kernel = functools.partial(_res_layer_kernel, H=H, W=W,
                               add_residual=(Cin == Cout))

    # NOTE: weight/scale BlockSpecs return a constant block index so they stay
    # resident across the grid; single-buffering them (pl.Buffered(1)) would save
    # a little VMEM but is skipped here since the budget is tiny at these shapes.
    out_run = pl.pallas_call(
        kernel,
        out_shape=jax.ShapeDtypeStruct((N, M2, Cop), jnp.float32),
        grid_spec=pltpu.PrefetchScalarGridSpec(
            num_scalar_prefetch=0,
            grid=(N,),
            in_specs=[
                pl.BlockSpec((1, Mg, Cp), lambda n: (n, 0, 0)),
                pl.BlockSpec((M1, 1), lambda n: (0, 0)),
                pl.BlockSpec((9 * Cp, Cop), lambda n: (0, 0)),
                pl.BlockSpec((1, Cop), lambda n: (0, 0)),
                pl.BlockSpec((1, Cop), lambda n: (0, 0)),
                pl.BlockSpec((9 * Cop, Cop), lambda n: (0, 0)),
                pl.BlockSpec((1, Cop), lambda n: (0, 0)),
                pl.BlockSpec((1, Cop), lambda n: (0, 0)),
            ],
            out_specs=pl.BlockSpec((1, M2, Cop), lambda n: (n, 0, 0)),
        ),
        compiler_params=pltpu.CompilerParams(
            dimension_semantics=("parallel",),
            vmem_limit_bytes=32 * 1024 * 1024),
    )(x_flat, m1, w1r, s1, b1, w2r, s2, b2)

    # un-flatten the output run back to NHWC and strip channel padding (wrapper-side
    # layout plumbing so the kernel's stores stay lane-dense / unmasked).
    out_full = jnp.pad(out_run, ((0, 0), (0, H * Wp2 - M2), (0, 0)))
    out = out_full.reshape(N, H, Wp2, Cop)[:, :, :W, :Cout]
    return out


def _ref_forward(x_nhwc, params):
    """Pure-JAX reference (lax.conv) with identical BN folding."""
    w1, w2 = params["w1"], params["w2"]
    Cout = w1.shape[-1]
    s1, b1 = _fold_bn(params["cb1"], params["g1"], params["beta1"],
                      params["rm1"], params["rv1"])
    s2, b2 = _fold_bn(params["cb2"], params["g2"], params["beta2"],
                      params["rm2"], params["rv2"])
    dn = ("NHWC", "HWIO", "NHWC")
    h = lax.conv_general_dilated(x_nhwc, w1, (1, 1), "SAME", dimension_numbers=dn)
    h = jnp.maximum(h * s1 + b1, 0.0)
    h = lax.conv_general_dilated(h, w2, (1, 1), "SAME", dimension_numbers=dn)
    h = h * s2 + b2
    if x_nhwc.shape[-1] == Cout:
        h = h + x_nhwc
    return jnp.maximum(h, 0.0)


def _make_params(key, cin, cout):
    ks = jax.random.split(key, 8)
    return {
        "w1": 0.1 * jax.random.normal(ks[0], (3, 3, cin, cout), jnp.float32),
        "cb1": 0.1 * jax.random.normal(ks[1], (cout,), jnp.float32),
        "g1": 1.0 + 0.1 * jax.random.normal(ks[2], (cout,), jnp.float32),
        "beta1": 0.1 * jax.random.normal(ks[3], (cout,), jnp.float32),
        "rm1": 0.1 * jax.random.normal(ks[4], (cout,), jnp.float32),
        "rv1": 1.0 + 0.1 * jax.random.uniform(ks[5], (cout,), jnp.float32),
        "w2": 0.1 * jax.random.normal(ks[6], (3, 3, cout, cout), jnp.float32),
        "cb2": 0.1 * jax.random.normal(ks[7], (cout,), jnp.float32),
        "g2": jnp.full((cout,), 0.9, jnp.float32),
        "beta2": jnp.full((cout,), 0.05, jnp.float32),
        "rm2": jnp.full((cout,), -0.02, jnp.float32),
        "rv2": jnp.full((cout,), 1.1, jnp.float32),
    }


if __name__ == "__main__":
    key = jax.random.PRNGKey(0)
    kx, kp = jax.random.split(key)

    N, C, H, W = 2, 4, 16, 16          # NCHW in PyTorch terms; kernel uses NHWC
    x = jax.random.normal(kx, (N, H, W, C), jnp.float32)
    params = _make_params(kp, C, C)

    ref = _ref_forward(x, params)

    # f32 matmul path (tight numerical check)
    out = jax.block_until_ready(res_layer_forward(x, params, jnp.float32))
    assert out.shape == (N, H, W, C)
    assert jnp.max(jnp.abs(out - ref)) < 1e-4, "f32 mismatch vs JAX reference"

    # bf16 matmul inputs (recommended on v6e/v7x), f32 accumulation
    out_bf16 = jax.block_until_ready(res_layer_forward(x, params, jnp.bfloat16))
    assert jnp.max(jnp.abs(out_bf16 - ref)) < 5e-2, "bf16 mismatch vs JAX reference"

    print("KERNEL_OK")
</pallas_src>

<mosaic_0001>
module attributes {stable_mosaic.version = 11 : i64} {
  func.func @_res_layer_kernel(%arg0: i32, %arg1: memref<1x400x128xf32, #tpu.memory_space<vmem>>, %arg2: memref<358x1xf32, #tpu.memory_space<vmem>>, %arg3: memref<1152x128xf32, #tpu.memory_space<vmem>>, %arg4: memref<1x128xf32, #tpu.memory_space<vmem>>, %arg5: memref<1x128xf32, #tpu.memory_space<vmem>>, %arg6: memref<1152x128xf32, #tpu.memory_space<vmem>>, %arg7: memref<1x128xf32, #tpu.memory_space<vmem>>, %arg8: memref<1x128xf32, #tpu.memory_space<vmem>>, %arg9: memref<1x316x128xf32, #tpu.memory_space<vmem>>) attributes {dimension_semantics = [#tpu.dimension_semantics<parallel>], iteration_bounds = array<i64: 2>, scalar_prefetch = 0 : i64, scratch_operands = 0 : i64, tpu.core_type = #tpu.core_type<tc>, window_params = [{transform_indices = @transform_0, window_bounds = array<i64: 1, 400, 128>}, {pipeline_mode = #tpu.pipeline_mode<synchronous>, transform_indices = @transform_1, window_bounds = array<i64: 358, 1>}, {pipeline_mode = #tpu.pipeline_mode<synchronous>, transform_indices = @transform_2, window_bounds = array<i64: 1152, 128>}, {pipeline_mode = #tpu.pipeline_mode<synchronous>, transform_indices = @transform_3, window_bounds = array<i64: 1, 128>}, {pipeline_mode = #tpu.pipeline_mode<synchronous>, transform_indices = @transform_4, window_bounds = array<i64: 1, 128>}, {pipeline_mode = #tpu.pipeline_mode<synchronous>, transform_indices = @transform_5, window_bounds = array<i64: 1152, 128>}, {pipeline_mode = #tpu.pipeline_mode<synchronous>, transform_indices = @transform_6, window_bounds = array<i64: 1, 128>}, {pipeline_mode = #tpu.pipeline_mode<synchronous>, transform_indices = @transform_7, window_bounds = array<i64: 1, 128>}, {transform_indices = @transform_8, window_bounds = array<i64: 1, 316, 128>}]} {
    %c0 = arith.constant 0 : index
    %c0_0 = arith.constant 0 : index
    %c0_1 = arith.constant 0 : index
    %0 = vector.load %arg1[%c0, %c0_0, %c0_1] : memref<1x400x128xf32, #tpu.memory_space<vmem>>, vector<1x358x128xf32>
    %1 = vector.shape_cast %0 : vector<1x358x128xf32> to vector<358x128xf32>
    %c0_2 = arith.constant 0 : index
    %c1 = arith.constant 1 : index
    %c0_3 = arith.constant 0 : index
    %2 = vector.load %arg1[%c0_2, %c1, %c0_3] : memref<1x400x128xf32, #tpu.memory_space<vmem>>, vector<1x358x128xf32>
    %3 = vector.shape_cast %2 : vector<1x358x128xf32> to vector<358x128xf32>
    %c0_4 = arith.constant 0 : index
    %c2 = arith.constant 2 : index
    %c0_5 = arith.constant 0 : index
    %4 = vector.load %arg1[%c0_4, %c2, %c0_5] : memref<1x400x128xf32, #tpu.memory_space<vmem>>, vector<1x358x128xf32>
    %5 = vector.shape_cast %4 : vector<1x358x128xf32> to vector<358x128xf32>
    %c0_6 = arith.constant 0 : index
    %c20 = arith.constant 20 : index
    %c0_7 = arith.constant 0 : index
    %6 = vector.load %arg1[%c0_6, %c20, %c0_7] : memref<1x400x128xf32, #tpu.memory_space<vmem>>, vector<1x358x128xf32>
    %7 = vector.shape_cast %6 : vector<1x358x128xf32> to vector<358x128xf32>
    %c0_8 = arith.constant 0 : index
    %c21 = arith.constant 21 : index
    %c0_9 = arith.constant 0 : index
    %8 = vector.load %arg1[%c0_8, %c21, %c0_9] : memref<1x400x128xf32, #tpu.memory_space<vmem>>, vector<1x358x128xf32>
    %9 = vector.shape_cast %8 : vector<1x358x128xf32> to vector<358x128xf32>
    %c0_10 = arith.constant 0 : index
    %c22 = arith.constant 22 : index
    %c0_11 = arith.constant 0 : index
    %10 = vector.load %arg1[%c0_10, %c22, %c0_11] : memref<1x400x128xf32, #tpu.memory_space<vmem>>, vector<1x358x128xf32>
    %11 = vector.shape_cast %10 : vector<1x358x128xf32> to vector<358x128xf32>
    %c0_12 = arith.constant 0 : index
    %c40 = arith.constant 40 : index
    %c0_13 = arith.constant 0 : index
    %12 = vector.load %arg1[%c0_12, %c40, %c0_13] : memref<1x400x128xf32, #tpu.memory_space<vmem>>, vector<1x358x128xf32>
    %13 = vector.shape_cast %12 : vector<1x358x128xf32> to vector<358x128xf32>
    %c0_14 = arith.constant 0 : index
    %c41 = arith.constant 41 : index
    %c0_15 = arith.constant 0 : index
    %14 = vector.load %arg1[%c0_14, %c41, %c0_15] : memref<1x400x128xf32, #tpu.memory_space<vmem>>, vector<1x358x128xf32>
    %15 = vector.shape_cast %14 : vector<1x358x128xf32> to vector<358x128xf32>
    %c0_16 = arith.constant 0 : index
    %c42 = arith.constant 42 : index
    %c0_17 = arith.constant 0 : index
    %16 = vector.load %arg1[%c0_16, %c42, %c0_17] : memref<1x400x128xf32, #tpu.memory_space<vmem>>, vector<1x358x128xf32>
    %17 = vector.shape_cast %16 : vector<1x358x128xf32> to vector<358x128xf32>
    %18 = tpu.concatenate %1, %3, %5, %7, %9, %11, %13, %15, %17 in 1 : vector<358x128xf32>, vector<358x128xf32>, vector<358x128xf32>, vector<358x128xf32>, vector<358x128xf32>, vector<358x128xf32>, vector<358x128xf32>, vector<358x128xf32>, vector<358x128xf32> -> vector<358x1152xf32>
    %c0_18 = arith.constant 0 : index
    %c0_19 = arith.constant 0 : index
    %19 = vector.load %arg3[%c0_18, %c0_19] : memref<1152x128xf32, #tpu.memory_space<vmem>>, vector<1152x128xf32>
    %cst = arith.constant dense<0.000000e+00> : vector<358x128xf32>
    %20 = tpu.matmul %18, %19, %cst {dimension_numbers = #tpu.dot_dimension_numbers<[1], [0], [0], [1], [0, 0, 1, 1], [], []>} : vector<358x1152xf32>, vector<1152x128xf32>, vector<358x128xf32> -> vector<358x128xf32>
    %c0_20 = arith.constant 0 : index
    %c0_21 = arith.constant 0 : index
    %21 = vector.load %arg4[%c0_20, %c0_21] : memref<1x128xf32, #tpu.memory_space<vmem>>, vector<1x128xf32>
    %22 = vector.broadcast %21 : vector<1x128xf32> to vector<358x128xf32>
    %23 = arith.mulf %20, %22 : vector<358x128xf32>
    %c0_22 = arith.constant 0 : index
    %c0_23 = arith.constant 0 : index
    %24 = vector.load %arg5[%c0_22, %c0_23] : memref<1x128xf32, #tpu.memory_space<vmem>>, vector<1x128xf32>
    %25 = vector.broadcast %24 : vector<1x128xf32> to vector<358x128xf32>
    %26 = arith.addf %23, %25 : vector<358x128xf32>
    %cst_24 = arith.constant 0.000000e+00 : f32
    %27 = vector.broadcast %cst_24 : f32 to vector<358x128xf32>
    %28 = arith.maximumf %26, %27 : vector<358x128xf32>
    %c0_25 = arith.constant 0 : index
    %c0_26 = arith.constant 0 : index
    %29 = vector.load %arg2[%c0_25, %c0_26] : memref<358x1xf32, #tpu.memory_space<vmem>>, vector<358x1xf32>
    %30 = vector.broadcast %29 : vector<358x1xf32> to vector<358x128xf32>
    %31 = arith.mulf %28, %30 : vector<358x128xf32>
    %32 = vector.extract_strided_slice %31 {offsets = [0, 0], sizes = [316, 128], strides = [1, 1]} : vector<358x128xf32> to vector<316x128xf32>
    %33 = vector.extract_strided_slice %31 {offsets = [1, 0], sizes = [316, 128], strides = [1, 1]} : vector<358x128xf32> to vector<316x128xf32>
    %34 = vector.extract_strided_slice %31 {offsets = [2, 0], sizes = [316, 128], strides = [1, 1]} : vector<358x128xf32> to vector<316x128xf32>
    %35 = vector.extract_strided_slice %31 {offsets = [20, 0], sizes = [316, 128], strides = [1, 1]} : vector<358x128xf32> to vector<316x128xf32>
    %36 = vector.extract_strided_slice %31 {offsets = [21, 0], sizes = [316, 128], strides = [1, 1]} : vector<358x128xf32> to vector<316x128xf32>
    %37 = vector.extract_strided_slice %31 {offsets = [22, 0], sizes = [316, 128], strides = [1, 1]} : vector<358x128xf32> to vector<316x128xf32>
    %38 = vector.extract_strided_slice %31 {offsets = [40, 0], sizes = [316, 128], strides = [1, 1]} : vector<358x128xf32> to vector<316x128xf32>
    %39 = vector.extract_strided_slice %31 {offsets = [41, 0], sizes = [316, 128], strides = [1, 1]} : vector<358x128xf32> to vector<316x128xf32>
    %40 = vector.extract_strided_slice %31 {offsets = [42, 0], sizes = [316, 128], strides = [1, 1]} : vector<358x128xf32> to vector<316x128xf32>
    %41 = tpu.concatenate %32, %33, %34, %35, %36, %37, %38, %39, %40 in 1 : vector<316x128xf32>, vector<316x128xf32>, vector<316x128xf32>, vector<316x128xf32>, vector<316x128xf32>, vector<316x128xf32>, vector<316x128xf32>, vector<316x128xf32>, vector<316x128xf32> -> vector<316x1152xf32>
    %c0_27 = arith.constant 0 : index
    %c0_28 = arith.constant 0 : index
    %42 = vector.load %arg6[%c0_27, %c0_28] : memref<1152x128xf32, #tpu.memory_space<vmem>>, vector<1152x128xf32>
    %cst_29 = arith.constant dense<0.000000e+00> : vector<316x128xf32>
    %43 = tpu.matmul %41, %42, %cst_29 {dimension_numbers = #tpu.dot_dimension_numbers<[1], [0], [0], [1], [0, 0, 1, 1], [], []>} : vector<316x1152xf32>, vector<1152x128xf32>, vector<316x128xf32> -> vector<316x128xf32>
    %c0_30 = arith.constant 0 : index
    %c0_31 = arith.constant 0 : index
    %44 = vector.load %arg7[%c0_30, %c0_31] : memref<1x128xf32, #tpu.memory_space<vmem>>, vector<1x128xf32>
    %45 = vector.broadcast %44 : vector<1x128xf32> to vector<316x128xf32>
    %46 = arith.mulf %43, %45 : vector<316x128xf32>
    %c0_32 = arith.constant 0 : index
    %c0_33 = arith.constant 0 : index
    %47 = vector.load %arg8[%c0_32, %c0_33] : memref<1x128xf32, #tpu.memory_space<vmem>>, vector<1x128xf32>
    %48 = vector.broadcast %47 : vector<1x128xf32> to vector<316x128xf32>
    %49 = arith.addf %46, %48 : vector<316x128xf32>
    %c0_34 = arith.constant 0 : index
    %c42_35 = arith.constant 42 : index
    %c0_36 = arith.constant 0 : index
    %50 = vector.load %arg1[%c0_34, %c42_35, %c0_36] : memref<1x400x128xf32, #tpu.memory_space<vmem>>, vector<1x316x128xf32>
    %51 = vector.shape_cast %50 : vector<1x316x128xf32> to vector<316x128xf32>
    %52 = arith.addf %49, %51 : vector<316x128xf32>
    %cst_37 = arith.constant 0.000000e+00 : f32
    %53 = vector.broadcast %cst_37 : f32 to vector<316x128xf32>
    %54 = arith.maximumf %52, %53 : vector<316x128xf32>
    %c0_38 = arith.constant 0 : index
    %c0_39 = arith.constant 0 : index
    %c0_40 = arith.constant 0 : index
    %55 = vector.load %arg9[%c0_38, %c0_39, %c0_40] : memref<1x316x128xf32, #tpu.memory_space<vmem>>, vector<1x316x128xf32>
    %56 = vector.shape_cast %55 : vector<1x316x128xf32> to vector<316x128xf32>
    %57 = vector.shape_cast %54 : vector<316x128xf32> to vector<1x316x128xf32>
    tpu.vector_store %arg9[%c0_38, %c0_39, %c0_40], %57 {strides = array<i32>} : memref<1x316x128xf32, #tpu.memory_space<vmem>>, vector<1x316x128xf32>,
    return
  }
  func.func @transform_0(%arg0: i32) -> (i32, i32, i32) {
    %c0_i32 = arith.constant 0 : i32
    %c0_i32_0 = arith.constant 0 : i32
    %c0_i32_1 = arith.constant 0 : i32
    return %arg0, %c0_i32, %c0_i32_0 : i32, i32, i32
  }
  func.func @transform_1(%arg0: i32) -> (i32, i32) {
    %c0_i32 = arith.constant 0 : i32
    %c0_i32_0 = arith.constant 0 : i32
    %c0_i32_1 = arith.constant 0 : i32
    return %c0_i32, %c0_i32_0 : i32, i32
  }
  func.func @transform_2(%arg0: i32) -> (i32, i32) {
    %c0_i32 = arith.constant 0 : i32
    %c0_i32_0 = arith.constant 0 : i32
    %c0_i32_1 = arith.constant 0 : i32
    return %c0_i32, %c0_i32_0 : i32, i32
  }
  func.func @transform_3(%arg0: i32) -> (i32, i32) {
    %c0_i32 = arith.constant 0 : i32
    %c0_i32_0 = arith.constant 0 : i32
    %c0_i32_1 = arith.constant 0 : i32
    return %c0_i32, %c0_i32_0 : i32, i32
  }
  func.func @transform_4(%arg0: i32) -> (i32, i32) {
    %c0_i32 = arith.constant 0 : i32
    %c0_i32_0 = arith.constant 0 : i32
    %c0_i32_1 = arith.constant 0 : i32
    return %c0_i32, %c0_i32_0 : i32, i32
  }
  func.func @transform_5(%arg0: i32) -> (i32, i32) {
    %c0_i32 = arith.constant 0 : i32
    %c0_i32_0 = arith.constant 0 : i32
    %c0_i32_1 = arith.constant 0 : i32
    return %c0_i32, %c0_i32_0 : i32, i32
  }
  func.func @transform_6(%arg0: i32) -> (i32, i32) {
    %c0_i32 = arith.constant 0 : i32
    %c0_i32_0 = arith.constant 0 : i32
    %c0_i32_1 = arith.constant 0 : i32
    return %c0_i32, %c0_i32_0 : i32, i32
  }
  func.func @transform_7(%arg0: i32) -> (i32, i32) {
    %c0_i32 = arith.constant 0 : i32
    %c0_i32_0 = arith.constant 0 : i32
    %c0_i32_1 = arith.constant 0 : i32
    return %c0_i32, %c0_i32_0 : i32, i32
  }
  func.func @transform_8(%arg0: i32) -> (i32, i32, i32) {
    %c0_i32 = arith.constant 0 : i32
    %c0_i32_0 = arith.constant 0 : i32
    %c0_i32_1 = arith.constant 0 : i32
    return %arg0, %c0_i32, %c0_i32_0 : i32, i32, i32
  }
}

</mosaic_0001>

<llo_original>
// kernel: tpu_custom_call.1
$region0: #{tpu_custom_call.1}
  #allocation0 [shape = 'u32[]', space=smem, size = 0x4, offset = 0x4, fixed_abs, tag = 'smem constant byte address 0x4 - core index']
  #allocation1 [shape = 'u32[144,128]{1,0:T(1,128)}', space=vmem, size = 0x12000, scoped, tag = 'internal scratch']
  %s0 = inlined_call_operand.hbm [shape: f32[2,400,128], index: 0, kind: input, shape index: {}]
  %s1 = inlined_call_operand.vmem [shape: f32[358,1], index: 1, kind: input, shape index: {}]
  %s2 = inlined_call_operand.hbm [shape: f32[1152,128], index: 2, kind: input, shape index: {}]
  %s3 = inlined_call_operand.vmem [shape: f32[1,128], index: 3, kind: input, shape index: {}]
  %s4 = inlined_call_operand.vmem [shape: f32[1,128], index: 4, kind: input, shape index: {}]
  %s5 = inlined_call_operand.hbm [shape: f32[1152,128], index: 5, kind: input, shape index: {}]
  %s6 = inlined_call_operand.vmem [shape: f32[1,128], index: 6, kind: input, shape index: {}]
  %s7 = inlined_call_operand.vmem [shape: f32[1,128], index: 7, kind: input, shape index: {}]
  %s8 = inlined_call_operand.vmem [shape: f32[2,316,128], index: 8, kind: output, shape index: {}]
  %s9 = sld [smem:[#allocation0]]
  $region77: #{tpu_custom_call.1} parent=0
    _
  %s11 = ssub.s32 1, %s9
  %s12 = scalar_select 0, %s11, %s9
  $region1: #{tpu_custom_call.1} parent=0
    #allocation2 [shape = 'u8[409600]{0}', space=vmem, size = 0x64000, scoped, tag = 'input window, operand 0']
    #allocation3 [shape = 's32[2]{0}', space=sflag, size = 0x8, scoped, tag = 'scoped memory for tpu_custom_call.1']
    #allocation4 [shape = 'u8[589824]{0}', space=vmem, size = 0x90000, scoped, tag = 'input window, operand 2, single buffered']
    #allocation5 [shape = 's32[1]{0}', space=sflag, size = 0x4, scoped, tag = 'scoped memory for tpu_custom_call.1']
    #allocation6 [shape = 'u8[589824]{0}', space=vmem, size = 0x90000, scoped, tag = 'input window, operand 5, single buffered']
    %13 = vsyncpa [#allocation3], 0
    %s14 = scalar_lea.sflag [#allocation3], 1
    %15 = vsyncpa %s14, 0
    %16 = vsyncpa [#allocation5], 0
    loop: start=0, step=1, limit=4
    $region2: #{tpu_custom_call.1} parent=1 // loop_pre_header
      _
    $region3: #{tpu_custom_call.1} parent=1 // loop_header
      %s18 = sphi 0, %s22
      %p19 = scmp.ge.s32.totalorder %s18, 4
      %s28 = sphi 0, %s30
      %s31 = sphi 0, %s28
      %s32 = sphi 0, %s31
      %s48 = sphi 0, %s32
      %s52 = sphi 0, %s52
      %s54 = sphi 0, %s52
      %s55 = sphi 0, %s54
      %s69 = sphi 0, %s55
      %s73 = sphi 0, %s73
      %s75 = sphi 0, %s73
      %s76 = sphi 0, %s75
      %s90 = sphi 0, %s76
      %s94 = sphi 0, %s94
      %s96 = sphi 0, %s94
      %s97 = sphi 0, %s96
      %s111 = sphi 0, %s97
      %s115 = sphi 0, %s115
      %s117 = sphi 0, %s115
      %s118 = sphi 0, %s117
      %s132 = sphi 0, %s118
      %s136 = sphi 0, %s136
      %s138 = sphi 0, %s136
      %s139 = sphi 0, %s138
      %s153 = sphi 0, %s139
      %s157 = sphi 0, %s157
      %s159 = sphi 0, %s157
      %s160 = sphi 0, %s159
      %s174 = sphi 0, %s160
      %s178 = sphi 0, %s178
      %s180 = sphi 0, %s178
      %s181 = sphi 0, %s180
      %s195 = sphi 0, %s181
      %s201 = sphi 0, %s203
      %s204 = sphi 0, %s201
      %s205 = sphi 0, %s204
      %s221 = sphi 0, %s205
    $region4: #{tpu_custom_call.1} parent=1 // loop_header_branch
      %21 = sbr.rel (%p19) target = $region8
    $region5: #{tpu_custom_call.1} parent=1 // loop_body
      %s23 = ssub.s32 %s18, 1
      %s24 = ssub.s32 %s18, 2
      %s25 = sadd.s32 %s18, 1
      %s26 = ssub.s32 %s18, %s25
      %p27 = scmp.eq.s32.totalorder %s26, 0
      %s29 = sadd.s32 %s28, 1
      %s30 = scalar_select %p27, %s28, %s29
      %p33 = pneg %p27
      %p34 = scmp.eq.s32.totalorder %s18, 1
      %p35 = por %p33, %p34
      %p36 = scmp.ne.s32.totalorder %s28, %s31
      %p37 = scmp.eq.s32.totalorder %s18, 0
      %p38 = por %p36, %p37
      %p39 = scmp.ne.s32.totalorder %s28, %s31
      %p40 = scmp.eq.s32.totalorder %s23, 1
      %p41 = por %p39, %p40
      %p42 = scmp.ne.s32.totalorder %s31, %s32
      %p43 = scmp.eq.s32.totalorder %s23, 0
      %p44 = por %p42, %p43
      %p45 = scmp.ne.s32.totalorder %s31, %s32
      %p46 = scmp.eq.s32.totalorder %s24, 1
      %p47 = por %p45, %p46
      %p49 = scmp.ne.s32.totalorder %s32, %s48
      %p50 = scmp.eq.s32.totalorder %s24, 0
      %p51 = por %p49, %p50
      %s53 = sadd.s32 %s52, 1
      %p56 = scmp.eq.s32.totalorder %s18, 1
      %p57 = scmp.ne.s32.totalorder %s52, %s54
      %p58 = scmp.eq.s32.totalorder %s18, 0
      %p59 = por %p57, %p58
      %p60 = scmp.ne.s32.totalorder %s52, %s54
      %p61 = scmp.eq.s32.totalorder %s23, 1
      %p62 = por %p60, %p61
      %p63 = scmp.ne.s32.totalorder %s54, %s55
      %p64 = scmp.eq.s32.totalorder %s23, 0
      %p65 = por %p63, %p64
      %p66 = scmp.ne.s32.totalorder %s54, %s55
      %p67 = scmp.eq.s32.totalorder %s24, 1
      %p68 = por %p66, %p67
      %p70 = scmp.ne.s32.totalorder %s55, %s69
      %p71 = scmp.eq.s32.totalorder %s24, 0
      %p72 = por %p70, %p71
      %s74 = sadd.s32 %s73, 1
      %p77 = scmp.eq.s32.totalorder %s18, 1
      %p78 = scmp.ne.s32.totalorder %s73, %s75
      %p79 = scmp.eq.s32.totalorder %s18, 0
      %p80 = por %p78, %p79
      %p81 = scmp.ne.s32.totalorder %s73, %s75
      %p82 = scmp.eq.s32.totalorder %s23, 1
      %p83 = por %p81, %p82
      %p84 = scmp.ne.s32.totalorder %s75, %s76
      %p85 = scmp.eq.s32.totalorder %s23, 0
      %p86 = por %p84, %p85
      %p87 = scmp.ne.s32.totalorder %s75, %s76
      %p88 = scmp.eq.s32.totalorder %s24, 1
      %p89 = por %p87, %p88
      %p91 = scmp.ne.s32.totalorder %s76, %s90
      %p92 = scmp.eq.s32.totalorder %s24, 0
      %p93 = por %p91, %p92
      %s95 = sadd.s32 %s94, 1
      %p98 = scmp.eq.s32.totalorder %s18, 1
      %p99 = scmp.ne.s32.totalorder %s94, %s96
      %p100 = scmp.eq.s32.totalorder %s18, 0
      %p101 = por %p99, %p100
      %p102 = scmp.ne.s32.totalorder %s94, %s96
      %p103 = scmp.eq.s32.totalorder %s23, 1
      %p104 = por %p102, %p103
      %p105 = scmp.ne.s32.totalorder %s96, %s97
      %p106 = scmp.eq.s32.totalorder %s23, 0
      %p107 = por %p105, %p106
      %p108 = scmp.ne.s32.totalorder %s96, %s97
      %p109 = scmp.eq.s32.totalorder %s24, 1
      %p110 = por %p108, %p109
      %p112 = scmp.ne.s32.totalorder %s97, %s111
      %p113 = scmp.eq.s32.totalorder %s24, 0
      %p114 = por %p112, %p113
      %s116 = sadd.s32 %s115, 1
      %p119 = scmp.eq.s32.totalorder %s18, 1
      %p120 = scmp.ne.s32.totalorder %s115, %s117
      %p121 = scmp.eq.s32.totalorder %s18, 0
      %p122 = por %p120, %p121
      %p123 = scmp.ne.s32.totalorder %s115, %s117
      %p124 = scmp.eq.s32.totalorder %s23, 1
      %p125 = por %p123, %p124
      %p126 = scmp.ne.s32.totalorder %s117, %s118
      %p127 = scmp.eq.s32.totalorder %s23, 0
      %p128 = por %p126, %p127
      %p129 = scmp.ne.s32.totalorder %s117, %s118
      %p130 = scmp.eq.s32.totalorder %s24, 1
      %p131 = por %p129, %p130
      %p133 = scmp.ne.s32.totalorder %s118, %s132
      %p134 = scmp.eq.s32.totalorder %s24, 0
      %p135 = por %p133, %p134
      %s137 = sadd.s32 %s136, 1
      %p140 = scmp.eq.s32.totalorder %s18, 1
      %p141 = scmp.ne.s32.totalorder %s136, %s138
      %p142 = scmp.eq.s32.totalorder %s18, 0
      %p143 = por %p141, %p142
      %p144 = scmp.ne.s32.totalorder %s136, %s138
      %p145 = scmp.eq.s32.totalorder %s23, 1
      %p146 = por %p144, %p145
      %p147 = scmp.ne.s32.totalorder %s138, %s139
      %p148 = scmp.eq.s32.totalorder %s23, 0
      %p149 = por %p147, %p148
      %p150 = scmp.ne.s32.totalorder %s138, %s139
      %p151 = scmp.eq.s32.totalorder %s24, 1
      %p152 = por %p150, %p151
      %p154 = scmp.ne.s32.totalorder %s139, %s153
      %p155 = scmp.eq.s32.totalorder %s24, 0
      %p156 = por %p154, %p155
      %s158 = sadd.s32 %s157, 1
      %p161 = scmp.eq.s32.totalorder %s18, 1
      %p162 = scmp.ne.s32.totalorder %s157, %s159
      %p163 = scmp.eq.s32.totalorder %s18, 0
      %p164 = por %p162, %p163
      %p165 = scmp.ne.s32.totalorder %s157, %s159
      %p166 = scmp.eq.s32.totalorder %s23, 1
      %p167 = por %p165, %p166
      %p168 = scmp.ne.s32.totalorder %s159, %s160
      %p169 = scmp.eq.s32.totalorder %s23, 0
      %p170 = por %p168, %p169
      %p171 = scmp.ne.s32.totalorder %s159, %s160
      %p172 = scmp.eq.s32.totalorder %s24, 1
      %p173 = por %p171, %p172
      %p175 = scmp.ne.s32.totalorder %s160, %s174
      %p176 = scmp.eq.s32.totalorder %s24, 0
      %p177 = por %p175, %p176
      %s179 = sadd.s32 %s178, 1
      %p182 = scmp.eq.s32.totalorder %s18, 1
      %p183 = scmp.ne.s32.totalorder %s178, %s180
      %p184 = scmp.eq.s32.totalorder %s18, 0
      %p185 = por %p183, %p184
      %p186 = scmp.ne.s32.totalorder %s178, %s180
      %p187 = scmp.eq.s32.totalorder %s23, 1
      %p188 = por %p186, %p187
      %p189 = scmp.ne.s32.totalorder %s180, %s181
      %p190 = scmp.eq.s32.totalorder %s23, 0
      %p191 = por %p189, %p190
      %p192 = scmp.ne.s32.totalorder %s180, %s181
      %p193 = scmp.eq.s32.totalorder %s24, 1
      %p194 = por %p192, %p193
      %p196 = scmp.ne.s32.totalorder %s181, %s195
      %p197 = scmp.eq.s32.totalorder %s24, 0
      %p198 = por %p196, %p197
      %s199 = ssub.s32 %s18, %s25
      %p200 = scmp.eq.s32.totalorder %s199, 0
      %s202 = sadd.s32 %s201, 1
      %s203 = scalar_select %p200, %s201, %s202
      %p206 = pneg %p200
      %p207 = scmp.eq.s32.totalorder %s18, 1
      %p208 = por %p206, %p207
      %p209 = scmp.ne.s32.totalorder %s201, %s204
      %p210 = scmp.eq.s32.totalorder %s18, 0
      %p211 = por %p209, %p210
      %p212 = scmp.ne.s32.totalorder %s201, %s204
      %p213 = scmp.eq.s32.totalorder %s23, 1
      %p214 = por %p212, %p213
      %p215 = scmp.ne.s32.totalorder %s204, %s205
      %p216 = scmp.eq.s32.totalorder %s23, 0
      %p217 = por %p215, %p216
      %p218 = scmp.ne.s32.totalorder %s204, %s205
      %p219 = scmp.eq.s32.totalorder %s24, 1
      %p220 = por %p218, %p219
      %p222 = scmp.ne.s32.totalorder %s205, %s221
      %p223 = scmp.eq.s32.totalorder %s24, 0
      %p224 = por %p222, %p223
      %p225 = scmp.le.s32.totalorder 1, %s18
      %p226 = scmp.lt.s32.totalorder %s18, 3
      %p227 = pnand %p225, %p226
      %p228 = pneg %p227
      // Predicated region
      $region9: #{tpu_custom_call.1} parent=5 // pred_check
        _
      $region10: #{tpu_custom_call.1} parent=5 // pred_check_branch
        %230 = sbr.rel (%p227) target = $region12
      $region11: #{tpu_custom_call.1} parent=5 // pred_region
        %s231 = ssub.s32 %s18, 1
        // Predicated region
        $region13: #{tpu_custom_call.1} parent=11 // pred_check
          %p232 = pneg %p65
        $region14: #{tpu_custom_call.1} parent=11 // pred_check_branch
          %234 = sbr.rel (%p232) target = $region16
        $region15: #{tpu_custom_call.1} parent=11 // pred_region
          _
        $region16: #{tpu_custom_call.1} parent=11 // pred_fallthru
          _
        // Predicated region
        $region17: #{tpu_custom_call.1} parent=11 // pred_check
          %p235 = pneg %p86
        $region18: #{tpu_custom_call.1} parent=11 // pred_check_branch
          %237 = sbr.rel (%p235) target = $region20
        $region19: #{tpu_custom_call.1} parent=11 // pred_region
          %s239 = ssub.s32 18432, 18432
          %240 = vsyncadd [#allocation5], %s239
          %s241 = sshll.u32 [#allocation4], 4
          %s242 = int_to_ptr.vmem [resolvable:$true] %s241
          %247 = dma.hbm_to_vmem [thread:$0]  %s2, 18432, %s242, [#allocation5], 128, 128, 8
        $region20: #{tpu_custom_call.1} parent=11 // pred_fallthru
          _
        // Predicated region
        $region21: #{tpu_custom_call.1} parent=11 // pred_check
          %p248 = pneg %p107
        $region22: #{tpu_custom_call.1} parent=11 // pred_check_branch
          %250 = sbr.rel (%p248) target = $region24
        $region23: #{tpu_custom_call.1} parent=11 // pred_region
          _
        $region24: #{tpu_custom_call.1} parent=11 // pred_fallthru
          _
        // Predicated region
        $region25: #{tpu_custom_call.1} parent=11 // pred_check
          %p251 = pneg %p128
        $region26: #{tpu_custom_call.1} parent=11 // pred_check_branch
          %253 = sbr.rel (%p251) target = $region28
        $region27: #{tpu_custom_call.1} parent=11 // pred_region
          _
        $region28: #{tpu_custom_call.1} parent=11 // pred_fallthru
          _
        // Predicated region
        $region29: #{tpu_custom_call.1} parent=11 // pred_check
          %p254 = pneg %p149
        $region30: #{tpu_custom_call.1} parent=11 // pred_check_branch
          %256 = sbr.rel (%p254) target = $region32
        $region31: #{tpu_custom_call.1} parent=11 // pred_region
          %s258 = ssub.s32 18432, 18432
          %259 = vsyncadd [#allocation5], %s258
          %s260 = sshll.u32 [#allocation6], 4
          %s261 = int_to_ptr.vmem [resolvable:$true] %s260
          %266 = dma.hbm_to_vmem [thread:$0]  %s5, 18432, %s261, [#allocation5], 128, 128, 8
        $region32: #{tpu_custom_call.1} parent=11 // pred_fallthru
          _
        // Predicated region
        $region33: #{tpu_custom_call.1} parent=11 // pred_check
          %p267 = pneg %p170
        $region34: #{tpu_custom_call.1} parent=11 // pred_check_branch
          %269 = sbr.rel (%p267) target = $region36
        $region35: #{tpu_custom_call.1} parent=11 // pred_region
          _
        $region36: #{tpu_custom_call.1} parent=11 // pred_fallthru
          _
        // Predicated region
        $region37: #{tpu_custom_call.1} parent=11 // pred_check
          %p270 = pneg %p191
        $region38: #{tpu_custom_call.1} parent=11 // pred_check_branch
          %272 = sbr.rel (%p270) target = $region40
        $region39: #{tpu_custom_call.1} parent=11 // pred_region
          _
        $region40: #{tpu_custom_call.1} parent=11 // pred_fallthru
          _
      $region12: #{tpu_custom_call.1} parent=5 // pred_fallthru
        _
      %p273 = scmp.lt.s32.totalorder %s18, 2
      // Predicated region
      $region41: #{tpu_custom_call.1} parent=5 // pred_check
        %p274 = pneg %p273
      $region42: #{tpu_custom_call.1} parent=5 // pred_check_branch
        %276 = sbr.rel (%p274) target = $region44
      $region43: #{tpu_custom_call.1} parent=5 // pred_region
        // Predicated region
        $region45: #{tpu_custom_call.1} parent=43 // pred_check
          %p277 = pneg %p38
        $region46: #{tpu_custom_call.1} parent=43 // pred_check_branch
          %279 = sbr.rel (%p277) target = $region48
        $region47: #{tpu_custom_call.1} parent=43 // pred_region
          %s280 = sand.u32 %s28, 1
          %s281 = scalar_lea.sflag [#allocation3], %s280
          %s282 = sand.u32 %s28, 1
          %s283 = smul.addr %s282, 400
          %s284 = scalar_lea.vmem [#allocation2], %s283
          %s286 = ssub.s32 6400, 6400
          %287 = vsyncadd %s281, %s286
          %s288 = smul.addr %s18, 50
          %s289 = smul.addr %s288, 128
          %s290 = scalar_lea.hbm %s0, %s289
          %s291 = sshll.u32 %s284, 4
          %s292 = int_to_ptr.vmem [resolvable:$true] %s291
          %297 = dma.hbm_to_vmem [thread:$0]  %s290, 6400, %s292, %s281, 128, 128, 8
        $region48: #{tpu_custom_call.1} parent=43 // pred_fallthru
          _
      $region44: #{tpu_custom_call.1} parent=5 // pred_fallthru
        _
      %p298 = scmp.le.s32.totalorder 1, %s18
      %p299 = scmp.lt.s32.totalorder %s18, 3
      %p300 = pnand %p298, %p299
      %p301 = pneg %p300
      // Predicated region
      $region49: #{tpu_custom_call.1} parent=5 // pred_check
        _
      $region50: #{tpu_custom_call.1} parent=5 // pred_check_branch
        %303 = sbr.rel (%p300) target = $region52
      $region51: #{tpu_custom_call.1} parent=5 // pred_region
        %s304 = ssub.s32 %s18, 1
        %s305 = sand.u32 %s31, 1
        %s306 = scalar_lea.sflag [#allocation3], %s305
        %s307 = sand.u32 %s31, 1
        %s308 = smul.addr %s307, 400
        %s309 = scalar_lea.vmem [#allocation2], %s308
        // Predicated region
        $region53: #{tpu_custom_call.1} parent=51 // pred_check
          %p310 = pneg %p44
        $region54: #{tpu_custom_call.1} parent=51 // pred_check_branch
          %312 = sbr.rel (%p310) target = $region56
        $region55: #{tpu_custom_call.1} parent=51 // pred_region
          %313 = dma.done %s306, 6400
        $region56: #{tpu_custom_call.1} parent=51 // pred_fallthru
          _
        // Predicated region
        $region57: #{tpu_custom_call.1} parent=51 // pred_check
          %p314 = pneg %p86
        $region58: #{tpu_custom_call.1} parent=51 // pred_check_branch
          %316 = sbr.rel (%p314) target = $region60
        $region59: #{tpu_custom_call.1} parent=51 // pred_region
          %317 = dma.done [#allocation5], 18432
        $region60: #{tpu_custom_call.1} parent=51 // pred_fallthru
          _
        // Predicated region
        $region61: #{tpu_custom_call.1} parent=51 // pred_check
          %p318 = pneg %p149
        $region62: #{tpu_custom_call.1} parent=51 // pred_check_branch
          %320 = sbr.rel (%p318) target = $region64
        $region63: #{tpu_custom_call.1} parent=51 // pred_region
          %321 = dma.done [#allocation5], 18432
        $region64: #{tpu_custom_call.1} parent=51 // pred_fallthru
          _
        %s322 = sand.u32 %s31, 1
        %s323 = scalar_lea.sflag [#allocation3], %s322
        %s324 = sand.u32 %s31, 1
        %s325 = smul.addr %s324, 400
        %s326 = scalar_lea.vmem [#allocation2], %s325
        %p327 = pneg %p44
        %p328 = pneg %p41
        %p329 = pneg %p65
        %p330 = pneg %p62
        %p331 = pneg %p86
        %p332 = pneg %p83
        %p333 = pneg %p107
        %p334 = pneg %p104
        %p335 = pneg %p128
        %p336 = pneg %p125
        %p337 = pneg %p149
        %p338 = pneg %p146
        %p339 = pneg %p170
        %p340 = pneg %p167
        %p341 = pneg %p191
        %p342 = pneg %p188
        %p343 = pneg %p217
        %p344 = pneg %p214
        %p345 = scmp.lt.s32.totalorder %s23, 1
        %s346 = scalar_select %p345, %s23, 1
        %s347 = smul.addr %s346, 40
        %s348 = smul.addr %s347, 8
        %s349 = scalar_lea.vmem %s8, %s348
        %p350 = scmp.lt.s32.totalorder %s23, 1
        %s351 = scalar_select %p350, %s23, 1
        %s352 = smul.addr %s351, 40
        %s353 = smul.addr %s352, 8
        %s354 = scalar_lea.vmem %s8, %s353
        %v355 = vld [vmem:[%s309] sm:$0xff]
        %v356 = vld [vmem:[%s309 + $0x8] sm:$0xff]
        %v357 = vld [vmem:[%s309 + $0x10] sm:$0xff]
        %v358 = vld [vmem:[%s309 + $0x18] sm:$0xff]
        %v359 = vld [vmem:[%s309 + $0x20] sm:$0xff]
        %v360 = vld [vmem:[%s309 + $0x28] sm:$0xff]
        %v361 = vld [vmem:[%s309 + $0x30] sm:$0xff]
        %v362 = vld [vmem:[%s309 + $0x38] sm:$0xff]
        %v363 = vld [vmem:[%s309 + $0x40] sm:$0xff]
        %v364 = vld [vmem:[%s309 + $0x48] sm:$0xff]
        %v365 = vld [vmem:[%s309 + $0x50] sm:$0xff]
        %v366 = vld [vmem:[%s309 + $0x58] sm:$0xff]
        %v367 = vld [vmem:[%s309 + $0x60] sm:$0xff]
        %v368 = vld [vmem:[%s309 + $0x68] sm:$0xff]
        %v369 = vld [vmem:[%s309 + $0x70] sm:$0xff]
        %v370 = vld [vmem:[%s309 + $0x78] sm:$0xff]
        %v371 = vld [vmem:[%s309 + $0x80] sm:$0xff]
        %v372 = vld [vmem:[%s309 + $0x88] sm:$0xff]
        %v373 = vld [vmem:[%s309 + $0x90] sm:$0xff]
        %v374 = vld [vmem:[%s309 + $0x98] sm:$0xff]
        %v375 = vld [vmem:[%s309 + $0xa0] sm:$0xff]
        %v376 = vld [vmem:[%s309 + $0xa8] sm:$0xff]
        %v377 = vld [vmem:[%s309 + $0xb0] sm:$0xff]
        %v378 = vld [vmem:[%s309 + $0xb8] sm:$0xff]
        %v379 = vld [vmem:[%s309 + $0xc0] sm:$0xff]
        %v380 = vld [vmem:[%s309 + $0xc8] sm:$0xff]
        %v381 = vld [vmem:[%s309 + $0xd0] sm:$0xff]
        %v382 = vld [vmem:[%s309 + $0xd8] sm:$0xff]
        %v383 = vld [vmem:[%s309 + $0xe0] sm:$0xff]
        %v384 = vld [vmem:[%s309 + $0xe8] sm:$0xff]
        %v385 = vld [vmem:[%s309 + $0xf0] sm:$0xff]
        %v386 = vld [vmem:[%s309 + $0xf8] sm:$0xff]
        %v387 = vld [vmem:[%s309 + $0x100] sm:$0xff]
        %v388 = vld [vmem:[%s309 + $0x108] sm:$0xff]
        %v389 = vld [vmem:[%s309 + $0x110] sm:$0xff]
        %v390 = vld [vmem:[%s309 + $0x118] sm:$0xff]
        %v391 = vld [vmem:[%s309 + $0x120] sm:$0xff]
        %v392 = vld [vmem:[%s309 + $0x128] sm:$0xff]
        %v393 = vld [vmem:[%s309 + $0x130] sm:$0xff]
        %v394 = vld [vmem:[%s309 + $0x138] sm:$0xff]
        %v395 = vld [vmem:[%s309 + $0x140] sm:$0xff]
        %v396 = vld [vmem:[%s309 + $0x148] sm:$0xff]
        %v397 = vld [vmem:[%s309 + $0x150] sm:$0xff]
        %v398 = vld [vmem:[%s309 + $0x158] sm:$0xff]
        %v399 = vld [vmem:[%s309 + $0x160] sm:$0x3f]
        %v400 = vld [vmem:[%s309 + $0x1] sm:$0xff]
        %v401 = vld [vmem:[%s309 + $0x9] sm:$0xff]
        %v402 = vld [vmem:[%s309 + $0x11] sm:$0xff]
        %v403 = vld [vmem:[%s309 + $0x19] sm:$0xff]
        %v404 = vld [vmem:[%s309 + $0x21] sm:$0xff]
        %v405 = vld [vmem:[%s309 + $0x29] sm:$0xff]
        %v406 = vld [vmem:[%s309 + $0x31] sm:$0xff]
        %v407 = vld [vmem:[%s309 + $0x39] sm:$0xff]
        %v408 = vld [vmem:[%s309 + $0x41] sm:$0xff]
        %v409 = vld [vmem:[%s309 + $0x49] sm:$0xff]
        %v410 = vld [vmem:[%s309 + $0x51] sm:$0xff]
        %v411 = vld [vmem:[%s309 + $0x59] sm:$0xff]
        %v412 = vld [vmem:[%s309 + $0x61] sm:$0xff]
        %v413 = vld [vmem:[%s309 + $0x69] sm:$0xff]
        %v414 = vld [vmem:[%s309 + $0x71] sm:$0xff]
        %v415 = vld [vmem:[%s309 + $0x79] sm:$0xff]
        %v416 = vld [vmem:[%s309 + $0x81] sm:$0xff]
        %v417 = vld [vmem:[%s309 + $0x89] sm:$0xff]
        %v418 = vld [vmem:[%s309 + $0x91] sm:$0xff]
        %v419 = vld [vmem:[%s309 + $0x99] sm:$0xff]
        %v420 = vld [vmem:[%s309 + $0xa1] sm:$0xff]
        %v421 = vld [vmem:[%s309 + $0xa9] sm:$0xff]
        %v422 = vld [vmem:[%s309 + $0xb1] sm:$0xff]
        %v423 = vld [vmem:[%s309 + $0xb9] sm:$0xff]
        %v424 = vld [vmem:[%s309 + $0xc1] sm:$0xff]
        %v425 = vld [vmem:[%s309 + $0xc9] sm:$0xff]
        %v426 = vld [vmem:[%s309 + $0xd1] sm:$0xff]
        %v427 = vld [vmem:[%s309 + $0xd9] sm:$0xff]
        %v428 = vld [vmem:[%s309 + $0xe1] sm:$0xff]
        %v429 = vld [vmem:[%s309 + $0xe9] sm:$0xff]
        %v430 = vld [vmem:[%s309 + $0xf1] sm:$0xff]
        %v431 = vld [vmem:[%s309 + $0xf9] sm:$0xff]
        %v432 = vld [vmem:[%s309 + $0x101] sm:$0xff]
        %v433 = vld [vmem:[%s309 + $0x109] sm:$0xff]
        %v434 = vld [vmem:[%s309 + $0x111] sm:$0xff]
        %v435 = vld [vmem:[%s309 + $0x119] sm:$0xff]
        %v436 = vld [vmem:[%s309 + $0x121] sm:$0xff]
        %v437 = vld [vmem:[%s309 + $0x129] sm:$0xff]
        %v438 = vld [vmem:[%s309 + $0x131] sm:$0xff]
        %v439 = vld [vmem:[%s309 + $0x139] sm:$0xff]
        %v440 = vld [vmem:[%s309 + $0x141] sm:$0xff]
        %v441 = vld [vmem:[%s309 + $0x149] sm:$0xff]
        %v442 = vld [vmem:[%s309 + $0x151] sm:$0xff]
        %v443 = vld [vmem:[%s309 + $0x159] sm:$0xff]
        %v444 = vld [vmem:[%s309 + $0x161] sm:$0x3f]
        %v445 = vld [vmem:[%s309 + $0x2] sm:$0xff]
        %v446 = vld [vmem:[%s309 + $0xa] sm:$0xff]
        %v447 = vld [vmem:[%s309 + $0x12] sm:$0xff]
        %v448 = vld [vmem:[%s309 + $0x1a] sm:$0xff]
        %v449 = vld [vmem:[%s309 + $0x22] sm:$0xff]
        %v450 = vld [vmem:[%s309 + $0x2a] sm:$0xff]
        %v451 = vld [vmem:[%s309 + $0x32] sm:$0xff]
        %v452 = vld [vmem:[%s309 + $0x3a] sm:$0xff]
        %v453 = vld [vmem:[%s309 + $0x42] sm:$0xff]
        %v454 = vld [vmem:[%s309 + $0x4a] sm:$0xff]
        %v455 = vld [vmem:[%s309 + $0x52] sm:$0xff]
        %v456 = vld [vmem:[%s309 + $0x5a] sm:$0xff]
        %v457 = vld [vmem:[%s309 + $0x62] sm:$0xff]
        %v458 = vld [vmem:[%s309 + $0x6a] sm:$0xff]
        %v459 = vld [vmem:[%s309 + $0x72] sm:$0xff]
        %v460 = vld [vmem:[%s309 + $0x7a] sm:$0xff]
        %v461 = vld [vmem:[%s309 + $0x82] sm:$0xff]
        %v462 = vld [vmem:[%s309 + $0x8a] sm:$0xff]
        %v463 = vld [vmem:[%s309 + $0x92] sm:$0xff]
        %v464 = vld [vmem:[%s309 + $0x9a] sm:$0xff]
        %v465 = vld [vmem:[%s309 + $0xa2] sm:$0xff]
        %v466 = vld [vmem:[%s309 + $0xaa] sm:$0xff]
        %v467 = vld [vmem:[%s309 + $0xb2] sm:$0xff]
        %v468 = vld [vmem:[%s309 + $0xba] sm:$0xff]
        %v469 = vld [vmem:[%s309 + $0xc2] sm:$0xff]
        %v470 = vld [vmem:[%s309 + $0xca] sm:$0xff]
        %v471 = vld [vmem:[%s309 + $0xd2] sm:$0xff]
        %v472 = vld [vmem:[%s309 + $0xda] sm:$0xff]
        %v473 = vld [vmem:[%s309 + $0xe2] sm:$0xff]
        %v474 = vld [vmem:[%s309 + $0xea] sm:$0xff]
        %v475 = vld [vmem:[%s309 + $0xf2] sm:$0xff]
        %v476 = vld [vmem:[%s309 + $0xfa] sm:$0xff]
        %v477 = vld [vmem:[%s309 + $0x102] sm:$0xff]
        %v478 = vld [vmem:[%s309 + $0x10a] sm:$0xff]
        %v479 = vld [vmem:[%s309 + $0x112] sm:$0xff]
        %v480 = vld [vmem:[%s309 + $0x11a] sm:$0xff]
        %v481 = vld [vmem:[%s309 + $0x122] sm:$0xff]
        %v482 = vld [vmem:[%s309 + $0x12a] sm:$0xff]
        %v483 = vld [vmem:[%s309 + $0x132] sm:$0xff]
        %v484 = vld [vmem:[%s309 + $0x13a] sm:$0xff]
        %v485 = vld [vmem:[%s309 + $0x142] sm:$0xff]
        %v486 = vld [vmem:[%s309 + $0x14a] sm:$0xff]
        %v487 = vld [vmem:[%s309 + $0x152] sm:$0xff]
        %v488 = vld [vmem:[%s309 + $0x15a] sm:$0xff]
        %v489 = vld [vmem:[%s309 + $0x162] sm:$0x3f]
        %v490 = vld [vmem:[%s309 + $0x14] sm:$0xff]
        %v491 = vld [vmem:[%s309 + $0x1c] sm:$0xff]
        %v492 = vld [vmem:[%s309 + $0x24] sm:$0xff]
        %v493 = vld [vmem:[%s309 + $0x2c] sm:$0xff]
        %v494 = vld [vmem:[%s309 + $0x34] sm:$0xff]
        %v495 = vld [vmem:[%s309 + $0x3c] sm:$0xff]
        %v496 = vld [vmem:[%s309 + $0x44] sm:$0xff]
        %v497 = vld [vmem:[%s309 + $0x4c] sm:$0xff]
        %v498 = vld [vmem:[%s309 + $0x54] sm:$0xff]
        %v499 = vld [vmem:[%s309 + $0x5c] sm:$0xff]
        %v500 = vld [vmem:[%s309 + $0x64] sm:$0xff]
        %v501 = vld [vmem:[%s309 + $0x6c] sm:$0xff]
        %v502 = vld [vmem:[%s309 + $0x74] sm:$0xff]
        %v503 = vld [vmem:[%s309 + $0x7c] sm:$0xff]
        %v504 = vld [vmem:[%s309 + $0x84] sm:$0xff]
        %v505 = vld [vmem:[%s309 + $0x8c] sm:$0xff]
        %v506 = vld [vmem:[%s309 + $0x94] sm:$0xff]
        %v507 = vld [vmem:[%s309 + $0x9c] sm:$0xff]
        %v508 = vld [vmem:[%s309 + $0xa4] sm:$0xff]
        %v509 = vld [vmem:[%s309 + $0xac] sm:$0xff]
        %v510 = vld [vmem:[%s309 + $0xb4] sm:$0xff]
        %v511 = vld [vmem:[%s309 + $0xbc] sm:$0xff]
        %v512 = vld [vmem:[%s309 + $0xc4] sm:$0xff]
        %v513 = vld [vmem:[%s309 + $0xcc] sm:$0xff]
        %v514 = vld [vmem:[%s309 + $0xd4] sm:$0xff]
        %v515 = vld [vmem:[%s309 + $0xdc] sm:$0xff]
        %v516 = vld [vmem:[%s309 + $0xe4] sm:$0xff]
        %v517 = vld [vmem:[%s309 + $0xec] sm:$0xff]
        %v518 = vld [vmem:[%s309 + $0xf4] sm:$0xff]
        %v519 = vld [vmem:[%s309 + $0xfc] sm:$0xff]
        %v520 = vld [vmem:[%s309 + $0x104] sm:$0xff]
        %v521 = vld [vmem:[%s309 + $0x10c] sm:$0xff]
        %v522 = vld [vmem:[%s309 + $0x114] sm:$0xff]
        %v523 = vld [vmem:[%s309 + $0x11c] sm:$0xff]
        %v524 = vld [vmem:[%s309 + $0x124] sm:$0xff]
        %v525 = vld [vmem:[%s309 + $0x12c] sm:$0xff]
        %v526 = vld [vmem:[%s309 + $0x134] sm:$0xff]
        %v527 = vld [vmem:[%s309 + $0x13c] sm:$0xff]
        %v528 = vld [vmem:[%s309 + $0x144] sm:$0xff]
        %v529 = vld [vmem:[%s309 + $0x14c] sm:$0xff]
        %v530 = vld [vmem:[%s309 + $0x154] sm:$0xff]
        %v531 = vld [vmem:[%s309 + $0x15c] sm:$0xff]
        %v532 = vld [vmem:[%s309 + $0x164] sm:$0xff]
        %v533 = vld [vmem:[%s309 + $0x16c] sm:$0xff]
        %v534 = vld [vmem:[%s309 + $0x174] sm:$0x3f]
        %v535 = vld [vmem:[%s309 + $0x15] sm:$0xff]
        %v536 = vld [vmem:[%s309 + $0x1d] sm:$0xff]
        %v537 = vld [vmem:[%s309 + $0x25] sm:$0xff]
        %v538 = vld [vmem:[%s309 + $0x2d] sm:$0xff]
        %v539 = vld [vmem:[%s309 + $0x35] sm:$0xff]
        %v540 = vld [vmem:[%s309 + $0x3d] sm:$0xff]
        %v541 = vld [vmem:[%s309 + $0x45] sm:$0xff]
        %v542 = vld [vmem:[%s309 + $0x4d] sm:$0xff]
        %v543 = vld [vmem:[%s309 + $0x55] sm:$0xff]
        %v544 = vld [vmem:[%s309 + $0x5d] sm:$0xff]
        %v545 = vld [vmem:[%s309 + $0x65] sm:$0xff]
        %v546 = vld [vmem:[%s309 + $0x6d] sm:$0xff]
        %v547 = vld [vmem:[%s309 + $0x75] sm:$0xff]
        %v548 = vld [vmem:[%s309 + $0x7d] sm:$0xff]
        %v549 = vld [vmem:[%s309 + $0x85] sm:$0xff]
        %v550 = vld [vmem:[%s309 + $0x8d] sm:$0xff]
        %v551 = vld [vmem:[%s309 + $0x95] sm:$0xff]
        %v552 = vld [vmem:[%s309 + $0x9d] sm:$0xff]
        %v553 = vld [vmem:[%s309 + $0xa5] sm:$0xff]
        %v554 = vld [vmem:[%s309 + $0xad] sm:$0xff]
        %v555 = vld [vmem:[%s309 + $0xb5] sm:$0xff]
        %v556 = vld [vmem:[%s309 + $0xbd] sm:$0xff]
        %v557 = vld [vmem:[%s309 + $0xc5] sm:$0xff]
        %v558 = vld [vmem:[%s309 + $0xcd] sm:$0xff]
        %v559 = vld [vmem:[%s309 + $0xd5] sm:$0xff]
        %v560 = vld [vmem:[%s309 + $0xdd] sm:$0xff]
        %v561 = vld [vmem:[%s309 + $0xe5] sm:$0xff]
        %v562 = vld [vmem:[%s309 + $0xed] sm:$0xff]
        %v563 = vld [vmem:[%s309 + $0xf5] sm:$0xff]
        %v564 = vld [vmem:[%s309 + $0xfd] sm:$0xff]
        %v565 = vld [vmem:[%s309 + $0x105] sm:$0xff]
        %v566 = vld [vmem:[%s309 + $0x10d] sm:$0xff]
        %v567 = vld [vmem:[%s309 + $0x115] sm:$0xff]
        %v568 = vld [vmem:[%s309 + $0x11d] sm:$0xff]
        %v569 = vld [vmem:[%s309 + $0x125] sm:$0xff]
        %v570 = vld [vmem:[%s309 + $0x12d] sm:$0xff]
        %v571 = vld [vmem:[%s309 + $0x135] sm:$0xff]
        %v572 = vld [vmem:[%s309 + $0x13d] sm:$0xff]
        %v573 = vld [vmem:[%s309 + $0x145] sm:$0xff]
        %v574 = vld [vmem:[%s309 + $0x14d] sm:$0xff]
        %v575 = vld [vmem:[%s309 + $0x155] sm:$0xff]
        %v576 = vld [vmem:[%s309 + $0x15d] sm:$0xff]
        %v577 = vld [vmem:[%s309 + $0x165] sm:$0xff]
        %v578 = vld [vmem:[%s309 + $0x16d] sm:$0xff]
        %v579 = vld [vmem:[%s309 + $0x175] sm:$0x3f]
        %v580 = vld [vmem:[%s309 + $0x16] sm:$0xff]
        %v581 = vld [vmem:[%s309 + $0x1e] sm:$0xff]
        %v582 = vld [vmem:[%s309 + $0x26] sm:$0xff]
        %v583 = vld [vmem:[%s309 + $0x2e] sm:$0xff]
        %v584 = vld [vmem:[%s309 + $0x36] sm:$0xff]
        %v585 = vld [vmem:[%s309 + $0x3e] sm:$0xff]
        %v586 = vld [vmem:[%s309 + $0x46] sm:$0xff]
        %v587 = vld [vmem:[%s309 + $0x4e] sm:$0xff]
        %v588 = vld [vmem:[%s309 + $0x56] sm:$0xff]
        %v589 = vld [vmem:[%s309 + $0x5e] sm:$0xff]
        %v590 = vld [vmem:[%s309 + $0x66] sm:$0xff]
        %v591 = vld [vmem:[%s309 + $0x6e] sm:$0xff]
        %v592 = vld [vmem:[%s309 + $0x76] sm:$0xff]
        %v593 = vld [vmem:[%s309 + $0x7e] sm:$0xff]
        %v594 = vld [vmem:[%s309 + $0x86] sm:$0xff]
        %v595 = vld [vmem:[%s309 + $0x8e] sm:$0xff]
        %v596 = vld [vmem:[%s309 + $0x96] sm:$0xff]
        %v597 = vld [vmem:[%s309 + $0x9e] sm:$0xff]
        %v598 = vld [vmem:[%s309 + $0xa6] sm:$0xff]
        %v599 = vld [vmem:[%s309 + $0xae] sm:$0xff]
        %v600 = vld [vmem:[%s309 + $0xb6] sm:$0xff]
        %v601 = vld [vmem:[%s309 + $0xbe] sm:$0xff]
        %v602 = vld [vmem:[%s309 + $0xc6] sm:$0xff]
        %v603 = vld [vmem:[%s309 + $0xce] sm:$0xff]
        %v604 = vld [vmem:[%s309 + $0xd6] sm:$0xff]
        %v605 = vld [vmem:[%s309 + $0xde] sm:$0xff]
        %v606 = vld [vmem:[%s309 + $0xe6] sm:$0xff]
        %v607 = vld [vmem:[%s309 + $0xee] sm:$0xff]
        %v608 = vld [vmem:[%s309 + $0xf6] sm:$0xff]
        %v609 = vld [vmem:[%s309 + $0xfe] sm:$0xff]
        %v610 = vld [vmem:[%s309 + $0x106] sm:$0xff]
        %v611 = vld [vmem:[%s309 + $0x10e] sm:$0xff]
        %v612 = vld [vmem:[%s309 + $0x116] sm:$0xff]
        %v613 = vld [vmem:[%s309 + $0x11e] sm:$0xff]
        %v614 = vld [vmem:[%s309 + $0x126] sm:$0xff]
        %v615 = vld [vmem:[%s309 + $0x12e] sm:$0xff]
        %v616 = vld [vmem:[%s309 + $0x136] sm:$0xff]
        %v617 = vld [vmem:[%s309 + $0x13e] sm:$0xff]
        %v618 = vld [vmem:[%s309 + $0x146] sm:$0xff]
        %v619 = vld [vmem:[%s309 + $0x14e] sm:$0xff]
        %v620 = vld [vmem:[%s309 + $0x156] sm:$0xff]
        %v621 = vld [vmem:[%s309 + $0x15e] sm:$0xff]
        %v622 = vld [vmem:[%s309 + $0x166] sm:$0xff]
        %v623 = vld [vmem:[%s309 + $0x16e] sm:$0xff]
        %v624 = vld [vmem:[%s309 + $0x176] sm:$0x3f]
        %v625 = vld [vmem:[%s309 + $0x160] sm:$0xff]
        %v626 = vld [vmem:[%s309 + $0x168] sm:$0xff]
        %v627 = vld [vmem:[%s309 + $0x170] sm:$0xff]
        %v628 = vld [vmem:[%s309 + $0x178] sm:$0xff]
        %v629 = vld [vmem:[%s309 + $0x180] sm:$0xff]
        %v630 = vld [vmem:[%s309 + $0x188] sm:$0x3f]
        %v631 = vld [vmem:[%s309 + $0x161] sm:$0xff]
        %v632 = vld [vmem:[%s309 + $0x169] sm:$0xff]
        %v633 = vld [vmem:[%s309 + $0x171] sm:$0xff]
        %v634 = vld [vmem:[%s309 + $0x179] sm:$0xff]
        %v635 = vld [vmem:[%s309 + $0x181] sm:$0xff]
        %v636 = vld [vmem:[%s309 + $0x189] sm:$0x3f]
        %v637 = vld [vmem:[%s309 + $0x2a] sm:$0xff]
        %v638 = vld [vmem:[%s309 + $0x32] sm:$0xff]
        %v639 = vld [vmem:[%s309 + $0x3a] sm:$0xff]
        %v640 = vld [vmem:[%s309 + $0x42] sm:$0xff]
        %v641 = vld [vmem:[%s309 + $0x4a] sm:$0xff]
        %v642 = vld [vmem:[%s309 + $0x52] sm:$0xff]
        %v643 = vld [vmem:[%s309 + $0x5a] sm:$0xff]
        %v644 = vld [vmem:[%s309 + $0x62] sm:$0xff]
        %v645 = vld [vmem:[%s309 + $0x6a] sm:$0xff]
        %v646 = vld [vmem:[%s309 + $0x72] sm:$0xff]
        %v647 = vld [vmem:[%s309 + $0x7a] sm:$0xff]
        %v648 = vld [vmem:[%s309 + $0x82] sm:$0xff]
        %v649 = vld [vmem:[%s309 + $0x8a] sm:$0xff]
        %v650 = vld [vmem:[%s309 + $0x92] sm:$0xff]
        %v651 = vld [vmem:[%s309 + $0x9a] sm:$0xff]
        %v652 = vld [vmem:[%s309 + $0xa2] sm:$0xff]
        %v653 = vld [vmem:[%s309 + $0xaa] sm:$0xff]
        %v654 = vld [vmem:[%s309 + $0xb2] sm:$0xff]
        %v655 = vld [vmem:[%s309 + $0xba] sm:$0xff]
        %v656 = vld [vmem:[%s309 + $0xc2] sm:$0xff]
        %v657 = vld [vmem:[%s309 + $0xca] sm:$0xff]
        %v658 = vld [vmem:[%s309 + $0xd2] sm:$0xff]
        %v659 = vld [vmem:[%s309 + $0xda] sm:$0xff]
        %v660 = vld [vmem:[%s309 + $0xe2] sm:$0xff]
        %v661 = vld [vmem:[%s309 + $0xea] sm:$0xff]
        %v662 = vld [vmem:[%s309 + $0xf2] sm:$0xff]
        %v663 = vld [vmem:[%s309 + $0xfa] sm:$0xff]
        %v664 = vld [vmem:[%s309 + $0x102] sm:$0xff]
        %v665 = vld [vmem:[%s309 + $0x10a] sm:$0xff]
        %v666 = vld [vmem:[%s309 + $0x112] sm:$0xff]
        %v667 = vld [vmem:[%s309 + $0x11a] sm:$0xff]
        %v668 = vld [vmem:[%s309 + $0x122] sm:$0xff]
        %v669 = vld [vmem:[%s309 + $0x12a] sm:$0xff]
        %v670 = vld [vmem:[%s309 + $0x132] sm:$0xff]
        %v671 = vld [vmem:[%s309 + $0x13a] sm:$0xff]
        %v672 = vld [vmem:[%s309 + $0x142] sm:$0xff]
        %v673 = vld [vmem:[%s309 + $0x14a] sm:$0xff]
        %v674 = vld [vmem:[%s309 + $0x152] sm:$0xff]
        %v675 = vld [vmem:[%s309 + $0x15a] sm:$0xff]
        %v676 = vld [vmem:[%s309 + $0x162] sm:$0xff]
        %v677 = vld [vmem:[%s309 + $0x16a] sm:$0xff]
        %v678 = vld [vmem:[%s309 + $0x172] sm:$0xff]
        %v679 = vld [vmem:[%s309 + $0x17a] sm:$0xff]
        %v680 = vld [vmem:[%s309 + $0x182] sm:$0xff]
        %v681 = vld [vmem:[%s309 + $0x18a] sm:$0x3f]
        %v682 = vld [vmem:[#allocation4] sm:$0xff]
        %v683 = vld [vmem:[#allocation4 + $0x8] sm:$0xff]
        %v684 = vld [vmem:[#allocation4 + $0x10] sm:$0xff]
        %v685 = vld [vmem:[#allocation4 + $0x18] sm:$0xff]
        %v686 = vld [vmem:[#allocation4 + $0x20] sm:$0xff]
        %v687 = vld [vmem:[#allocation4 + $0x28] sm:$0xff]
        %v688 = vld [vmem:[#allocation4 + $0x30] sm:$0xff]
        %v689 = vld [vmem:[#allocation4 + $0x38] sm:$0xff]
        %v690 = vld [vmem:[#allocation4 + $0x40] sm:$0xff]
        %v691 = vld [vmem:[#allocation4 + $0x48] sm:$0xff]
        %v692 = vld [vmem:[#allocation4 + $0x50] sm:$0xff]
        %v693 = vld [vmem:[#allocation4 + $0x58] sm:$0xff]
        %v694 = vld [vmem:[#allocation4 + $0x60] sm:$0xff]
        %v695 = vld [vmem:[#allocation4 + $0x68] sm:$0xff]
        %v696 = vld [vmem:[#allocation4 + $0x70] sm:$0xff]
        %v697 = vld [vmem:[#allocation4 + $0x78] sm:$0xff]
        %v698 = vld [vmem:[#allocation4 + $0x80] sm:$0xff]
        %v699 = vld [vmem:[#allocation4 + $0x88] sm:$0xff]
        %v700 = vld [vmem:[#allocation4 + $0x90] sm:$0xff]
        %v701 = vld [vmem:[#allocation4 + $0x98] sm:$0xff]
        %v702 = vld [vmem:[#allocation4 + $0xa0] sm:$0xff]
        %v703 = vld [vmem:[#allocation4 + $0xa8] sm:$0xff]
        %v704 = vld [vmem:[#allocation4 + $0xb0] sm:$0xff]
        %v705 = vld [vmem:[#allocation4 + $0xb8] sm:$0xff]
        %v706 = vld [vmem:[#allocation4 + $0xc0] sm:$0xff]
        %v707 = vld [vmem:[#allocation4 + $0xc8] sm:$0xff]
        %v708 = vld [vmem:[#allocation4 + $0xd0] sm:$0xff]
        %v709 = vld [vmem:[#allocation4 + $0xd8] sm:$0xff]
        %v710 = vld [vmem:[#allocation4 + $0xe0] sm:$0xff]
        %v711 = vld [vmem:[#allocation4 + $0xe8] sm:$0xff]
        %v712 = vld [vmem:[#allocation4 + $0xf0] sm:$0xff]
        %v713 = vld [vmem:[#allocation4 + $0xf8] sm:$0xff]
        %v714 = vld [vmem:[#allocation4 + $0x100] sm:$0xff]
        %v715 = vld [vmem:[#allocation4 + $0x108] sm:$0xff]
        %v716 = vld [vmem:[#allocation4 + $0x110] sm:$0xff]
        %v717 = vld [vmem:[#allocation4 + $0x118] sm:$0xff]
        %v718 = vld [vmem:[#allocation4 + $0x120] sm:$0xff]
        %v719 = vld [vmem:[#allocation4 + $0x128] sm:$0xff]
        %v720 = vld [vmem:[#allocation4 + $0x130] sm:$0xff]
        %v721 = vld [vmem:[#allocation4 + $0x138] sm:$0xff]
        %v722 = vld [vmem:[#allocation4 + $0x140] sm:$0xff]
        %v723 = vld [vmem:[#allocation4 + $0x148] sm:$0xff]
        %v724 = vld [vmem:[#allocation4 + $0x150] sm:$0xff]
        %v725 = vld [vmem:[#allocation4 + $0x158] sm:$0xff]
        %v726 = vld [vmem:[#allocation4 + $0x160] sm:$0xff]
        %v727 = vld [vmem:[#allocation4 + $0x168] sm:$0xff]
        %v728 = vld [vmem:[#allocation4 + $0x170] sm:$0xff]
        %v729 = vld [vmem:[#allocation4 + $0x178] sm:$0xff]
        %v730 = vld [vmem:[#allocation4 + $0x180] sm:$0xff]
        %v731 = vld [vmem:[#allocation4 + $0x188] sm:$0xff]
        %v732 = vld [vmem:[#allocation4 + $0x190] sm:$0xff]
        %v733 = vld [vmem:[#allocation4 + $0x198] sm:$0xff]
        %v734 = vld [vmem:[#allocation4 + $0x1a0] sm:$0xff]
        %v735 = vld [vmem:[#allocation4 + $0x1a8] sm:$0xff]
        %v736 = vld [vmem:[#allocation4 + $0x1b0] sm:$0xff]
        %v737 = vld [vmem:[#allocation4 + $0x1b8] sm:$0xff]
        %v738 = vld [vmem:[#allocation4 + $0x1c0] sm:$0xff]
        %v739 = vld [vmem:[#allocation4 + $0x1c8] sm:$0xff]
        %v740 = vld [vmem:[#allocation4 + $0x1d0] sm:$0xff]
        %v741 = vld [vmem:[#allocation4 + $0x1d8] sm:$0xff]
        %v742 = vld [vmem:[#allocation4 + $0x1e0] sm:$0xff]
        %v743 = vld [vmem:[#allocation4 + $0x1e8] sm:$0xff]
        %v744 = vld [vmem:[#allocation4 + $0x1f0] sm:$0xff]
        %v745 = vld [vmem:[#allocation4 + $0x1f8] sm:$0xff]
        %v746 = vld [vmem:[#allocation4 + $0x200] sm:$0xff]
        %v747 = vld [vmem:[#allocation4 + $0x208] sm:$0xff]
        %v748 = vld [vmem:[#allocation4 + $0x210] sm:$0xff]
        %v749 = vld [vmem:[#allocation4 + $0x218] sm:$0xff]
        %v750 = vld [vmem:[#allocation4 + $0x220] sm:$0xff]
        %v751 = vld [vmem:[#allocation4 + $0x228] sm:$0xff]
        %v752 = vld [vmem:[#allocation4 + $0x230] sm:$0xff]
        %v753 = vld [vmem:[#allocation4 + $0x238] sm:$0xff]
        %v754 = vld [vmem:[#allocation4 + $0x240] sm:$0xff]
        %v755 = vld [vmem:[#allocation4 + $0x248] sm:$0xff]
        %v756 = vld [vmem:[#allocation4 + $0x250] sm:$0xff]
        %v757 = vld [vmem:[#allocation4 + $0x258] sm:$0xff]
        %v758 = vld [vmem:[#allocation4 + $0x260] sm:$0xff]
        %v759 = vld [vmem:[#allocation4 + $0x268] sm:$0xff]
        %v760 = vld [vmem:[#allocation4 + $0x270] sm:$0xff]
        %v761 = vld [vmem:[#allocation4 + $0x278] sm:$0xff]
        %v762 = vld [vmem:[#allocation4 + $0x280] sm:$0xff]
        %v763 = vld [vmem:[#allocation4 + $0x288] sm:$0xff]
        %v764 = vld [vmem:[#allocation4 + $0x290] sm:$0xff]
        %v765 = vld [vmem:[#allocation4 + $0x298] sm:$0xff]
        %v766 = vld [vmem:[#allocation4 + $0x2a0] sm:$0xff]
        %v767 = vld [vmem:[#allocation4 + $0x2a8] sm:$0xff]
        %v768 = vld [vmem:[#allocation4 + $0x2b0] sm:$0xff]
        %v769 = vld [vmem:[#allocation4 + $0x2b8] sm:$0xff]
        %v770 = vld [vmem:[#allocation4 + $0x2c0] sm:$0xff]
        %v771 = vld [vmem:[#allocation4 + $0x2c8] sm:$0xff]
        %v772 = vld [vmem:[#allocation4 + $0x2d0] sm:$0xff]
        %v773 = vld [vmem:[#allocation4 + $0x2d8] sm:$0xff]
        %v774 = vld [vmem:[#allocation4 + $0x2e0] sm:$0xff]
        %v775 = vld [vmem:[#allocation4 + $0x2e8] sm:$0xff]
        %v776 = vld [vmem:[#allocation4 + $0x2f0] sm:$0xff]
        %v777 = vld [vmem:[#allocation4 + $0x2f8] sm:$0xff]
        %v778 = vld [vmem:[#allocation4 + $0x300] sm:$0xff]
        %v779 = vld [vmem:[#allocation4 + $0x308] sm:$0xff]
        %v780 = vld [vmem:[#allocation4 + $0x310] sm:$0xff]
        %v781 = vld [vmem:[#allocation4 + $0x318] sm:$0xff]
        %v782 = vld [vmem:[#allocation4 + $0x320] sm:$0xff]
        %v783 = vld [vmem:[#allocation4 + $0x328] sm:$0xff]
        %v784 = vld [vmem:[#allocation4 + $0x330] sm:$0xff]
        %v785 = vld [vmem:[#allocation4 + $0x338] sm:$0xff]
        %v786 = vld [vmem:[#allocation4 + $0x340] sm:$0xff]
        %v787 = vld [vmem:[#allocation4 + $0x348] sm:$0xff]
        %v788 = vld [vmem:[#allocation4 + $0x350] sm:$0xff]
        %v789 = vld [vmem:[#allocation4 + $0x358] sm:$0xff]
        %v790 = vld [vmem:[#allocation4 + $0x360] sm:$0xff]
        %v791 = vld [vmem:[#allocation4 + $0x368] sm:$0xff]
        %v792 = vld [vmem:[#allocation4 + $0x370] sm:$0xff]
        %v793 = vld [vmem:[#allocation4 + $0x378] sm:$0xff]
        %v794 = vld [vmem:[#allocation4 + $0x380] sm:$0xff]
        %v795 = vld [vmem:[#allocation4 + $0x388] sm:$0xff]
        %v796 = vld [vmem:[#allocation4 + $0x390] sm:$0xff]
        %v797 = vld [vmem:[#allocation4 + $0x398] sm:$0xff]
        %v798 = vld [vmem:[#allocation4 + $0x3a0] sm:$0xff]
        %v799 = vld [vmem:[#allocation4 + $0x3a8] sm:$0xff]
        %v800 = vld [vmem:[#allocation4 + $0x3b0] sm:$0xff]
        %v801 = vld [vmem:[#allocation4 + $0x3b8] sm:$0xff]
        %v802 = vld [vmem:[#allocation4 + $0x3c0] sm:$0xff]
        %v803 = vld [vmem:[#allocation4 + $0x3c8] sm:$0xff]
        %v804 = vld [vmem:[#allocation4 + $0x3d0] sm:$0xff]
        %v805 = vld [vmem:[#allocation4 + $0x3d8] sm:$0xff]
        %v806 = vld [vmem:[#allocation4 + $0x3e0] sm:$0xff]
        %v807 = vld [vmem:[#allocation4 + $0x3e8] sm:$0xff]
        %v808 = vld [vmem:[#allocation4 + $0x3f0] sm:$0xff]
        %v809 = vld [vmem:[#allocation4 + $0x3f8] sm:$0xff]
        %v810 = vld [vmem:[#allocation4 + $0x400] sm:$0xff]
        %v811 = vld [vmem:[#allocation4 + $0x408] sm:$0xff]
        %v812 = vld [vmem:[#allocation4 + $0x410] sm:$0xff]
        %v813 = vld [vmem:[#allocation4 + $0x418] sm:$0xff]
        %v814 = vld [vmem:[#allocation4 + $0x420] sm:$0xff]
        %v815 = vld [vmem:[#allocation4 + $0x428] sm:$0xff]
        %v816 = vld [vmem:[#allocation4 + $0x430] sm:$0xff]
        %v817 = vld [vmem:[#allocation4 + $0x438] sm:$0xff]
        %v818 = vld [vmem:[#allocation4 + $0x440] sm:$0xff]
        %v819 = vld [vmem:[#allocation4 + $0x448] sm:$0xff]
        %v820 = vld [vmem:[#allocation4 + $0x450] sm:$0xff]
        %v821 = vld [vmem:[#allocation4 + $0x458] sm:$0xff]
        %v822 = vld [vmem:[#allocation4 + $0x460] sm:$0xff]
        %v823 = vld [vmem:[#allocation4 + $0x468] sm:$0xff]
        %v824 = vld [vmem:[#allocation4 + $0x470] sm:$0xff]
        %v825 = vld [vmem:[#allocation4 + $0x478] sm:$0xff]
        %826 = vmatprep.subr.mxu0 0.0
        %827 = vmatpush1.msra.mxu0 %v697
        %828 = vmatprep.subr.mxu0 0.0
        %829 = vmatpush1.msra.mxu0 %v696
        %830 = vmatprep.subr.mxu0 0.0
        %831 = vmatpush1.msra.mxu0 %v695
        %832 = vmatprep.subr.mxu0 0.0
        %833 = vmatpush1.msra.mxu0 %v694
        %834 = vmatprep.subr.mxu0 0.0
        %835 = vmatpush1.msra.mxu0 %v693
        %836 = vmatprep.subr.mxu0 0.0
        %837 = vmatpush1.msra.mxu0 %v692
        %838 = vmatprep.subr.mxu0 0.0
        %839 = vmatpush1.msra.mxu0 %v691
        %840 = vmatprep.subr.mxu0 0.0
        %841 = vmatpush1.msra.mxu0 %v690
        %842 = vmatprep.subr.mxu0 0.0
        %843 = vmatpush1.msra.mxu0 %v689
        %844 = vmatprep.subr.mxu0 0.0
        %845 = vmatpush1.msra.mxu0 %v688
        %846 = vmatprep.subr.mxu0 0.0
        %847 = vmatpush1.msra.mxu0 %v687
        %848 = vmatprep.subr.mxu0 0.0
        %849 = vmatpush1.msra.mxu0 %v686
        %850 = vmatprep.subr.mxu0 0.0
        %851 = vmatpush1.msra.mxu0 %v685
        %852 = vmatprep.subr.mxu0 0.0
        %853 = vmatpush1.msra.mxu0 %v684
        %854 = vmatprep.subr.mxu0 0.0
        %855 = vmatpush1.msra.mxu0 %v683
        %856 = vmatprep.subr.mxu0 0.0
        %857 = vmatpush1.msra.mxu0 %v682
        %858 = vmatprep.subr.mxu0 0.0
        %859 = vmatpush2.msra.mxu0 %v713
        %860 = vmatprep.subr.mxu0 0.0
        %861 = vmatpush2.msra.mxu0 %v712
        %862 = vmatprep.subr.mxu0 0.0
        %863 = vmatpush2.msra.mxu0 %v711
        %864 = vmatprep.subr.mxu0 0.0
        %865 = vmatpush2.msra.mxu0 %v710
        %866 = vmatprep.subr.mxu0 0.0
        %867 = vmatpush2.msra.mxu0 %v709
        %868 = vmatprep.subr.mxu0 0.0
        %869 = vmatpush2.msra.mxu0 %v708
        %870 = vmatprep.subr.mxu0 0.0
        %871 = vmatpush2.msra.mxu0 %v707
        %872 = vmatprep.subr.mxu0 0.0
        %873 = vmatpush2.msra.mxu0 %v706
        %874 = vmatprep.subr.mxu0 0.0
        %875 = vmatpush2.msra.mxu0 %v705
        %876 = vmatprep.subr.mxu0 0.0
        %877 = vmatpush2.msra.mxu0 %v704
        %878 = vmatprep.subr.mxu0 0.0
        %879 = vmatpush2.msra.mxu0 %v703
        %880 = vmatprep.subr.mxu0 0.0
        %881 = vmatpush2.msra.mxu0 %v702
        %882 = vmatprep.subr.mxu0 0.0
        %883 = vmatpush2.msra.mxu0 %v701
        %884 = vmatprep.subr.mxu0 0.0
        %885 = vmatpush2.msra.mxu0 %v700
        %886 = vmatprep.subr.mxu0 0.0
        %887 = vmatpush2.msra.mxu0 %v699
        %888 = vmatprep.subr.mxu0 0.0
        %889 = vmatpush2.msra.mxu0 %v698
        %890 = vmatprep.mubr.f32.mxu0 %v400
        %891 = vmatmul.mubr.f32.gmra.mxu0 %v355
        %v892 = vpop.f32.mrf.mxu0
        %v893 = vadd.f32 0.0, %v892
        %v894 = vpop.f32.mrf.mxu0
        %895 = vmatprep.mubr.f32.mxu0 %v401
        %896 = vmatmul.mubr.f32.gmra.mxu0 %v356
        %v897 = vpop.f32.mrf.mxu0
        %v898 = vadd.f32 0.0, %v897
        %v899 = vpop.f32.mrf.mxu0
        %900 = vmatprep.mubr.f32.mxu0 %v402
        %901 = vmatmul.mubr.f32.gmra.mxu0 %v357
        %v902 = vpop.f32.mrf.mxu0
        %v903 = vadd.f32 0.0, %v902
        %v904 = vpop.f32.mrf.mxu0
        %905 = vmatprep.mubr.f32.mxu0 %v403
        %906 = vmatmul.mubr.f32.gmra.mxu0 %v358
        %v907 = vpop.f32.mrf.mxu0
        %v908 = vadd.f32 0.0, %v907
        %v909 = vpop.f32.mrf.mxu0
        %910 = vmatprep.mubr.f32.mxu0 %v404
        %911 = vmatmul.mubr.f32.gmra.mxu0 %v359
        %v912 = vpop.f32.mrf.mxu0
        %v913 = vadd.f32 0.0, %v912
        %v914 = vpop.f32.mrf.mxu0
        %915 = vmatprep.mubr.f32.mxu0 %v405
        %916 = vmatmul.mubr.f32.gmra.mxu0 %v360
        %v917 = vpop.f32.mrf.mxu0
        %v918 = vadd.f32 0.0, %v917
        %v919 = vpop.f32.mrf.mxu0
        %920 = vmatprep.mubr.f32.mxu0 %v406
        %921 = vmatmul.mubr.f32.gmra.mxu0 %v361
        %v922 = vpop.f32.mrf.mxu0
        %v923 = vadd.f32 0.0, %v922
        %v924 = vpop.f32.mrf.mxu0
        %925 = vmatprep.mubr.f32.mxu0 %v407
        %926 = vmatmul.mubr.f32.gmra.mxu0 %v362
        %v927 = vpop.f32.mrf.mxu0
        %v928 = vadd.f32 0.0, %v927
        %v929 = vpop.f32.mrf.mxu0
        %930 = vmatprep.mubr.f32.mxu0 %v408
        %931 = vmatmul.mubr.f32.gmra.mxu0 %v363
        %v932 = vpop.f32.mrf.mxu0
        %v933 = vadd.f32 0.0, %v932
        %v934 = vpop.f32.mrf.mxu0
        %935 = vmatprep.mubr.f32.mxu0 %v409
        %936 = vmatmul.mubr.f32.gmra.mxu0 %v364
        %v937 = vpop.f32.mrf.mxu0
        %v938 = vadd.f32 0.0, %v937
        %v939 = vpop.f32.mrf.mxu0
        %940 = vmatprep.mubr.f32.mxu0 %v410
        %941 = vmatmul.mubr.f32.gmra.mxu0 %v365
        %v942 = vpop.f32.mrf.mxu0
        %v943 = vadd.f32 0.0, %v942
        %v944 = vpop.f32.mrf.mxu0
        %945 = vmatprep.mubr.f32.mxu0 %v411
        %946 = vmatmul.mubr.f32.gmra.mxu0 %v366
        %v947 = vpop.f32.mrf.mxu0
        %v948 = vadd.f32 0.0, %v947
        %v949 = vpop.f32.mrf.mxu0
        %950 = vmatprep.mubr.f32.mxu0 %v412
        %951 = vmatmul.mubr.f32.gmra.mxu0 %v367
        %v952 = vpop.f32.mrf.mxu0
        %v953 = vadd.f32 0.0, %v952
        %v954 = vpop.f32.mrf.mxu0
        %955 = vmatprep.mubr.f32.mxu0 %v413
        %956 = vmatmul.mubr.f32.gmra.mxu0 %v368
        %v957 = vpop.f32.mrf.mxu0
        %v958 = vadd.f32 0.0, %v957
        %v959 = vpop.f32.mrf.mxu0
        %960 = vmatprep.mubr.f32.mxu0 %v414
        %961 = vmatmul.mubr.f32.gmra.mxu0 %v369
        %v962 = vpop.f32.mrf.mxu0
        %v963 = vadd.f32 0.0, %v962
        %v964 = vpop.f32.mrf.mxu0
        %965 = vmatprep.mubr.f32.mxu0 %v415
        %966 = vmatmul.mubr.f32.gmra.mxu0 %v370
        %v967 = vpop.f32.mrf.mxu0
        %v968 = vadd.f32 0.0, %v967
        %v969 = vpop.f32.mrf.mxu0
        %970 = vmatprep.mubr.f32.mxu0 %v416
        %971 = vmatmul.mubr.f32.gmra.mxu0 %v371
        %v972 = vpop.f32.mrf.mxu0
        %v973 = vadd.f32 0.0, %v972
        %v974 = vpop.f32.mrf.mxu0
        %975 = vmatprep.mubr.f32.mxu0 %v417
        %976 = vmatmul.mubr.f32.gmra.mxu0 %v372
        %v977 = vpop.f32.mrf.mxu0
        %v978 = vadd.f32 0.0, %v977
        %v979 = vpop.f32.mrf.mxu0
        %980 = vmatprep.mubr.f32.mxu0 %v418
        %981 = vmatmul.mubr.f32.gmra.mxu0 %v373
        %v982 = vpop.f32.mrf.mxu0
        %v983 = vadd.f32 0.0, %v982
        %v984 = vpop.f32.mrf.mxu0
        %985 = vmatprep.mubr.f32.mxu0 %v419
        %986 = vmatmul.mubr.f32.gmra.mxu0 %v374
        %v987 = vpop.f32.mrf.mxu0
        %v988 = vadd.f32 0.0, %v987
        %v989 = vpop.f32.mrf.mxu0
        %990 = vmatprep.mubr.f32.mxu0 %v420
        %991 = vmatmul.mubr.f32.gmra.mxu0 %v375
        %v992 = vpop.f32.mrf.mxu0
        %v993 = vadd.f32 0.0, %v992
        %v994 = vpop.f32.mrf.mxu0
        %995 = vmatprep.mubr.f32.mxu0 %v421
        %996 = vmatmul.mubr.f32.gmra.mxu0 %v376
        %v997 = vpop.f32.mrf.mxu0
        %v998 = vadd.f32 0.0, %v997
        %v999 = vpop.f32.mrf.mxu0
        %1000 = vmatprep.mubr.f32.mxu0 %v422
        %1001 = vmatmul.mubr.f32.gmra.mxu0 %v377
        %v1002 = vpop.f32.mrf.mxu0
        %v1003 = vadd.f32 0.0, %v1002
        %v1004 = vpop.f32.mrf.mxu0
        %1005 = vmatprep.mubr.f32.mxu0 %v423
        %1006 = vmatmul.mubr.f32.gmra.mxu0 %v378
        %v1007 = vpop.f32.mrf.mxu0
        %v1008 = vadd.f32 0.0, %v1007
        %v1009 = vpop.f32.mrf.mxu0
        %1010 = vmatprep.mubr.f32.mxu0 %v424
        %1011 = vmatmul.mubr.f32.gmra.mxu0 %v379
        %v1012 = vpop.f32.mrf.mxu0
        %v1013 = vadd.f32 0.0, %v1012
        %v1014 = vpop.f32.mrf.mxu0
        %1015 = vmatprep.mubr.f32.mxu0 %v425
        %1016 = vmatmul.mubr.f32.gmra.mxu0 %v380
        %v1017 = vpop.f32.mrf.mxu0
        %v1018 = vadd.f32 0.0, %v1017
        %v1019 = vpop.f32.mrf.mxu0
        %1020 = vmatprep.mubr.f32.mxu0 %v426
        %1021 = vmatmul.mubr.f32.gmra.mxu0 %v381
        %v1022 = vpop.f32.mrf.mxu0
        %v1023 = vadd.f32 0.0, %v1022
        %v1024 = vpop.f32.mrf.mxu0
        %1025 = vmatprep.mubr.f32.mxu0 %v427
        %1026 = vmatmul.mubr.f32.gmra.mxu0 %v382
        %v1027 = vpop.f32.mrf.mxu0
        %v1028 = vadd.f32 0.0, %v1027
        %v1029 = vpop.f32.mrf.mxu0
        %1030 = vmatprep.mubr.f32.mxu0 %v428
        %1031 = vmatmul.mubr.f32.gmra.mxu0 %v383
        %v1032 = vpop.f32.mrf.mxu0
        %v1033 = vadd.f32 0.0, %v1032
        %v1034 = vpop.f32.mrf.mxu0
        %1035 = vmatprep.mubr.f32.mxu0 %v429
        %1036 = vmatmul.mubr.f32.gmra.mxu0 %v384
        %v1037 = vpop.f32.mrf.mxu0
        %v1038 = vadd.f32 0.0, %v1037
        %v1039 = vpop.f32.mrf.mxu0
        %1040 = vmatprep.mubr.f32.mxu0 %v430
        %1041 = vmatmul.mubr.f32.gmra.mxu0 %v385
        %v1042 = vpop.f32.mrf.mxu0
        %v1043 = vadd.f32 0.0, %v1042
        %v1044 = vpop.f32.mrf.mxu0
        %1045 = vmatprep.mubr.f32.mxu0 %v431
        %1046 = vmatmul.mubr.f32.gmra.mxu0 %v386
        %v1047 = vpop.f32.mrf.mxu0
        %v1048 = vadd.f32 0.0, %v1047
        %v1049 = vpop.f32.mrf.mxu0
        %1050 = vmatprep.mubr.f32.mxu0 %v432
        %1051 = vmatmul.mubr.f32.gmra.mxu0 %v387
        %v1052 = vpop.f32.mrf.mxu0
        %v1053 = vadd.f32 0.0, %v1052
        %v1054 = vpop.f32.mrf.mxu0
        %1055 = vmatprep.mubr.f32.mxu0 %v433
        %1056 = vmatmul.mubr.f32.gmra.mxu0 %v388
        %v1057 = vpop.f32.mrf.mxu0
        %v1058 = vadd.f32 0.0, %v1057
        %v1059 = vpop.f32.mrf.mxu0
        %1060 = vmatprep.mubr.f32.mxu0 %v434
        %1061 = vmatmul.mubr.f32.gmra.mxu0 %v389
        %v1062 = vpop.f32.mrf.mxu0
        %v1063 = vadd.f32 0.0, %v1062
        %v1064 = vpop.f32.mrf.mxu0
        %1065 = vmatprep.mubr.f32.mxu0 %v435
        %1066 = vmatmul.mubr.f32.gmra.mxu0 %v390
        %v1067 = vpop.f32.mrf.mxu0
        %v1068 = vadd.f32 0.0, %v1067
        %v1069 = vpop.f32.mrf.mxu0
        %1070 = vmatprep.mubr.f32.mxu0 %v436
        %1071 = vmatmul.mubr.f32.gmra.mxu0 %v391
        %v1072 = vpop.f32.mrf.mxu0
        %v1073 = vadd.f32 0.0, %v1072
        %v1074 = vpop.f32.mrf.mxu0
        %1075 = vmatprep.mubr.f32.mxu0 %v437
        %1076 = vmatmul.mubr.f32.gmra.mxu0 %v392
        %v1077 = vpop.f32.mrf.mxu0
        %v1078 = vadd.f32 0.0, %v1077
        %v1079 = vpop.f32.mrf.mxu0
        %1080 = vmatprep.mubr.f32.mxu0 %v438
        %1081 = vmatmul.mubr.f32.gmra.mxu0 %v393
        %v1082 = vpop.f32.mrf.mxu0
        %v1083 = vadd.f32 0.0, %v1082
        %v1084 = vpop.f32.mrf.mxu0
        %1085 = vmatprep.mubr.f32.mxu0 %v439
        %1086 = vmatmul.mubr.f32.gmra.mxu0 %v394
        %v1087 = vpop.f32.mrf.mxu0
        %v1088 = vadd.f32 0.0, %v1087
        %v1089 = vpop.f32.mrf.mxu0
        %1090 = vmatprep.mubr.f32.mxu0 %v440
        %1091 = vmatmul.mubr.f32.gmra.mxu0 %v395
        %v1092 = vpop.f32.mrf.mxu0
        %v1093 = vadd.f32 0.0, %v1092
        %v1094 = vpop.f32.mrf.mxu0
        %1095 = vmatprep.mubr.f32.mxu0 %v441
        %1096 = vmatmul.mubr.f32.gmra.mxu0 %v396
        %v1097 = vpop.f32.mrf.mxu0
        %v1098 = vadd.f32 0.0, %v1097
        %v1099 = vpop.f32.mrf.mxu0
        %1100 = vmatprep.mubr.f32.mxu0 %v442
        %1101 = vmatmul.mubr.f32.gmra.mxu0 %v397
        %v1102 = vpop.f32.mrf.mxu0
        %v1103 = vadd.f32 0.0, %v1102
        %v1104 = vpop.f32.mrf.mxu0
        %1105 = vmatprep.mubr.f32.mxu0 %v443
        %1106 = vmatmul.mubr.f32.gmra.mxu0 %v398
        %v1107 = vpop.f32.mrf.mxu0
        %v1108 = vadd.f32 0.0, %v1107
        %v1109 = vpop.f32.mrf.mxu0
        %1110 = vmatprep.mubr.f32.mxu0 %v444
        %1111 = vmatmul.mubr.f32.gmra.mxu0 %v399
        %v1112 = vpop.f32.mrf.mxu0
        %v1113 = vadd.f32 0.0, %v1112
        %v1114 = vpop.f32.mrf.mxu0
        %1115 = vdwg.mxu0
        %1116 = vmatprep.subr.mxu0 0.0
        %1117 = vmatpush1.msra.mxu0 %v729
        %1118 = vmatprep.subr.mxu0 0.0
        %1119 = vmatpush1.msra.mxu0 %v728
        %1120 = vmatprep.subr.mxu0 0.0
        %1121 = vmatpush1.msra.mxu0 %v727
        %1122 = vmatprep.subr.mxu0 0.0
        %1123 = vmatpush1.msra.mxu0 %v726
        %1124 = vmatprep.subr.mxu0 0.0
        %1125 = vmatpush1.msra.mxu0 %v725
        %1126 = vmatprep.subr.mxu0 0.0
        %1127 = vmatpush1.msra.mxu0 %v724
        %1128 = vmatprep.subr.mxu0 0.0
        %1129 = vmatpush1.msra.mxu0 %v723
        %1130 = vmatprep.subr.mxu0 0.0
        %1131 = vmatpush1.msra.mxu0 %v722
        %1132 = vmatprep.subr.mxu0 0.0
        %1133 = vmatpush1.msra.mxu0 %v721
        %1134 = vmatprep.subr.mxu0 0.0
        %1135 = vmatpush1.msra.mxu0 %v720
        %1136 = vmatprep.subr.mxu0 0.0
        %1137 = vmatpush1.msra.mxu0 %v719
        %1138 = vmatprep.subr.mxu0 0.0
        %1139 = vmatpush1.msra.mxu0 %v718
        %1140 = vmatprep.subr.mxu0 0.0
        %1141 = vmatpush1.msra.mxu0 %v717
        %1142 = vmatprep.subr.mxu0 0.0
        %1143 = vmatpush1.msra.mxu0 %v716
        %1144 = vmatprep.subr.mxu0 0.0
        %1145 = vmatpush1.msra.mxu0 %v715
        %1146 = vmatprep.subr.mxu0 0.0
        %1147 = vmatpush1.msra.mxu0 %v714
        %1148 = vmatprep.subr.mxu0 0.0
        %1149 = vmatpush2.msra.mxu0 %v745
        %1150 = vmatprep.subr.mxu0 0.0
        %1151 = vmatpush2.msra.mxu0 %v744
        %1152 = vmatprep.subr.mxu0 0.0
        %1153 = vmatpush2.msra.mxu0 %v743
        %1154 = vmatprep.subr.mxu0 0.0
        %1155 = vmatpush2.msra.mxu0 %v742
        %1156 = vmatprep.subr.mxu0 0.0
        %1157 = vmatpush2.msra.mxu0 %v741
        %1158 = vmatprep.subr.mxu0 0.0
        %1159 = vmatpush2.msra.mxu0 %v740
        %1160 = vmatprep.subr.mxu0 0.0
        %1161 = vmatpush2.msra.mxu0 %v739
        %1162 = vmatprep.subr.mxu0 0.0
        %1163 = vmatpush2.msra.mxu0 %v738
        %1164 = vmatprep.subr.mxu0 0.0
        %1165 = vmatpush2.msra.mxu0 %v737
        %1166 = vmatprep.subr.mxu0 0.0
        %1167 = vmatpush2.msra.mxu0 %v736
        %1168 = vmatprep.subr.mxu0 0.0
        %1169 = vmatpush2.msra.mxu0 %v735
        %1170 = vmatprep.subr.mxu0 0.0
        %1171 = vmatpush2.msra.mxu0 %v734
        %1172 = vmatprep.subr.mxu0 0.0
        %1173 = vmatpush2.msra.mxu0 %v733
        %1174 = vmatprep.subr.mxu0 0.0
        %1175 = vmatpush2.msra.mxu0 %v732
        %1176 = vmatprep.subr.mxu0 0.0
        %1177 = vmatpush2.msra.mxu0 %v731
        %1178 = vmatprep.subr.mxu0 0.0
        %1179 = vmatpush2.msra.mxu0 %v730
        %1180 = vmatprep.mubr.f32.mxu0 %v490
        %1181 = vmatmul.mubr.f32.gmra.mxu0 %v445
        %v1182 = vpop.f32.mrf.mxu0
        %v1183 = vadd.f32 %v893, %v1182
        %v1184 = vpop.f32.mrf.mxu0
        %1185 = vmatprep.mubr.f32.mxu0 %v491
        %1186 = vmatmul.mubr.f32.gmra.mxu0 %v446
        %v1187 = vpop.f32.mrf.mxu0
        %v1188 = vadd.f32 %v898, %v1187
        %v1189 = vpop.f32.mrf.mxu0
        %1190 = vmatprep.mubr.f32.mxu0 %v492
        %1191 = vmatmul.mubr.f32.gmra.mxu0 %v447
        %v1192 = vpop.f32.mrf.mxu0
        %v1193 = vadd.f32 %v903, %v1192
        %v1194 = vpop.f32.mrf.mxu0
        %1195 = vmatprep.mubr.f32.mxu0 %v493
        %1196 = vmatmul.mubr.f32.gmra.mxu0 %v448
        %v1197 = vpop.f32.mrf.mxu0
        %v1198 = vadd.f32 %v908, %v1197
        %v1199 = vpop.f32.mrf.mxu0
        %1200 = vmatprep.mubr.f32.mxu0 %v494
        %1201 = vmatmul.mubr.f32.gmra.mxu0 %v449
        %v1202 = vpop.f32.mrf.mxu0
        %v1203 = vadd.f32 %v913, %v1202
        %v1204 = vpop.f32.mrf.mxu0
        %1205 = vmatprep.mubr.f32.mxu0 %v495
        %1206 = vmatmul.mubr.f32.gmra.mxu0 %v450
        %v1207 = vpop.f32.mrf.mxu0
        %v1208 = vadd.f32 %v918, %v1207
        %v1209 = vpop.f32.mrf.mxu0
        %1210 = vmatprep.mubr.f32.mxu0 %v496
        %1211 = vmatmul.mubr.f32.gmra.mxu0 %v451
        %v1212 = vpop.f32.mrf.mxu0
        %v1213 = vadd.f32 %v923, %v1212
        %v1214 = vpop.f32.mrf.mxu0
        %1215 = vmatprep.mubr.f32.mxu0 %v497
        %1216 = vmatmul.mubr.f32.gmra.mxu0 %v452
        %v1217 = vpop.f32.mrf.mxu0
        %v1218 = vadd.f32 %v928, %v1217
        %v1219 = vpop.f32.mrf.mxu0
        %1220 = vmatprep.mubr.f32.mxu0 %v498
        %1221 = vmatmul.mubr.f32.gmra.mxu0 %v453
        %v1222 = vpop.f32.mrf.mxu0
        %v1223 = vadd.f32 %v933, %v1222
        %v1224 = vpop.f32.mrf.mxu0
        %1225 = vmatprep.mubr.f32.mxu0 %v499
        %1226 = vmatmul.mubr.f32.gmra.mxu0 %v454
        %v1227 = vpop.f32.mrf.mxu0
        %v1228 = vadd.f32 %v938, %v1227
        %v1229 = vpop.f32.mrf.mxu0
        %1230 = vmatprep.mubr.f32.mxu0 %v500
        %1231 = vmatmul.mubr.f32.gmra.mxu0 %v455
        %v1232 = vpop.f32.mrf.mxu0
        %v1233 = vadd.f32 %v943, %v1232
        %v1234 = vpop.f32.mrf.mxu0
        %1235 = vmatprep.mubr.f32.mxu0 %v501
        %1236 = vmatmul.mubr.f32.gmra.mxu0 %v456
        %v1237 = vpop.f32.mrf.mxu0
        %v1238 = vadd.f32 %v948, %v1237
        %v1239 = vpop.f32.mrf.mxu0
        %1240 = vmatprep.mubr.f32.mxu0 %v502
        %1241 = vmatmul.mubr.f32.gmra.mxu0 %v457
        %v1242 = vpop.f32.mrf.mxu0
        %v1243 = vadd.f32 %v953, %v1242
        %v1244 = vpop.f32.mrf.mxu0
        %1245 = vmatprep.mubr.f32.mxu0 %v503
        %1246 = vmatmul.mubr.f32.gmra.mxu0 %v458
        %v1247 = vpop.f32.mrf.mxu0
        %v1248 = vadd.f32 %v958, %v1247
        %v1249 = vpop.f32.mrf.mxu0
        %1250 = vmatprep.mubr.f32.mxu0 %v504
        %1251 = vmatmul.mubr.f32.gmra.mxu0 %v459
        %v1252 = vpop.f32.mrf.mxu0
        %v1253 = vadd.f32 %v963, %v1252
        %v1254 = vpop.f32.mrf.mxu0
        %1255 = vmatprep.mubr.f32.mxu0 %v505
        %1256 = vmatmul.mubr.f32.gmra.mxu0 %v460
        %v1257 = vpop.f32.mrf.mxu0
        %v1258 = vadd.f32 %v968, %v1257
        %v1259 = vpop.f32.mrf.mxu0
        %1260 = vmatprep.mubr.f32.mxu0 %v506
        %1261 = vmatmul.mubr.f32.gmra.mxu0 %v461
        %v1262 = vpop.f32.mrf.mxu0
        %v1263 = vadd.f32 %v973, %v1262
        %v1264 = vpop.f32.mrf.mxu0
        %1265 = vmatprep.mubr.f32.mxu0 %v507
        %1266 = vmatmul.mubr.f32.gmra.mxu0 %v462
        %v1267 = vpop.f32.mrf.mxu0
        %v1268 = vadd.f32 %v978, %v1267
        %v1269 = vpop.f32.mrf.mxu0
        %1270 = vmatprep.mubr.f32.mxu0 %v508
        %1271 = vmatmul.mubr.f32.gmra.mxu0 %v463
        %v1272 = vpop.f32.mrf.mxu0
        %v1273 = vadd.f32 %v983, %v1272
        %v1274 = vpop.f32.mrf.mxu0
        %1275 = vmatprep.mubr.f32.mxu0 %v509
        %1276 = vmatmul.mubr.f32.gmra.mxu0 %v464
        %v1277 = vpop.f32.mrf.mxu0
        %v1278 = vadd.f32 %v988, %v1277
        %v1279 = vpop.f32.mrf.mxu0
        %1280 = vmatprep.mubr.f32.mxu0 %v510
        %1281 = vmatmul.mubr.f32.gmra.mxu0 %v465
        %v1282 = vpop.f32.mrf.mxu0
        %v1283 = vadd.f32 %v993, %v1282
        %v1284 = vpop.f32.mrf.mxu0
        %1285 = vmatprep.mubr.f32.mxu0 %v511
        %1286 = vmatmul.mubr.f32.gmra.mxu0 %v466
        %v1287 = vpop.f32.mrf.mxu0
        %v1288 = vadd.f32 %v998, %v1287
        %v1289 = vpop.f32.mrf.mxu0
        %1290 = vmatprep.mubr.f32.mxu0 %v512
        %1291 = vmatmul.mubr.f32.gmra.mxu0 %v467
        %v1292 = vpop.f32.mrf.mxu0
        %v1293 = vadd.f32 %v1003, %v1292
        %v1294 = vpop.f32.mrf.mxu0
        %1295 = vmatprep.mubr.f32.mxu0 %v513
        %1296 = vmatmul.mubr.f32.gmra.mxu0 %v468
        %v1297 = vpop.f32.mrf.mxu0
        %v1298 = vadd.f32 %v1008, %v1297
        %v1299 = vpop.f32.mrf.mxu0
        %1300 = vmatprep.mubr.f32.mxu0 %v514
        %1301 = vmatmul.mubr.f32.gmra.mxu0 %v469
        %v1302 = vpop.f32.mrf.mxu0
        %v1303 = vadd.f32 %v1013, %v1302
        %v1304 = vpop.f32.mrf.mxu0
        %1305 = vmatprep.mubr.f32.mxu0 %v515
        %1306 = vmatmul.mubr.f32.gmra.mxu0 %v470
        %v1307 = vpop.f32.mrf.mxu0
        %v1308 = vadd.f32 %v1018, %v1307
        %v1309 = vpop.f32.mrf.mxu0
        %1310 = vmatprep.mubr.f32.mxu0 %v516
        %1311 = vmatmul.mubr.f32.gmra.mxu0 %v471
        %v1312 = vpop.f32.mrf.mxu0
        %v1313 = vadd.f32 %v1023, %v1312
        %v1314 = vpop.f32.mrf.mxu0
        %1315 = vmatprep.mubr.f32.mxu0 %v517
        %1316 = vmatmul.mubr.f32.gmra.mxu0 %v472
        %v1317 = vpop.f32.mrf.mxu0
        %v1318 = vadd.f32 %v1028, %v1317
        %v1319 = vpop.f32.mrf.mxu0
        %1320 = vmatprep.mubr.f32.mxu0 %v518
        %1321 = vmatmul.mubr.f32.gmra.mxu0 %v473
        %v1322 = vpop.f32.mrf.mxu0
        %v1323 = vadd.f32 %v1033, %v1322
        %v1324 = vpop.f32.mrf.mxu0
        %1325 = vmatprep.mubr.f32.mxu0 %v519
        %1326 = vmatmul.mubr.f32.gmra.mxu0 %v474
        %v1327 = vpop.f32.mrf.mxu0
        %v1328 = vadd.f32 %v1038, %v1327
        %v1329 = vpop.f32.mrf.mxu0
        %1330 = vmatprep.mubr.f32.mxu0 %v520
        %1331 = vmatmul.mubr.f32.gmra.mxu0 %v475
        %v1332 = vpop.f32.mrf.mxu0
        %v1333 = vadd.f32 %v1043, %v1332
        %v1334 = vpop.f32.mrf.mxu0
        %1335 = vmatprep.mubr.f32.mxu0 %v521
        %1336 = vmatmul.mubr.f32.gmra.mxu0 %v476
        %v1337 = vpop.f32.mrf.mxu0
        %v1338 = vadd.f32 %v1048, %v1337
        %v1339 = vpop.f32.mrf.mxu0
        %1340 = vmatprep.mubr.f32.mxu0 %v522
        %1341 = vmatmul.mubr.f32.gmra.mxu0 %v477
        %v1342 = vpop.f32.mrf.mxu0
        %v1343 = vadd.f32 %v1053, %v1342
        %v1344 = vpop.f32.mrf.mxu0
        %1345 = vmatprep.mubr.f32.mxu0 %v523
        %1346 = vmatmul.mubr.f32.gmra.mxu0 %v478
        %v1347 = vpop.f32.mrf.mxu0
        %v1348 = vadd.f32 %v1058, %v1347
        %v1349 = vpop.f32.mrf.mxu0
        %1350 = vmatprep.mubr.f32.mxu0 %v524
        %1351 = vmatmul.mubr.f32.gmra.mxu0 %v479
        %v1352 = vpop.f32.mrf.mxu0
        %v1353 = vadd.f32 %v1063, %v1352
        %v1354 = vpop.f32.mrf.mxu0
        %1355 = vmatprep.mubr.f32.mxu0 %v525
        %1356 = vmatmul.mubr.f32.gmra.mxu0 %v480
        %v1357 = vpop.f32.mrf.mxu0
        %v1358 = vadd.f32 %v1068, %v1357
        %v1359 = vpop.f32.mrf.mxu0
        %1360 = vmatprep.mubr.f32.mxu0 %v526
        %1361 = vmatmul.mubr.f32.gmra.mxu0 %v481
        %v1362 = vpop.f32.mrf.mxu0
        %v1363 = vadd.f32 %v1073, %v1362
        %v1364 = vpop.f32.mrf.mxu0
        %1365 = vmatprep.mubr.f32.mxu0 %v527
        %1366 = vmatmul.mubr.f32.gmra.mxu0 %v482
        %v1367 = vpop.f32.mrf.mxu0
        %v1368 = vadd.f32 %v1078, %v1367
        %v1369 = vpop.f32.mrf.mxu0
        %1370 = vmatprep.mubr.f32.mxu0 %v528
        %1371 = vmatmul.mubr.f32.gmra.mxu0 %v483
        %v1372 = vpop.f32.mrf.mxu0
        %v1373 = vadd.f32 %v1083, %v1372
        %v1374 = vpop.f32.mrf.mxu0
        %1375 = vmatprep.mubr.f32.mxu0 %v529
        %1376 = vmatmul.mubr.f32.gmra.mxu0 %v484
        %v1377 = vpop.f32.mrf.mxu0
        %v1378 = vadd.f32 %v1088, %v1377
        %v1379 = vpop.f32.mrf.mxu0
        %1380 = vmatprep.mubr.f32.mxu0 %v530
        %1381 = vmatmul.mubr.f32.gmra.mxu0 %v485
        %v1382 = vpop.f32.mrf.mxu0
        %v1383 = vadd.f32 %v1093, %v1382
        %v1384 = vpop.f32.mrf.mxu0
        %1385 = vmatprep.mubr.f32.mxu0 %v531
        %1386 = vmatmul.mubr.f32.gmra.mxu0 %v486
        %v1387 = vpop.f32.mrf.mxu0
        %v1388 = vadd.f32 %v1098, %v1387
        %v1389 = vpop.f32.mrf.mxu0
        %1390 = vmatprep.mubr.f32.mxu0 %v532
        %1391 = vmatmul.mubr.f32.gmra.mxu0 %v487
        %v1392 = vpop.f32.mrf.mxu0
        %v1393 = vadd.f32 %v1103, %v1392
        %v1394 = vpop.f32.mrf.mxu0
        %1395 = vmatprep.mubr.f32.mxu0 %v533
        %1396 = vmatmul.mubr.f32.gmra.mxu0 %v488
        %v1397 = vpop.f32.mrf.mxu0
        %v1398 = vadd.f32 %v1108, %v1397
        %v1399 = vpop.f32.mrf.mxu0
        %1400 = vmatprep.mubr.f32.mxu0 %v534
        %1401 = vmatmul.mubr.f32.gmra.mxu0 %v489
        %v1402 = vpop.f32.mrf.mxu0
        %v1403 = vadd.f32 %v1113, %v1402
        %v1404 = vpop.f32.mrf.mxu0
        %1405 = vdwg.mxu0
        %1406 = vmatprep.subr.mxu0 0.0
        %1407 = vmatpush1.msra.mxu0 %v761
        %1408 = vmatprep.subr.mxu0 0.0
        %1409 = vmatpush1.msra.mxu0 %v760
        %1410 = vmatprep.subr.mxu0 0.0
        %1411 = vmatpush1.msra.mxu0 %v759
        %1412 = vmatprep.subr.mxu0 0.0
        %1413 = vmatpush1.msra.mxu0 %v758
        %1414 = vmatprep.subr.mxu0 0.0
        %1415 = vmatpush1.msra.mxu0 %v757
        %1416 = vmatprep.subr.mxu0 0.0
        %1417 = vmatpush1.msra.mxu0 %v756
        %1418 = vmatprep.subr.mxu0 0.0
        %1419 = vmatpush1.msra.mxu0 %v755
        %1420 = vmatprep.subr.mxu0 0.0
        %1421 = vmatpush1.msra.mxu0 %v754
        %1422 = vmatprep.subr.mxu0 0.0
        %1423 = vmatpush1.msra.mxu0 %v753
        %1424 = vmatprep.subr.mxu0 0.0
        %1425 = vmatpush1.msra.mxu0 %v752
        %1426 = vmatprep.subr.mxu0 0.0
        %1427 = vmatpush1.msra.mxu0 %v751
        %1428 = vmatprep.subr.mxu0 0.0
        %1429 = vmatpush1.msra.mxu0 %v750
        %1430 = vmatprep.subr.mxu0 0.0
        %1431 = vmatpush1.msra.mxu0 %v749
        %1432 = vmatprep.subr.mxu0 0.0
        %1433 = vmatpush1.msra.mxu0 %v748
        %1434 = vmatprep.subr.mxu0 0.0
        %1435 = vmatpush1.msra.mxu0 %v747
        %1436 = vmatprep.subr.mxu0 0.0
        %1437 = vmatpush1.msra.mxu0 %v746
        %1438 = vmatprep.subr.mxu0 0.0
        %1439 = vmatpush2.msra.mxu0 %v777
        %1440 = vmatprep.subr.mxu0 0.0
        %1441 = vmatpush2.msra.mxu0 %v776
        %1442 = vmatprep.subr.mxu0 0.0
        %1443 = vmatpush2.msra.mxu0 %v775
        %1444 = vmatprep.subr.mxu0 0.0
        %1445 = vmatpush2.msra.mxu0 %v774
        %1446 = vmatprep.subr.mxu0 0.0
        %1447 = vmatpush2.msra.mxu0 %v773
        %1448 = vmatprep.subr.mxu0 0.0
        %1449 = vmatpush2.msra.mxu0 %v772
        %1450 = vmatprep.subr.mxu0 0.0
        %1451 = vmatpush2.msra.mxu0 %v771
        %1452 = vmatprep.subr.mxu0 0.0
        %1453 = vmatpush2.msra.mxu0 %v770
        %1454 = vmatprep.subr.mxu0 0.0
        %1455 = vmatpush2.msra.mxu0 %v769
        %1456 = vmatprep.subr.mxu0 0.0
        %1457 = vmatpush2.msra.mxu0 %v768
        %1458 = vmatprep.subr.mxu0 0.0
        %1459 = vmatpush2.msra.mxu0 %v767
        %1460 = vmatprep.subr.mxu0 0.0
        %1461 = vmatpush2.msra.mxu0 %v766
        %1462 = vmatprep.subr.mxu0 0.0
        %1463 = vmatpush2.msra.mxu0 %v765
        %1464 = vmatprep.subr.mxu0 0.0
        %1465 = vmatpush2.msra.mxu0 %v764
        %1466 = vmatprep.subr.mxu0 0.0
        %1467 = vmatpush2.msra.mxu0 %v763
        %1468 = vmatprep.subr.mxu0 0.0
        %1469 = vmatpush2.msra.mxu0 %v762
        %1470 = vmatprep.mubr.f32.mxu0 %v580
        %1471 = vmatmul.mubr.f32.gmra.mxu0 %v535
        %v1472 = vpop.f32.mrf.mxu0
        %v1473 = vadd.f32 %v1183, %v1472
        %v1474 = vpop.f32.mrf.mxu0
        %1475 = vmatprep.mubr.f32.mxu0 %v581
        %1476 = vmatmul.mubr.f32.gmra.mxu0 %v536
        %v1477 = vpop.f32.mrf.mxu0
        %v1478 = vadd.f32 %v1188, %v1477
        %v1479 = vpop.f32.mrf.mxu0
        %1480 = vmatprep.mubr.f32.mxu0 %v582
        %1481 = vmatmul.mubr.f32.gmra.mxu0 %v537
        %v1482 = vpop.f32.mrf.mxu0
        %v1483 = vadd.f32 %v1193, %v1482
        %v1484 = vpop.f32.mrf.mxu0
        %1485 = vmatprep.mubr.f32.mxu0 %v583
        %1486 = vmatmul.mubr.f32.gmra.mxu0 %v538
        %v1487 = vpop.f32.mrf.mxu0
        %v1488 = vadd.f32 %v1198, %v1487
        %v1489 = vpop.f32.mrf.mxu0
        %1490 = vmatprep.mubr.f32.mxu0 %v584
        %1491 = vmatmul.mubr.f32.gmra.mxu0 %v539
        %v1492 = vpop.f32.mrf.mxu0
        %v1493 = vadd.f32 %v1203, %v1492
        %v1494 = vpop.f32.mrf.mxu0
        %1495 = vmatprep.mubr.f32.mxu0 %v585
        %1496 = vmatmul.mubr.f32.gmra.mxu0 %v540
        %v1497 = vpop.f32.mrf.mxu0
        %v1498 = vadd.f32 %v1208, %v1497
        %v1499 = vpop.f32.mrf.mxu0
        %1500 = vmatprep.mubr.f32.mxu0 %v586
        %1501 = vmatmul.mubr.f32.gmra.mxu0 %v541
        %v1502 = vpop.f32.mrf.mxu0
        %v1503 = vadd.f32 %v1213, %v1502
        %v1504 = vpop.f32.mrf.mxu0
        %1505 = vmatprep.mubr.f32.mxu0 %v587
        %1506 = vmatmul.mubr.f32.gmra.mxu0 %v542
        %v1507 = vpop.f32.mrf.mxu0
        %v1508 = vadd.f32 %v1218, %v1507
        %v1509 = vpop.f32.mrf.mxu0
        %1510 = vmatprep.mubr.f32.mxu0 %v588
        %1511 = vmatmul.mubr.f32.gmra.mxu0 %v543
        %v1512 = vpop.f32.mrf.mxu0
        %v1513 = vadd.f32 %v1223, %v1512
        %v1514 = vpop.f32.mrf.mxu0
        %1515 = vmatprep.mubr.f32.mxu0 %v589
        %1516 = vmatmul.mubr.f32.gmra.mxu0 %v544
        %v1517 = vpop.f32.mrf.mxu0
        %v1518 = vadd.f32 %v1228, %v1517
        %v1519 = vpop.f32.mrf.mxu0
        %1520 = vmatprep.mubr.f32.mxu0 %v590
        %1521 = vmatmul.mubr.f32.gmra.mxu0 %v545
        %v1522 = vpop.f32.mrf.mxu0
        %v1523 = vadd.f32 %v1233, %v1522
        %v1524 = vpop.f32.mrf.mxu0
        %1525 = vmatprep.mubr.f32.mxu0 %v591
        %1526 = vmatmul.mubr.f32.gmra.mxu0 %v546
        %v1527 = vpop.f32.mrf.mxu0
        %v1528 = vadd.f32 %v1238, %v1527
        %v1529 = vpop.f32.mrf.mxu0
        %1530 = vmatprep.mubr.f32.mxu0 %v592
        %1531 = vmatmul.mubr.f32.gmra.mxu0 %v547
        %v1532 = vpop.f32.mrf.mxu0
        %v1533 = vadd.f32 %v1243, %v1532
        %v1534 = vpop.f32.mrf.mxu0
        %1535 = vmatprep.mubr.f32.mxu0 %v593
        %1536 = vmatmul.mubr.f32.gmra.mxu0 %v548
        %v1537 = vpop.f32.mrf.mxu0
        %v1538 = vadd.f32 %v1248, %v1537
        %v1539 = vpop.f32.mrf.mxu0
        %1540 = vmatprep.mubr.f32.mxu0 %v594
        %1541 = vmatmul.mubr.f32.gmra.mxu0 %v549
        %v1542 = vpop.f32.mrf.mxu0
        %v1543 = vadd.f32 %v1253, %v1542
        %v1544 = vpop.f32.mrf.mxu0
        %1545 = vmatprep.mubr.f32.mxu0 %v595
        %1546 = vmatmul.mubr.f32.gmra.mxu0 %v550
        %v1547 = vpop.f32.mrf.mxu0
        %v1548 = vadd.f32 %v1258, %v1547
        %v1549 = vpop.f32.mrf.mxu0
        %1550 = vmatprep.mubr.f32.mxu0 %v596
        %1551 = vmatmul.mubr.f32.gmra.mxu0 %v551
        %v1552 = vpop.f32.mrf.mxu0
        %v1553 = vadd.f32 %v1263, %v1552
        %v1554 = vpop.f32.mrf.mxu0
        %1555 = vmatprep.mubr.f32.mxu0 %v597
        %1556 = vmatmul.mubr.f32.gmra.mxu0 %v552
        %v1557 = vpop.f32.mrf.mxu0
        %v1558 = vadd.f32 %v1268, %v1557
        %v1559 = vpop.f32.mrf.mxu0
        %1560 = vmatprep.mubr.f32.mxu0 %v598
        %1561 = vmatmul.mubr.f32.gmra.mxu0 %v553
        %v1562 = vpop.f32.mrf.mxu0
        %v1563 = vadd.f32 %v1273, %v1562
        %v1564 = vpop.f32.mrf.mxu0
        %1565 = vmatprep.mubr.f32.mxu0 %v599
        %1566 = vmatmul.mubr.f32.gmra.mxu0 %v554
        %v1567 = vpop.f32.mrf.mxu0
        %v1568 = vadd.f32 %v1278, %v1567
        %v1569 = vpop.f32.mrf.mxu0
        %1570 = vmatprep.mubr.f32.mxu0 %v600
        %1571 = vmatmul.mubr.f32.gmra.mxu0 %v555
        %v1572 = vpop.f32.mrf.mxu0
        %v1573 = vadd.f32 %v1283, %v1572
        %v1574 = vpop.f32.mrf.mxu0
        %1575 = vmatprep.mubr.f32.mxu0 %v601
        %1576 = vmatmul.mubr.f32.gmra.mxu0 %v556
        %v1577 = vpop.f32.mrf.mxu0
        %v1578 = vadd.f32 %v1288, %v1577
        %v1579 = vpop.f32.mrf.mxu0
        %1580 = vmatprep.mubr.f32.mxu0 %v602
        %1581 = vmatmul.mubr.f32.gmra.mxu0 %v557
        %v1582 = vpop.f32.mrf.mxu0
        %v1583 = vadd.f32 %v1293, %v1582
        %v1584 = vpop.f32.mrf.mxu0
        %1585 = vmatprep.mubr.f32.mxu0 %v603
        %1586 = vmatmul.mubr.f32.gmra.mxu0 %v558
        %v1587 = vpop.f32.mrf.mxu0
        %v1588 = vadd.f32 %v1298, %v1587
        %v1589 = vpop.f32.mrf.mxu0
        %1590 = vmatprep.mubr.f32.mxu0 %v604
        %1591 = vmatmul.mubr.f32.gmra.mxu0 %v559
        %v1592 = vpop.f32.mrf.mxu0
        %v1593 = vadd.f32 %v1303, %v1592
        %v1594 = vpop.f32.mrf.mxu0
        %1595 = vmatprep.mubr.f32.mxu0 %v605
        %1596 = vmatmul.mubr.f32.gmra.mxu0 %v560
        %v1597 = vpop.f32.mrf.mxu0
        %v1598 = vadd.f32 %v1308, %v1597
        %v1599 = vpop.f32.mrf.mxu0
        %1600 = vmatprep.mubr.f32.mxu0 %v606
        %1601 = vmatmul.mubr.f32.gmra.mxu0 %v561
        %v1602 = vpop.f32.mrf.mxu0
        %v1603 = vadd.f32 %v1313, %v1602
        %v1604 = vpop.f32.mrf.mxu0
        %1605 = vmatprep.mubr.f32.mxu0 %v607
        %1606 = vmatmul.mubr.f32.gmra.mxu0 %v562
        %v1607 = vpop.f32.mrf.mxu0
        %v1608 = vadd.f32 %v1318, %v1607
        %v1609 = vpop.f32.mrf.mxu0
        %1610 = vmatprep.mubr.f32.mxu0 %v608
        %1611 = vmatmul.mubr.f32.gmra.mxu0 %v563
        %v1612 = vpop.f32.mrf.mxu0
        %v1613 = vadd.f32 %v1323, %v1612
        %v1614 = vpop.f32.mrf.mxu0
        %1615 = vmatprep.mubr.f32.mxu0 %v609
        %1616 = vmatmul.mubr.f32.gmra.mxu0 %v564
        %v1617 = vpop.f32.mrf.mxu0
        %v1618 = vadd.f32 %v1328, %v1617
        %v1619 = vpop.f32.mrf.mxu0
        %1620 = vmatprep.mubr.f32.mxu0 %v610
        %1621 = vmatmul.mubr.f32.gmra.mxu0 %v565
        %v1622 = vpop.f32.mrf.mxu0
        %v1623 = vadd.f32 %v1333, %v1622
        %v1624 = vpop.f32.mrf.mxu0
        %1625 = vmatprep.mubr.f32.mxu0 %v611
        %1626 = vmatmul.mubr.f32.gmra.mxu0 %v566
        %v1627 = vpop.f32.mrf.mxu0
        %v1628 = vadd.f32 %v1338, %v1627
        %v1629 = vpop.f32.mrf.mxu0
        %1630 = vmatprep.mubr.f32.mxu0 %v612
        %1631 = vmatmul.mubr.f32.gmra.mxu0 %v567
        %v1632 = vpop.f32.mrf.mxu0
        %v1633 = vadd.f32 %v1343, %v1632
        %v1634 = vpop.f32.mrf.mxu0
        %1635 = vmatprep.mubr.f32.mxu0 %v613
        %1636 = vmatmul.mubr.f32.gmra.mxu0 %v568
        %v1637 = vpop.f32.mrf.mxu0
        %v1638 = vadd.f32 %v1348, %v1637
        %v1639 = vpop.f32.mrf.mxu0
        %1640 = vmatprep.mubr.f32.mxu0 %v614
        %1641 = vmatmul.mubr.f32.gmra.mxu0 %v569
        %v1642 = vpop.f32.mrf.mxu0
        %v1643 = vadd.f32 %v1353, %v1642
        %v1644 = vpop.f32.mrf.mxu0
        %1645 = vmatprep.mubr.f32.mxu0 %v615
        %1646 = vmatmul.mubr.f32.gmra.mxu0 %v570
        %v1647 = vpop.f32.mrf.mxu0
        %v1648 = vadd.f32 %v1358, %v1647
        %v1649 = vpop.f32.mrf.mxu0
        %1650 = vmatprep.mubr.f32.mxu0 %v616
        %1651 = vmatmul.mubr.f32.gmra.mxu0 %v571
        %v1652 = vpop.f32.mrf.mxu0
        %v1653 = vadd.f32 %v1363, %v1652
        %v1654 = vpop.f32.mrf.mxu0
        %1655 = vmatprep.mubr.f32.mxu0 %v617
        %1656 = vmatmul.mubr.f32.gmra.mxu0 %v572
        %v1657 = vpop.f32.mrf.mxu0
        %v1658 = vadd.f32 %v1368, %v1657
        %v1659 = vpop.f32.mrf.mxu0
        %1660 = vmatprep.mubr.f32.mxu0 %v618
        %1661 = vmatmul.mubr.f32.gmra.mxu0 %v573
        %v1662 = vpop.f32.mrf.mxu0
        %v1663 = vadd.f32 %v1373, %v1662
        %v1664 = vpop.f32.mrf.mxu0
        %1665 = vmatprep.mubr.f32.mxu0 %v619
        %1666 = vmatmul.mubr.f32.gmra.mxu0 %v574
        %v1667 = vpop.f32.mrf.mxu0
        %v1668 = vadd.f32 %v1378, %v1667
        %v1669 = vpop.f32.mrf.mxu0
        %1670 = vmatprep.mubr.f32.mxu0 %v620
        %1671 = vmatmul.mubr.f32.gmra.mxu0 %v575
        %v1672 = vpop.f32.mrf.mxu0
        %v1673 = vadd.f32 %v1383, %v1672
        %v1674 = vpop.f32.mrf.mxu0
        %1675 = vmatprep.mubr.f32.mxu0 %v621
        %1676 = vmatmul.mubr.f32.gmra.mxu0 %v576
        %v1677 = vpop.f32.mrf.mxu0
        %v1678 = vadd.f32 %v1388, %v1677
        %v1679 = vpop.f32.mrf.mxu0
        %1680 = vmatprep.mubr.f32.mxu0 %v622
        %1681 = vmatmul.mubr.f32.gmra.mxu0 %v577
        %v1682 = vpop.f32.mrf.mxu0
        %v1683 = vadd.f32 %v1393, %v1682
        %v1684 = vpop.f32.mrf.mxu0
        %1685 = vmatprep.mubr.f32.mxu0 %v623
        %1686 = vmatmul.mubr.f32.gmra.mxu0 %v578
        %v1687 = vpop.f32.mrf.mxu0
        %v1688 = vadd.f32 %v1398, %v1687
        %v1689 = vpop.f32.mrf.mxu0
        %1690 = vmatprep.mubr.f32.mxu0 %v624
        %1691 = vmatmul.mubr.f32.gmra.mxu0 %v579
        %v1692 = vpop.f32.mrf.mxu0
        %v1693 = vadd.f32 %v1403, %v1692
        %v1694 = vpop.f32.mrf.mxu0
        %1695 = vdwg.mxu0
        %1696 = vmatprep.subr.mxu0 0.0
        %1697 = vmatpush1.msra.mxu0 %v793
        %1698 = vmatprep.subr.mxu0 0.0
        %1699 = vmatpush1.msra.mxu0 %v792
        %1700 = vmatprep.subr.mxu0 0.0
        %1701 = vmatpush1.msra.mxu0 %v791
        %1702 = vmatprep.subr.mxu0 0.0
        %1703 = vmatpush1.msra.mxu0 %v790
        %1704 = vmatprep.subr.mxu0 0.0
        %1705 = vmatpush1.msra.mxu0 %v789
        %1706 = vmatprep.subr.mxu0 0.0
        %1707 = vmatpush1.msra.mxu0 %v788
        %1708 = vmatprep.subr.mxu0 0.0
        %1709 = vmatpush1.msra.mxu0 %v787
        %1710 = vmatprep.subr.mxu0 0.0
        %1711 = vmatpush1.msra.mxu0 %v786
        %1712 = vmatprep.subr.mxu0 0.0
        %1713 = vmatpush1.msra.mxu0 %v785
        %1714 = vmatprep.subr.mxu0 0.0
        %1715 = vmatpush1.msra.mxu0 %v784
        %1716 = vmatprep.subr.mxu0 0.0
        %1717 = vmatpush1.msra.mxu0 %v783
        %1718 = vmatprep.subr.mxu0 0.0
        %1719 = vmatpush1.msra.mxu0 %v782
        %1720 = vmatprep.subr.mxu0 0.0
        %1721 = vmatpush1.msra.mxu0 %v781
        %1722 = vmatprep.subr.mxu0 0.0
        %1723 = vmatpush1.msra.mxu0 %v780
        %1724 = vmatprep.subr.mxu0 0.0
        %1725 = vmatpush1.msra.mxu0 %v779
        %1726 = vmatprep.subr.mxu0 0.0
        %1727 = vmatpush1.msra.mxu0 %v778
        %1728 = vmatprep.subr.mxu0 0.0
        %1729 = vmatpush2.msra.mxu0 %v809
        %1730 = vmatprep.subr.mxu0 0.0
        %1731 = vmatpush2.msra.mxu0 %v808
        %1732 = vmatprep.subr.mxu0 0.0
        %1733 = vmatpush2.msra.mxu0 %v807
        %1734 = vmatprep.subr.mxu0 0.0
        %1735 = vmatpush2.msra.mxu0 %v806
        %1736 = vmatprep.subr.mxu0 0.0
        %1737 = vmatpush2.msra.mxu0 %v805
        %1738 = vmatprep.subr.mxu0 0.0
        %1739 = vmatpush2.msra.mxu0 %v804
        %1740 = vmatprep.subr.mxu0 0.0
        %1741 = vmatpush2.msra.mxu0 %v803
        %1742 = vmatprep.subr.mxu0 0.0
        %1743 = vmatpush2.msra.mxu0 %v802
        %1744 = vmatprep.subr.mxu0 0.0
        %1745 = vmatpush2.msra.mxu0 %v801
        %1746 = vmatprep.subr.mxu0 0.0
        %1747 = vmatpush2.msra.mxu0 %v800
        %1748 = vmatprep.subr.mxu0 0.0
        %1749 = vmatpush2.msra.mxu0 %v799
        %1750 = vmatprep.subr.mxu0 0.0
        %1751 = vmatpush2.msra.mxu0 %v798
        %1752 = vmatprep.subr.mxu0 0.0
        %1753 = vmatpush2.msra.mxu0 %v797
        %1754 = vmatprep.subr.mxu0 0.0
        %1755 = vmatpush2.msra.mxu0 %v796
        %1756 = vmatprep.subr.mxu0 0.0
        %1757 = vmatpush2.msra.mxu0 %v795
        %1758 = vmatprep.subr.mxu0 0.0
        %1759 = vmatpush2.msra.mxu0 %v794
        %1760 = vmatprep.mubr.f32.mxu0 %v405
        %1761 = vmatmul.mubr.f32.gmra.mxu0 %v360
        %v1762 = vpop.f32.mrf.mxu0
        %v1763 = vadd.f32 %v1473, %v1762
        %v1764 = vpop.f32.mrf.mxu0
        %1765 = vmatprep.mubr.f32.mxu0 %v406
        %1766 = vmatmul.mubr.f32.gmra.mxu0 %v361
        %v1767 = vpop.f32.mrf.mxu0
        %v1768 = vadd.f32 %v1478, %v1767
        %v1769 = vpop.f32.mrf.mxu0
        %1770 = vmatprep.mubr.f32.mxu0 %v407
        %1771 = vmatmul.mubr.f32.gmra.mxu0 %v362
        %v1772 = vpop.f32.mrf.mxu0
        %v1773 = vadd.f32 %v1483, %v1772
        %v1774 = vpop.f32.mrf.mxu0
        %1775 = vmatprep.mubr.f32.mxu0 %v408
        %1776 = vmatmul.mubr.f32.gmra.mxu0 %v363
        %v1777 = vpop.f32.mrf.mxu0
        %v1778 = vadd.f32 %v1488, %v1777
        %v1779 = vpop.f32.mrf.mxu0
        %1780 = vmatprep.mubr.f32.mxu0 %v409
        %1781 = vmatmul.mubr.f32.gmra.mxu0 %v364
        %v1782 = vpop.f32.mrf.mxu0
        %v1783 = vadd.f32 %v1493, %v1782
        %v1784 = vpop.f32.mrf.mxu0
        %1785 = vmatprep.mubr.f32.mxu0 %v410
        %1786 = vmatmul.mubr.f32.gmra.mxu0 %v365
        %v1787 = vpop.f32.mrf.mxu0
        %v1788 = vadd.f32 %v1498, %v1787
        %v1789 = vpop.f32.mrf.mxu0
        %1790 = vmatprep.mubr.f32.mxu0 %v411
        %1791 = vmatmul.mubr.f32.gmra.mxu0 %v366
        %v1792 = vpop.f32.mrf.mxu0
        %v1793 = vadd.f32 %v1503, %v1792
        %v1794 = vpop.f32.mrf.mxu0
        %1795 = vmatprep.mubr.f32.mxu0 %v412
        %1796 = vmatmul.mubr.f32.gmra.mxu0 %v367
        %v1797 = vpop.f32.mrf.mxu0
        %v1798 = vadd.f32 %v1508, %v1797
        %v1799 = vpop.f32.mrf.mxu0
        %1800 = vmatprep.mubr.f32.mxu0 %v413
        %1801 = vmatmul.mubr.f32.gmra.mxu0 %v368
        %v1802 = vpop.f32.mrf.mxu0
        %v1803 = vadd.f32 %v1513, %v1802
        %v1804 = vpop.f32.mrf.mxu0
        %1805 = vmatprep.mubr.f32.mxu0 %v414
        %1806 = vmatmul.mubr.f32.gmra.mxu0 %v369
        %v1807 = vpop.f32.mrf.mxu0
        %v1808 = vadd.f32 %v1518, %v1807
        %v1809 = vpop.f32.mrf.mxu0
        %1810 = vmatprep.mubr.f32.mxu0 %v415
        %1811 = vmatmul.mubr.f32.gmra.mxu0 %v370
        %v1812 = vpop.f32.mrf.mxu0
        %v1813 = vadd.f32 %v1523, %v1812
        %v1814 = vpop.f32.mrf.mxu0
        %1815 = vmatprep.mubr.f32.mxu0 %v416
        %1816 = vmatmul.mubr.f32.gmra.mxu0 %v371
        %v1817 = vpop.f32.mrf.mxu0
        %v1818 = vadd.f32 %v1528, %v1817
        %v1819 = vpop.f32.mrf.mxu0
        %1820 = vmatprep.mubr.f32.mxu0 %v417
        %1821 = vmatmul.mubr.f32.gmra.mxu0 %v372
        %v1822 = vpop.f32.mrf.mxu0
        %v1823 = vadd.f32 %v1533, %v1822
        %v1824 = vpop.f32.mrf.mxu0
        %1825 = vmatprep.mubr.f32.mxu0 %v418
        %1826 = vmatmul.mubr.f32.gmra.mxu0 %v373
        %v1827 = vpop.f32.mrf.mxu0
        %v1828 = vadd.f32 %v1538, %v1827
        %v1829 = vpop.f32.mrf.mxu0
        %1830 = vmatprep.mubr.f32.mxu0 %v419
        %1831 = vmatmul.mubr.f32.gmra.mxu0 %v374
        %v1832 = vpop.f32.mrf.mxu0
        %v1833 = vadd.f32 %v1543, %v1832
        %v1834 = vpop.f32.mrf.mxu0
        %1835 = vmatprep.mubr.f32.mxu0 %v420
        %1836 = vmatmul.mubr.f32.gmra.mxu0 %v375
        %v1837 = vpop.f32.mrf.mxu0
        %v1838 = vadd.f32 %v1548, %v1837
        %v1839 = vpop.f32.mrf.mxu0
        %1840 = vmatprep.mubr.f32.mxu0 %v421
        %1841 = vmatmul.mubr.f32.gmra.mxu0 %v376
        %v1842 = vpop.f32.mrf.mxu0
        %v1843 = vadd.f32 %v1553, %v1842
        %v1844 = vpop.f32.mrf.mxu0
        %1845 = vmatprep.mubr.f32.mxu0 %v422
        %1846 = vmatmul.mubr.f32.gmra.mxu0 %v377
        %v1847 = vpop.f32.mrf.mxu0
        %v1848 = vadd.f32 %v1558, %v1847
        %v1849 = vpop.f32.mrf.mxu0
        %1850 = vmatprep.mubr.f32.mxu0 %v423
        %1851 = vmatmul.mubr.f32.gmra.mxu0 %v378
        %v1852 = vpop.f32.mrf.mxu0
        %v1853 = vadd.f32 %v1563, %v1852
        %v1854 = vpop.f32.mrf.mxu0
        %1855 = vmatprep.mubr.f32.mxu0 %v424
        %1856 = vmatmul.mubr.f32.gmra.mxu0 %v379
        %v1857 = vpop.f32.mrf.mxu0
        %v1858 = vadd.f32 %v1568, %v1857
        %v1859 = vpop.f32.mrf.mxu0
        %1860 = vmatprep.mubr.f32.mxu0 %v425
        %1861 = vmatmul.mubr.f32.gmra.mxu0 %v380
        %v1862 = vpop.f32.mrf.mxu0
        %v1863 = vadd.f32 %v1573, %v1862
        %v1864 = vpop.f32.mrf.mxu0
        %1865 = vmatprep.mubr.f32.mxu0 %v426
        %1866 = vmatmul.mubr.f32.gmra.mxu0 %v381
        %v1867 = vpop.f32.mrf.mxu0
        %v1868 = vadd.f32 %v1578, %v1867
        %v1869 = vpop.f32.mrf.mxu0
        %1870 = vmatprep.mubr.f32.mxu0 %v427
        %1871 = vmatmul.mubr.f32.gmra.mxu0 %v382
        %v1872 = vpop.f32.mrf.mxu0
        %v1873 = vadd.f32 %v1583, %v1872
        %v1874 = vpop.f32.mrf.mxu0
        %1875 = vmatprep.mubr.f32.mxu0 %v428
        %1876 = vmatmul.mubr.f32.gmra.mxu0 %v383
        %v1877 = vpop.f32.mrf.mxu0
        %v1878 = vadd.f32 %v1588, %v1877
        %v1879 = vpop.f32.mrf.mxu0
        %1880 = vmatprep.mubr.f32.mxu0 %v429
        %1881 = vmatmul.mubr.f32.gmra.mxu0 %v384
        %v1882 = vpop.f32.mrf.mxu0
        %v1883 = vadd.f32 %v1593, %v1882
        %v1884 = vpop.f32.mrf.mxu0
        %1885 = vmatprep.mubr.f32.mxu0 %v430
        %1886 = vmatmul.mubr.f32.gmra.mxu0 %v385
        %v1887 = vpop.f32.mrf.mxu0
        %v1888 = vadd.f32 %v1598, %v1887
        %v1889 = vpop.f32.mrf.mxu0
        %1890 = vmatprep.mubr.f32.mxu0 %v431
        %1891 = vmatmul.mubr.f32.gmra.mxu0 %v386
        %v1892 = vpop.f32.mrf.mxu0
        %v1893 = vadd.f32 %v1603, %v1892
        %v1894 = vpop.f32.mrf.mxu0
        %1895 = vmatprep.mubr.f32.mxu0 %v432
        %1896 = vmatmul.mubr.f32.gmra.mxu0 %v387
        %v1897 = vpop.f32.mrf.mxu0
        %v1898 = vadd.f32 %v1608, %v1897
        %v1899 = vpop.f32.mrf.mxu0
        %1900 = vmatprep.mubr.f32.mxu0 %v433
        %1901 = vmatmul.mubr.f32.gmra.mxu0 %v388
        %v1902 = vpop.f32.mrf.mxu0
        %v1903 = vadd.f32 %v1613, %v1902
        %v1904 = vpop.f32.mrf.mxu0
        %1905 = vmatprep.mubr.f32.mxu0 %v434
        %1906 = vmatmul.mubr.f32.gmra.mxu0 %v389
        %v1907 = vpop.f32.mrf.mxu0
        %v1908 = vadd.f32 %v1618, %v1907
        %v1909 = vpop.f32.mrf.mxu0
        %1910 = vmatprep.mubr.f32.mxu0 %v435
        %1911 = vmatmul.mubr.f32.gmra.mxu0 %v390
        %v1912 = vpop.f32.mrf.mxu0
        %v1913 = vadd.f32 %v1623, %v1912
        %v1914 = vpop.f32.mrf.mxu0
        %1915 = vmatprep.mubr.f32.mxu0 %v436
        %1916 = vmatmul.mubr.f32.gmra.mxu0 %v391
        %v1917 = vpop.f32.mrf.mxu0
        %v1918 = vadd.f32 %v1628, %v1917
        %v1919 = vpop.f32.mrf.mxu0
        %1920 = vmatprep.mubr.f32.mxu0 %v437
        %1921 = vmatmul.mubr.f32.gmra.mxu0 %v392
        %v1922 = vpop.f32.mrf.mxu0
        %v1923 = vadd.f32 %v1633, %v1922
        %v1924 = vpop.f32.mrf.mxu0
        %1925 = vmatprep.mubr.f32.mxu0 %v438
        %1926 = vmatmul.mubr.f32.gmra.mxu0 %v393
        %v1927 = vpop.f32.mrf.mxu0
        %v1928 = vadd.f32 %v1638, %v1927
        %v1929 = vpop.f32.mrf.mxu0
        %1930 = vmatprep.mubr.f32.mxu0 %v439
        %1931 = vmatmul.mubr.f32.gmra.mxu0 %v394
        %v1932 = vpop.f32.mrf.mxu0
        %v1933 = vadd.f32 %v1643, %v1932
        %v1934 = vpop.f32.mrf.mxu0
        %1935 = vmatprep.mubr.f32.mxu0 %v440
        %1936 = vmatmul.mubr.f32.gmra.mxu0 %v395
        %v1937 = vpop.f32.mrf.mxu0
        %v1938 = vadd.f32 %v1648, %v1937
        %v1939 = vpop.f32.mrf.mxu0
        %1940 = vmatprep.mubr.f32.mxu0 %v441
        %1941 = vmatmul.mubr.f32.gmra.mxu0 %v396
        %v1942 = vpop.f32.mrf.mxu0
        %v1943 = vadd.f32 %v1653, %v1942
        %v1944 = vpop.f32.mrf.mxu0
        %1945 = vmatprep.mubr.f32.mxu0 %v442
        %1946 = vmatmul.mubr.f32.gmra.mxu0 %v397
        %v1947 = vpop.f32.mrf.mxu0
        %v1948 = vadd.f32 %v1658, %v1947
        %v1949 = vpop.f32.mrf.mxu0
        %1950 = vmatprep.mubr.f32.mxu0 %v443
        %1951 = vmatmul.mubr.f32.gmra.mxu0 %v398
        %v1952 = vpop.f32.mrf.mxu0
        %v1953 = vadd.f32 %v1663, %v1952
        %v1954 = vpop.f32.mrf.mxu0
        %1955 = vmatprep.mubr.f32.mxu0 %v631
        %1956 = vmatmul.mubr.f32.gmra.mxu0 %v625
        %v1957 = vpop.f32.mrf.mxu0
        %v1958 = vadd.f32 %v1668, %v1957
        %v1959 = vpop.f32.mrf.mxu0
        %1960 = vmatprep.mubr.f32.mxu0 %v632
        %1961 = vmatmul.mubr.f32.gmra.mxu0 %v626
        %v1962 = vpop.f32.mrf.mxu0
        %v1963 = vadd.f32 %v1673, %v1962
        %v1964 = vpop.f32.mrf.mxu0
        %1965 = vmatprep.mubr.f32.mxu0 %v633
        %1966 = vmatmul.mubr.f32.gmra.mxu0 %v627
        %v1967 = vpop.f32.mrf.mxu0
        %v1968 = vadd.f32 %v1678, %v1967
        %v1969 = vpop.f32.mrf.mxu0
        %1970 = vmatprep.mubr.f32.mxu0 %v634
        %1971 = vmatmul.mubr.f32.gmra.mxu0 %v628
        %v1972 = vpop.f32.mrf.mxu0
        %v1973 = vadd.f32 %v1683, %v1972
        %v1974 = vpop.f32.mrf.mxu0
        %1975 = vmatprep.mubr.f32.mxu0 %v635
        %1976 = vmatmul.mubr.f32.gmra.mxu0 %v629
        %v1977 = vpop.f32.mrf.mxu0
        %v1978 = vadd.f32 %v1688, %v1977
        %v1979 = vpop.f32.mrf.mxu0
        %1980 = vmatprep.mubr.f32.mxu0 %v636
        %1981 = vmatmul.mubr.f32.gmra.mxu0 %v630
        %v1982 = vpop.f32.mrf.mxu0
        %v1983 = vadd.f32 %v1693, %v1982
        %v1984 = vpop.f32.mrf.mxu0
        %1985 = vdwg.mxu0
        %1986 = vmatprep.subr.mxu0 0.0
        %1987 = vmatpush1.msra.mxu0 %v825
        %1988 = vmatprep.subr.mxu0 0.0
        %1989 = vmatpush1.msra.mxu0 %v824
        %1990 = vmatprep.subr.mxu0 0.0
        %1991 = vmatpush1.msra.mxu0 %v823
        %1992 = vmatprep.subr.mxu0 0.0
        %1993 = vmatpush1.msra.mxu0 %v822
        %1994 = vmatprep.subr.mxu0 0.0
        %1995 = vmatpush1.msra.mxu0 %v821
        %1996 = vmatprep.subr.mxu0 0.0
        %1997 = vmatpush1.msra.mxu0 %v820
        %1998 = vmatprep.subr.mxu0 0.0
        %1999 = vmatpush1.msra.mxu0 %v819
        %2000 = vmatprep.subr.mxu0 0.0
        %2001 = vmatpush1.msra.mxu0 %v818
        %2002 = vmatprep.subr.mxu0 0.0
        %2003 = vmatpush1.msra.mxu0 %v817
        %2004 = vmatprep.subr.mxu0 0.0
        %2005 = vmatpush1.msra.mxu0 %v816
        %2006 = vmatprep.subr.mxu0 0.0
        %2007 = vmatpush1.msra.mxu0 %v815
        %2008 = vmatprep.subr.mxu0 0.0
        %2009 = vmatpush1.msra.mxu0 %v814
        %2010 = vmatprep.subr.mxu0 0.0
        %2011 = vmatpush1.msra.mxu0 %v813
        %2012 = vmatprep.subr.mxu0 0.0
        %2013 = vmatpush1.msra.mxu0 %v812
        %2014 = vmatprep.subr.mxu0 0.0
        %2015 = vmatpush1.msra.mxu0 %v811
        %2016 = vmatprep.subr.mxu0 0.0
        %2017 = vmatpush1.msra.mxu0 %v810
        %2018 = vmatprep.subr.mxu0 0.0
        %2019 = vmatpush2.msra.mxu0 0.0
        %2020 = vmatprep.subr.mxu0 0.0
        %2021 = vmatpush2.msra.mxu0 0.0
        %2022 = vmatprep.subr.mxu0 0.0
        %2023 = vmatpush2.msra.mxu0 0.0
        %2024 = vmatprep.subr.mxu0 0.0
        %2025 = vmatpush2.msra.mxu0 0.0
        %2026 = vmatprep.subr.mxu0 0.0
        %2027 = vmatpush2.msra.mxu0 0.0
        %2028 = vmatprep.subr.mxu0 0.0
        %2029 = vmatpush2.msra.mxu0 0.0
        %2030 = vmatprep.subr.mxu0 0.0
        %2031 = vmatpush2.msra.mxu0 0.0
        %2032 = vmatprep.subr.mxu0 0.0
        %2033 = vmatpush2.msra.mxu0 0.0
        %2034 = vmatprep.subr.mxu0 0.0
        %2035 = vmatpush2.msra.mxu0 0.0
        %2036 = vmatprep.subr.mxu0 0.0
        %2037 = vmatpush2.msra.mxu0 0.0
        %2038 = vmatprep.subr.mxu0 0.0
        %2039 = vmatpush2.msra.mxu0 0.0
        %2040 = vmatprep.subr.mxu0 0.0
        %2041 = vmatpush2.msra.mxu0 0.0
        %2042 = vmatprep.subr.mxu0 0.0
        %2043 = vmatpush2.msra.mxu0 0.0
        %2044 = vmatprep.subr.mxu0 0.0
        %2045 = vmatpush2.msra.mxu0 0.0
        %2046 = vmatprep.subr.mxu0 0.0
        %2047 = vmatpush2.msra.mxu0 0.0
        %2048 = vmatprep.subr.mxu0 0.0
        %2049 = vmatpush2.msra.mxu0 0.0
        %2050 = vmatprep.mubr.f32.mxu0 0.0
        %2051 = vmatmul.mubr.f32.gmra.mxu0 %v637
        %v2052 = vpop.f32.mrf.mxu0
        %v2053 = vadd.f32 %v1763, %v2052
        %v2054 = vpop.f32.mrf.mxu0
        %2055 = vmatprep.mubr.f32.mxu0 0.0
        %2056 = vmatmul.mubr.f32.gmra.mxu0 %v638
        %v2057 = vpop.f32.mrf.mxu0
        %v2058 = vadd.f32 %v1768, %v2057
        %v2059 = vpop.f32.mrf.mxu0
        %2060 = vmatprep.mubr.f32.mxu0 0.0
        %2061 = vmatmul.mubr.f32.gmra.mxu0 %v639
        %v2062 = vpop.f32.mrf.mxu0
        %v2063 = vadd.f32 %v1773, %v2062
        %v2064 = vpop.f32.mrf.mxu0
        %2065 = vmatprep.mubr.f32.mxu0 0.0
        %2066 = vmatmul.mubr.f32.gmra.mxu0 %v640
        %v2067 = vpop.f32.mrf.mxu0
        %v2068 = vadd.f32 %v1778, %v2067
        %v2069 = vpop.f32.mrf.mxu0
        %2070 = vmatprep.mubr.f32.mxu0 0.0
        %2071 = vmatmul.mubr.f32.gmra.mxu0 %v641
        %v2072 = vpop.f32.mrf.mxu0
        %v2073 = vadd.f32 %v1783, %v2072
        %v2074 = vpop.f32.mrf.mxu0
        %2075 = vmatprep.mubr.f32.mxu0 0.0
        %2076 = vmatmul.mubr.f32.gmra.mxu0 %v642
        %v2077 = vpop.f32.mrf.mxu0
        %v2078 = vadd.f32 %v1788, %v2077
        %v2079 = vpop.f32.mrf.mxu0
        %2080 = vmatprep.mubr.f32.mxu0 0.0
        %2081 = vmatmul.mubr.f32.gmra.mxu0 %v643
        %v2082 = vpop.f32.mrf.mxu0
        %v2083 = vadd.f32 %v1793, %v2082
        %v2084 = vpop.f32.mrf.mxu0
        %2085 = vmatprep.mubr.f32.mxu0 0.0
        %2086 = vmatmul.mubr.f32.gmra.mxu0 %v644
        %v2087 = vpop.f32.mrf.mxu0
        %v2088 = vadd.f32 %v1798, %v2087
        %v2089 = vpop.f32.mrf.mxu0
        %2090 = vmatprep.mubr.f32.mxu0 0.0
        %2091 = vmatmul.mubr.f32.gmra.mxu0 %v645
        %v2092 = vpop.f32.mrf.mxu0
        %v2093 = vadd.f32 %v1803, %v2092
        %v2094 = vpop.f32.mrf.mxu0
        %2095 = vmatprep.mubr.f32.mxu0 0.0
        %2096 = vmatmul.mubr.f32.gmra.mxu0 %v646
        %v2097 = vpop.f32.mrf.mxu0
        %v2098 = vadd.f32 %v1808, %v2097
        %v2099 = vpop.f32.mrf.mxu0
        %2100 = vmatprep.mubr.f32.mxu0 0.0
        %2101 = vmatmul.mubr.f32.gmra.mxu0 %v647
        %v2102 = vpop.f32.mrf.mxu0
        %v2103 = vadd.f32 %v1813, %v2102
        %v2104 = vpop.f32.mrf.mxu0
        %2105 = vmatprep.mubr.f32.mxu0 0.0
        %2106 = vmatmul.mubr.f32.gmra.mxu0 %v648
        %v2107 = vpop.f32.mrf.mxu0
        %v2108 = vadd.f32 %v1818, %v2107
        %v2109 = vpop.f32.mrf.mxu0
        %2110 = vmatprep.mubr.f32.mxu0 0.0
        %2111 = vmatmul.mubr.f32.gmra.mxu0 %v649
        %v2112 = vpop.f32.mrf.mxu0
        %v2113 = vadd.f32 %v1823, %v2112
        %v2114 = vpop.f32.mrf.mxu0
        %2115 = vmatprep.mubr.f32.mxu0 0.0
        %2116 = vmatmul.mubr.f32.gmra.mxu0 %v650
        %v2117 = vpop.f32.mrf.mxu0
        %v2118 = vadd.f32 %v1828, %v2117
        %v2119 = vpop.f32.mrf.mxu0
        %2120 = vmatprep.mubr.f32.mxu0 0.0
        %2121 = vmatmul.mubr.f32.gmra.mxu0 %v651
        %v2122 = vpop.f32.mrf.mxu0
        %v2123 = vadd.f32 %v1833, %v2122
        %v2124 = vpop.f32.mrf.mxu0
        %2125 = vmatprep.mubr.f32.mxu0 0.0
        %2126 = vmatmul.mubr.f32.gmra.mxu0 %v652
        %v2127 = vpop.f32.mrf.mxu0
        %v2128 = vadd.f32 %v1838, %v2127
        %v2129 = vpop.f32.mrf.mxu0
        %2130 = vmatprep.mubr.f32.mxu0 0.0
        %2131 = vmatmul.mubr.f32.gmra.mxu0 %v653
        %v2132 = vpop.f32.mrf.mxu0
        %v2133 = vadd.f32 %v1843, %v2132
        %v2134 = vpop.f32.mrf.mxu0
        %2135 = vmatprep.mubr.f32.mxu0 0.0
        %2136 = vmatmul.mubr.f32.gmra.mxu0 %v654
        %v2137 = vpop.f32.mrf.mxu0
        %v2138 = vadd.f32 %v1848, %v2137
        %v2139 = vpop.f32.mrf.mxu0
        %2140 = vmatprep.mubr.f32.mxu0 0.0
        %2141 = vmatmul.mubr.f32.gmra.mxu0 %v655
        %v2142 = vpop.f32.mrf.mxu0
        %v2143 = vadd.f32 %v1853, %v2142
        %v2144 = vpop.f32.mrf.mxu0
        %2145 = vmatprep.mubr.f32.mxu0 0.0
        %2146 = vmatmul.mubr.f32.gmra.mxu0 %v656
        %v2147 = vpop.f32.mrf.mxu0
        %v2148 = vadd.f32 %v1858, %v2147
        %v2149 = vpop.f32.mrf.mxu0
        %2150 = vmatprep.mubr.f32.mxu0 0.0
        %2151 = vmatmul.mubr.f32.gmra.mxu0 %v657
        %v2152 = vpop.f32.mrf.mxu0
        %v2153 = vadd.f32 %v1863, %v2152
        %v2154 = vpop.f32.mrf.mxu0
        %2155 = vmatprep.mubr.f32.mxu0 0.0
        %2156 = vmatmul.mubr.f32.gmra.mxu0 %v658
        %v2157 = vpop.f32.mrf.mxu0
        %v2158 = vadd.f32 %v1868, %v2157
        %v2159 = vpop.f32.mrf.mxu0
        %2160 = vmatprep.mubr.f32.mxu0 0.0
        %2161 = vmatmul.mubr.f32.gmra.mxu0 %v659
        %v2162 = vpop.f32.mrf.mxu0
        %v2163 = vadd.f32 %v1873, %v2162
        %v2164 = vpop.f32.mrf.mxu0
        %2165 = vmatprep.mubr.f32.mxu0 0.0
        %2166 = vmatmul.mubr.f32.gmra.mxu0 %v660
        %v2167 = vpop.f32.mrf.mxu0
        %v2168 = vadd.f32 %v1878, %v2167
        %v2169 = vpop.f32.mrf.mxu0
        %2170 = vmatprep.mubr.f32.mxu0 0.0
        %2171 = vmatmul.mubr.f32.gmra.mxu0 %v661
        %v2172 = vpop.f32.mrf.mxu0
        %v2173 = vadd.f32 %v1883, %v2172
        %v2174 = vpop.f32.mrf.mxu0
        %2175 = vmatprep.mubr.f32.mxu0 0.0
        %2176 = vmatmul.mubr.f32.gmra.mxu0 %v662
        %v2177 = vpop.f32.mrf.mxu0
        %v2178 = vadd.f32 %v1888, %v2177
        %v2179 = vpop.f32.mrf.mxu0
        %2180 = vmatprep.mubr.f32.mxu0 0.0
        %2181 = vmatmul.mubr.f32.gmra.mxu0 %v663
        %v2182 = vpop.f32.mrf.mxu0
        %v2183 = vadd.f32 %v1893, %v2182
        %v2184 = vpop.f32.mrf.mxu0
        %2185 = vmatprep.mubr.f32.mxu0 0.0
        %2186 = vmatmul.mubr.f32.gmra.mxu0 %v664
        %v2187 = vpop.f32.mrf.mxu0
        %v2188 = vadd.f32 %v1898, %v2187
        %v2189 = vpop.f32.mrf.mxu0
        %2190 = vmatprep.mubr.f32.mxu0 0.0
        %2191 = vmatmul.mubr.f32.gmra.mxu0 %v665
        %v2192 = vpop.f32.mrf.mxu0
        %v2193 = vadd.f32 %v1903, %v2192
        %v2194 = vpop.f32.mrf.mxu0
        %2195 = vmatprep.mubr.f32.mxu0 0.0
        %2196 = vmatmul.mubr.f32.gmra.mxu0 %v666
        %v2197 = vpop.f32.mrf.mxu0
        %v2198 = vadd.f32 %v1908, %v2197
        %v2199 = vpop.f32.mrf.mxu0
        %2200 = vmatprep.mubr.f32.mxu0 0.0
        %2201 = vmatmul.mubr.f32.gmra.mxu0 %v667
        %v2202 = vpop.f32.mrf.mxu0
        %v2203 = vadd.f32 %v1913, %v2202
        %v2204 = vpop.f32.mrf.mxu0
        %2205 = vmatprep.mubr.f32.mxu0 0.0
        %2206 = vmatmul.mubr.f32.gmra.mxu0 %v668
        %v2207 = vpop.f32.mrf.mxu0
        %v2208 = vadd.f32 %v1918, %v2207
        %v2209 = vpop.f32.mrf.mxu0
        %2210 = vmatprep.mubr.f32.mxu0 0.0
        %2211 = vmatmul.mubr.f32.gmra.mxu0 %v669
        %v2212 = vpop.f32.mrf.mxu0
        %v2213 = vadd.f32 %v1923, %v2212
        %v2214 = vpop.f32.mrf.mxu0
        %2215 = vmatprep.mubr.f32.mxu0 0.0
        %2216 = vmatmul.mubr.f32.gmra.mxu0 %v670
        %v2217 = vpop.f32.mrf.mxu0
        %v2218 = vadd.f32 %v1928, %v2217
        %v2219 = vpop.f32.mrf.mxu0
        %2220 = vmatprep.mubr.f32.mxu0 0.0
        %2221 = vmatmul.mubr.f32.gmra.mxu0 %v671
        %v2222 = vpop.f32.mrf.mxu0
        %v2223 = vadd.f32 %v1933, %v2222
        %v2224 = vpop.f32.mrf.mxu0
        %2225 = vmatprep.mubr.f32.mxu0 0.0
        %2226 = vmatmul.mubr.f32.gmra.mxu0 %v672
        %v2227 = vpop.f32.mrf.mxu0
        %v2228 = vadd.f32 %v1938, %v2227
        %v2229 = vpop.f32.mrf.mxu0
        %2230 = vmatprep.mubr.f32.mxu0 0.0
        %2231 = vmatmul.mubr.f32.gmra.mxu0 %v673
        %v2232 = vpop.f32.mrf.mxu0
        %v2233 = vadd.f32 %v1943, %v2232
        %v2234 = vpop.f32.mrf.mxu0
        %2235 = vmatprep.mubr.f32.mxu0 0.0
        %2236 = vmatmul.mubr.f32.gmra.mxu0 %v674
        %v2237 = vpop.f32.mrf.mxu0
        %v2238 = vadd.f32 %v1948, %v2237
        %v2239 = vpop.f32.mrf.mxu0
        %2240 = vmatprep.mubr.f32.mxu0 0.0
        %2241 = vmatmul.mubr.f32.gmra.mxu0 %v675
        %v2242 = vpop.f32.mrf.mxu0
        %v2243 = vadd.f32 %v1953, %v2242
        %v2244 = vpop.f32.mrf.mxu0
        %2245 = vmatprep.mubr.f32.mxu0 0.0
        %2246 = vmatmul.mubr.f32.gmra.mxu0 %v676
        %v2247 = vpop.f32.mrf.mxu0
        %v2248 = vadd.f32 %v1958, %v2247
        %v2249 = vpop.f32.mrf.mxu0
        %2250 = vmatprep.mubr.f32.mxu0 0.0
        %2251 = vmatmul.mubr.f32.gmra.mxu0 %v677
        %v2252 = vpop.f32.mrf.mxu0
        %v2253 = vadd.f32 %v1963, %v2252
        %v2254 = vpop.f32.mrf.mxu0
        %2255 = vmatprep.mubr.f32.mxu0 0.0
        %2256 = vmatmul.mubr.f32.gmra.mxu0 %v678
        %v2257 = vpop.f32.mrf.mxu0
        %v2258 = vadd.f32 %v1968, %v2257
        %v2259 = vpop.f32.mrf.mxu0
        %2260 = vmatprep.mubr.f32.mxu0 0.0
        %2261 = vmatmul.mubr.f32.gmra.mxu0 %v679
        %v2262 = vpop.f32.mrf.mxu0
        %v2263 = vadd.f32 %v1973, %v2262
        %v2264 = vpop.f32.mrf.mxu0
        %2265 = vmatprep.mubr.f32.mxu0 0.0
        %2266 = vmatmul.mubr.f32.gmra.mxu0 %v680
        %v2267 = vpop.f32.mrf.mxu0
        %v2268 = vadd.f32 %v1978, %v2267
        %v2269 = vpop.f32.mrf.mxu0
        %2270 = vmatprep.mubr.f32.mxu0 0.0
        %2271 = vmatmul.mubr.f32.gmra.mxu0 %v681
        %v2272 = vpop.f32.mrf.mxu0
        %v2273 = vadd.f32 %v1983, %v2272
        %v2274 = vpop.f32.mrf.mxu0
        %2275 = vdwg.mxu0
        %v2276 = vld [vmem:[%s3] sm:$0x1]
        %v2278 = vlaneseq
        %v2279 = vshrl.u32 %v2278, 7
        %v2280 = vsub.s32 0, %v2279
        %v2281 = vrot.slane %v2276, %v2280
        %v2283 = vmul.f32 %v2053, %v2281
        %v2284 = vmul.f32 %v2058, %v2281
        %v2285 = vmul.f32 %v2063, %v2281
        %v2286 = vmul.f32 %v2068, %v2281
        %v2287 = vmul.f32 %v2073, %v2281
        %v2288 = vmul.f32 %v2078, %v2281
        %v2289 = vmul.f32 %v2083, %v2281
        %v2290 = vmul.f32 %v2088, %v2281
        %v2291 = vmul.f32 %v2093, %v2281
        %v2292 = vmul.f32 %v2098, %v2281
        %v2293 = vmul.f32 %v2103, %v2281
        %v2294 = vmul.f32 %v2108, %v2281
        %v2295 = vmul.f32 %v2113, %v2281
        %v2296 = vmul.f32 %v2118, %v2281
        %v2297 = vmul.f32 %v2123, %v2281
        %v2298 = vmul.f32 %v2128, %v2281
        %v2299 = vmul.f32 %v2133, %v2281
        %v2300 = vmul.f32 %v2138, %v2281
        %v2301 = vmul.f32 %v2143, %v2281
        %v2302 = vmul.f32 %v2148, %v2281
        %v2303 = vmul.f32 %v2153, %v2281
        %v2304 = vmul.f32 %v2158, %v2281
        %v2305 = vmul.f32 %v2163, %v2281
        %v2306 = vmul.f32 %v2168, %v2281
        %v2307 = vmul.f32 %v2173, %v2281
        %v2308 = vmul.f32 %v2178, %v2281
        %v2309 = vmul.f32 %v2183, %v2281
        %v2310 = vmul.f32 %v2188, %v2281
        %v2311 = vmul.f32 %v2193, %v2281
        %v2312 = vmul.f32 %v2198, %v2281
        %v2313 = vmul.f32 %v2203, %v2281
        %v2314 = vmul.f32 %v2208, %v2281
        %v2315 = vmul.f32 %v2213, %v2281
        %v2316 = vmul.f32 %v2218, %v2281
        %v2317 = vmul.f32 %v2223, %v2281
        %v2318 = vmul.f32 %v2228, %v2281
        %v2319 = vmul.f32 %v2233, %v2281
        %v2320 = vmul.f32 %v2238, %v2281
        %v2321 = vmul.f32 %v2243, %v2281
        %v2322 = vmul.f32 %v2248, %v2281
        %v2323 = vmul.f32 %v2253, %v2281
        %v2324 = vmul.f32 %v2258, %v2281
        %v2325 = vmul.f32 %v2263, %v2281
        %v2326 = vmul.f32 %v2268, %v2281
        %v2327 = vmul.f32 %v2273, %v2281
        %v2328 = vld [vmem:[%s4] sm:$0x1]
        %v2330 = vlaneseq
        %v2331 = vshrl.u32 %v2330, 7
        %v2332 = vsub.s32 0, %v2331
        %v2333 = vrot.slane %v2328, %v2332
        %v2335 = vadd.f32 %v2283, %v2333
        %v2336 = vadd.f32 %v2284, %v2333
        %v2337 = vadd.f32 %v2285, %v2333
        %v2338 = vadd.f32 %v2286, %v2333
        %v2339 = vadd.f32 %v2287, %v2333
        %v2340 = vadd.f32 %v2288, %v2333
        %v2341 = vadd.f32 %v2289, %v2333
        %v2342 = vadd.f32 %v2290, %v2333
        %v2343 = vadd.f32 %v2291, %v2333
        %v2344 = vadd.f32 %v2292, %v2333
        %v2345 = vadd.f32 %v2293, %v2333
        %v2346 = vadd.f32 %v2294, %v2333
        %v2347 = vadd.f32 %v2295, %v2333
        %v2348 = vadd.f32 %v2296, %v2333
        %v2349 = vadd.f32 %v2297, %v2333
        %v2350 = vadd.f32 %v2298, %v2333
        %v2351 = vadd.f32 %v2299, %v2333
        %v2352 = vadd.f32 %v2300, %v2333
        %v2353 = vadd.f32 %v2301, %v2333
        %v2354 = vadd.f32 %v2302, %v2333
        %v2355 = vadd.f32 %v2303, %v2333
        %v2356 = vadd.f32 %v2304, %v2333
        %v2357 = vadd.f32 %v2305, %v2333
        %v2358 = vadd.f32 %v2306, %v2333
        %v2359 = vadd.f32 %v2307, %v2333
        %v2360 = vadd.f32 %v2308, %v2333
        %v2361 = vadd.f32 %v2309, %v2333
        %v2362 = vadd.f32 %v2310, %v2333
        %v2363 = vadd.f32 %v2311, %v2333
        %v2364 = vadd.f32 %v2312, %v2333
        %v2365 = vadd.f32 %v2313, %v2333
        %v2366 = vadd.f32 %v2314, %v2333
        %v2367 = vadd.f32 %v2315, %v2333
        %v2368 = vadd.f32 %v2316, %v2333
        %v2369 = vadd.f32 %v2317, %v2333
        %v2370 = vadd.f32 %v2318, %v2333
        %v2371 = vadd.f32 %v2319, %v2333
        %v2372 = vadd.f32 %v2320, %v2333
        %v2373 = vadd.f32 %v2321, %v2333
        %v2374 = vadd.f32 %v2322, %v2333
        %v2375 = vadd.f32 %v2323, %v2333
        %v2376 = vadd.f32 %v2324, %v2333
        %v2377 = vadd.f32 %v2325, %v2333
        %v2378 = vadd.f32 %v2326, %v2333
        %v2379 = vadd.f32 %v2327, %v2333
        %v2380 = vmax.f32 %v2335, 0.0
        %v2381 = vmax.f32 %v2336, 0.0
        %v2382 = vmax.f32 %v2337, 0.0
        %v2383 = vmax.f32 %v2338, 0.0
        %v2384 = vmax.f32 %v2339, 0.0
        %v2385 = vmax.f32 %v2340, 0.0
        %v2386 = vmax.f32 %v2341, 0.0
        %v2387 = vmax.f32 %v2342, 0.0
        %v2388 = vmax.f32 %v2343, 0.0
        %v2389 = vmax.f32 %v2344, 0.0
        %v2390 = vmax.f32 %v2345, 0.0
        %v2391 = vmax.f32 %v2346, 0.0
        %v2392 = vmax.f32 %v2347, 0.0
        %v2393 = vmax.f32 %v2348, 0.0
        %v2394 = vmax.f32 %v2349, 0.0
        %v2395 = vmax.f32 %v2350, 0.0
        %v2396 = vmax.f32 %v2351, 0.0
        %v2397 = vmax.f32 %v2352, 0.0
        %v2398 = vmax.f32 %v2353, 0.0
        %v2399 = vmax.f32 %v2354, 0.0
        %v2400 = vmax.f32 %v2355, 0.0
        %v2401 = vmax.f32 %v2356, 0.0
        %v2402 = vmax.f32 %v2357, 0.0
        %v2403 = vmax.f32 %v2358, 0.0
        %v2404 = vmax.f32 %v2359, 0.0
        %v2405 = vmax.f32 %v2360, 0.0
        %v2406 = vmax.f32 %v2361, 0.0
        %v2407 = vmax.f32 %v2362, 0.0
        %v2408 = vmax.f32 %v2363, 0.0
        %v2409 = vmax.f32 %v2364, 0.0
        %v2410 = vmax.f32 %v2365, 0.0
        %v2411 = vmax.f32 %v2366, 0.0
        %v2412 = vmax.f32 %v2367, 0.0
        %v2413 = vmax.f32 %v2368, 0.0
        %v2414 = vmax.f32 %v2369, 0.0
        %v2415 = vmax.f32 %v2370, 0.0
        %v2416 = vmax.f32 %v2371, 0.0
        %v2417 = vmax.f32 %v2372, 0.0
        %v2418 = vmax.f32 %v2373, 0.0
        %v2419 = vmax.f32 %v2374, 0.0
        %v2420 = vmax.f32 %v2375, 0.0
        %v2421 = vmax.f32 %v2376, 0.0
        %v2422 = vmax.f32 %v2377, 0.0
        %v2423 = vmax.f32 %v2378, 0.0
        %v2424 = vmax.f32 %v2379, 0.0
        %v2425 = vld [vmem:[%s1] sm:$0xff]
        %v2426 = vld [vmem:[%s1 + $0x8] sm:$0xff]
        %v2427 = vld [vmem:[%s1 + $0x10] sm:$0xff]
        %v2428 = vld [vmem:[%s1 + $0x18] sm:$0xff]
        %v2429 = vld [vmem:[%s1 + $0x20] sm:$0xff]
        %v2430 = vld [vmem:[%s1 + $0x28] sm:$0xff]
        %v2431 = vld [vmem:[%s1 + $0x30] sm:$0xff]
        %v2432 = vld [vmem:[%s1 + $0x38] sm:$0xff]
        %v2433 = vld [vmem:[%s1 + $0x40] sm:$0xff]
        %v2434 = vld [vmem:[%s1 + $0x48] sm:$0xff]
        %v2435 = vld [vmem:[%s1 + $0x50] sm:$0xff]
        %v2436 = vld [vmem:[%s1 + $0x58] sm:$0xff]
        %v2437 = vld [vmem:[%s1 + $0x60] sm:$0xff]
        %v2438 = vld [vmem:[%s1 + $0x68] sm:$0xff]
        %v2439 = vld [vmem:[%s1 + $0x70] sm:$0xff]
        %v2440 = vld [vmem:[%s1 + $0x78] sm:$0xff]
        %v2441 = vld [vmem:[%s1 + $0x80] sm:$0xff]
        %v2442 = vld [vmem:[%s1 + $0x88] sm:$0xff]
        %v2443 = vld [vmem:[%s1 + $0x90] sm:$0xff]
        %v2444 = vld [vmem:[%s1 + $0x98] sm:$0xff]
        %v2445 = vld [vmem:[%s1 + $0xa0] sm:$0xff]
        %v2446 = vld [vmem:[%s1 + $0xa8] sm:$0xff]
        %v2447 = vld [vmem:[%s1 + $0xb0] sm:$0xff]
        %v2448 = vld [vmem:[%s1 + $0xb8] sm:$0xff]
        %v2449 = vld [vmem:[%s1 + $0xc0] sm:$0xff]
        %v2450 = vld [vmem:[%s1 + $0xc8] sm:$0xff]
        %v2451 = vld [vmem:[%s1 + $0xd0] sm:$0xff]
        %v2452 = vld [vmem:[%s1 + $0xd8] sm:$0xff]
        %v2453 = vld [vmem:[%s1 + $0xe0] sm:$0xff]
        %v2454 = vld [vmem:[%s1 + $0xe8] sm:$0xff]
        %v2455 = vld [vmem:[%s1 + $0xf0] sm:$0xff]
        %v2456 = vld [vmem:[%s1 + $0xf8] sm:$0xff]
        %v2457 = vld [vmem:[%s1 + $0x100] sm:$0xff]
        %v2458 = vld [vmem:[%s1 + $0x108] sm:$0xff]
        %v2459 = vld [vmem:[%s1 + $0x110] sm:$0xff]
        %v2460 = vld [vmem:[%s1 + $0x118] sm:$0xff]
        %v2461 = vld [vmem:[%s1 + $0x120] sm:$0xff]
        %v2462 = vld [vmem:[%s1 + $0x128] sm:$0xff]
        %v2463 = vld [vmem:[%s1 + $0x130] sm:$0xff]
        %v2464 = vld [vmem:[%s1 + $0x138] sm:$0xff]
        %v2465 = vld [vmem:[%s1 + $0x140] sm:$0xff]
        %v2466 = vld [vmem:[%s1 + $0x148] sm:$0xff]
        %v2467 = vld [vmem:[%s1 + $0x150] sm:$0xff]
        %v2468 = vld [vmem:[%s1 + $0x158] sm:$0xff]
        %v2469 = vld [vmem:[%s1 + $0x160] sm:$0x3f]
        %2471 = vset.pattern.permute.xlu0 0
        %2472 = vperm.xlu0 %2471, %v2425
        %v2473 = vpop.permute.xlu0 %2472
        %2476 = vset.pattern.permute.xlu0 0
        %2477 = vperm.xlu0 %2476, %v2426
        %v2478 = vpop.permute.xlu0 %2477
        %2481 = vset.pattern.permute.xlu0 0
        %2482 = vperm.xlu0 %2481, %v2427
        %v2483 = vpop.permute.xlu0 %2482
        %2486 = vset.pattern.permute.xlu0 0
        %2487 = vperm.xlu0 %2486, %v2428
        %v2488 = vpop.permute.xlu0 %2487
        %2491 = vset.pattern.permute.xlu0 0
        %2492 = vperm.xlu0 %2491, %v2429
        %v2493 = vpop.permute.xlu0 %2492
        %2496 = vset.pattern.permute.xlu0 0
        %2497 = vperm.xlu0 %2496, %v2430
        %v2498 = vpop.permute.xlu0 %2497
        %2501 = vset.pattern.permute.xlu0 0
        %2502 = vperm.xlu0 %2501, %v2431
        %v2503 = vpop.permute.xlu0 %2502
        %2506 = vset.pattern.permute.xlu0 0
        %2507 = vperm.xlu0 %2506, %v2432
        %v2508 = vpop.permute.xlu0 %2507
        %2511 = vset.pattern.permute.xlu0 0
        %2512 = vperm.xlu0 %2511, %v2433
        %v2513 = vpop.permute.xlu0 %2512
        %2516 = vset.pattern.permute.xlu0 0
        %2517 = vperm.xlu0 %2516, %v2434
        %v2518 = vpop.permute.xlu0 %2517
        %2521 = vset.pattern.permute.xlu0 0
        %2522 = vperm.xlu0 %2521, %v2435
        %v2523 = vpop.permute.xlu0 %2522
        %2526 = vset.pattern.permute.xlu0 0
        %2527 = vperm.xlu0 %2526, %v2436
        %v2528 = vpop.permute.xlu0 %2527
        %2531 = vset.pattern.permute.xlu0 0
        %2532 = vperm.xlu0 %2531, %v2437
        %v2533 = vpop.permute.xlu0 %2532
        %2536 = vset.pattern.permute.xlu0 0
        %2537 = vperm.xlu0 %2536, %v2438
        %v2538 = vpop.permute.xlu0 %2537
        %2541 = vset.pattern.permute.xlu0 0
        %2542 = vperm.xlu0 %2541, %v2439
        %v2543 = vpop.permute.xlu0 %2542
        %2546 = vset.pattern.permute.xlu0 0
        %2547 = vperm.xlu0 %2546, %v2440
        %v2548 = vpop.permute.xlu0 %2547
        %2551 = vset.pattern.permute.xlu0 0
        %2552 = vperm.xlu0 %2551, %v2441
        %v2553 = vpop.permute.xlu0 %2552
        %2556 = vset.pattern.permute.xlu0 0
        %2557 = vperm.xlu0 %2556, %v2442
        %v2558 = vpop.permute.xlu0 %2557
        %2561 = vset.pattern.permute.xlu0 0
        %2562 = vperm.xlu0 %2561, %v2443
        %v2563 = vpop.permute.xlu0 %2562
        %2566 = vset.pattern.permute.xlu0 0
        %2567 = vperm.xlu0 %2566, %v2444
        %v2568 = vpop.permute.xlu0 %2567
        %2571 = vset.pattern.permute.xlu0 0
        %2572 = vperm.xlu0 %2571, %v2445
        %v2573 = vpop.permute.xlu0 %2572
        %2576 = vset.pattern.permute.xlu0 0
        %2577 = vperm.xlu0 %2576, %v2446
        %v2578 = vpop.permute.xlu0 %2577
        %2581 = vset.pattern.permute.xlu0 0
        %2582 = vperm.xlu0 %2581, %v2447
        %v2583 = vpop.permute.xlu0 %2582
        %2586 = vset.pattern.permute.xlu0 0
        %2587 = vperm.xlu0 %2586, %v2448
        %v2588 = vpop.permute.xlu0 %2587
        %2591 = vset.pattern.permute.xlu0 0
        %2592 = vperm.xlu0 %2591, %v2449
        %v2593 = vpop.permute.xlu0 %2592
        %2596 = vset.pattern.permute.xlu0 0
        %2597 = vperm.xlu0 %2596, %v2450
        %v2598 = vpop.permute.xlu0 %2597
        %2601 = vset.pattern.permute.xlu0 0
        %2602 = vperm.xlu0 %2601, %v2451
        %v2603 = vpop.permute.xlu0 %2602
        %2606 = vset.pattern.permute.xlu0 0
        %2607 = vperm.xlu0 %2606, %v2452
        %v2608 = vpop.permute.xlu0 %2607
        %2611 = vset.pattern.permute.xlu0 0
        %2612 = vperm.xlu0 %2611, %v2453
        %v2613 = vpop.permute.xlu0 %2612
        %2616 = vset.pattern.permute.xlu0 0
        %2617 = vperm.xlu0 %2616, %v2454
        %v2618 = vpop.permute.xlu0 %2617
        %2621 = vset.pattern.permute.xlu0 0
        %2622 = vperm.xlu0 %2621, %v2455
        %v2623 = vpop.permute.xlu0 %2622
        %2626 = vset.pattern.permute.xlu0 0
        %2627 = vperm.xlu0 %2626, %v2456
        %v2628 = vpop.permute.xlu0 %2627
        %2631 = vset.pattern.permute.xlu0 0
        %2632 = vperm.xlu0 %2631, %v2457
        %v2633 = vpop.permute.xlu0 %2632
        %2636 = vset.pattern.permute.xlu0 0
        %2637 = vperm.xlu0 %2636, %v2458
        %v2638 = vpop.permute.xlu0 %2637
        %2641 = vset.pattern.permute.xlu0 0
        %2642 = vperm.xlu0 %2641, %v2459
        %v2643 = vpop.permute.xlu0 %2642
        %2646 = vset.pattern.permute.xlu0 0
        %2647 = vperm.xlu0 %2646, %v2460
        %v2648 = vpop.permute.xlu0 %2647
        %2651 = vset.pattern.permute.xlu0 0
        %2652 = vperm.xlu0 %2651, %v2461
        %v2653 = vpop.permute.xlu0 %2652
        %2656 = vset.pattern.permute.xlu0 0
        %2657 = vperm.xlu0 %2656, %v2462
        %v2658 = vpop.permute.xlu0 %2657
        %2661 = vset.pattern.permute.xlu0 0
        %2662 = vperm.xlu0 %2661, %v2463
        %v2663 = vpop.permute.xlu0 %2662
        %2666 = vset.pattern.permute.xlu0 0
        %2667 = vperm.xlu0 %2666, %v2464
        %v2668 = vpop.permute.xlu0 %2667
        %2671 = vset.pattern.permute.xlu0 0
        %2672 = vperm.xlu0 %2671, %v2465
        %v2673 = vpop.permute.xlu0 %2672
        %2676 = vset.pattern.permute.xlu0 0
        %2677 = vperm.xlu0 %2676, %v2466
        %v2678 = vpop.permute.xlu0 %2677
        %2681 = vset.pattern.permute.xlu0 0
        %2682 = vperm.xlu0 %2681, %v2467
        %v2683 = vpop.permute.xlu0 %2682
        %2686 = vset.pattern.permute.xlu0 0
        %2687 = vperm.xlu0 %2686, %v2468
        %v2688 = vpop.permute.xlu0 %2687
        %2691 = vset.pattern.permute.xlu0 0
        %2692 = vperm.xlu0 %2691, %v2469
        %v2693 = vpop.permute.xlu0 %2692
        %v2695 = vmul.f32 %v2380, %v2473
        %v2696 = vmul.f32 %v2381, %v2478
        %v2697 = vmul.f32 %v2382, %v2483
        %v2698 = vmul.f32 %v2383, %v2488
        %v2699 = vmul.f32 %v2384, %v2493
        %v2700 = vmul.f32 %v2385, %v2498
        %v2701 = vmul.f32 %v2386, %v2503
        %v2702 = vmul.f32 %v2387, %v2508
        %v2703 = vmul.f32 %v2388, %v2513
        %v2704 = vmul.f32 %v2389, %v2518
        %v2705 = vmul.f32 %v2390, %v2523
        %v2706 = vmul.f32 %v2391, %v2528
        %v2707 = vmul.f32 %v2392, %v2533
        %v2708 = vmul.f32 %v2393, %v2538
        %v2709 = vmul.f32 %v2394, %v2543
        %v2710 = vmul.f32 %v2395, %v2548
        %v2711 = vmul.f32 %v2396, %v2553
        %v2712 = vmul.f32 %v2397, %v2558
        %v2713 = vmul.f32 %v2398, %v2563
        %v2714 = vmul.f32 %v2399, %v2568
        %v2715 = vmul.f32 %v2400, %v2573
        %v2716 = vmul.f32 %v2401, %v2578
        %v2717 = vmul.f32 %v2402, %v2583
        %v2718 = vmul.f32 %v2403, %v2588
        %v2719 = vmul.f32 %v2404, %v2593
        %v2720 = vmul.f32 %v2405, %v2598
        %v2721 = vmul.f32 %v2406, %v2603
        %v2722 = vmul.f32 %v2407, %v2608
        %v2723 = vmul.f32 %v2408, %v2613
        %v2724 = vmul.f32 %v2409, %v2618
        %v2725 = vmul.f32 %v2410, %v2623
        %v2726 = vmul.f32 %v2411, %v2628
        %v2727 = vmul.f32 %v2412, %v2633
        %v2728 = vmul.f32 %v2413, %v2638
        %v2729 = vmul.f32 %v2414, %v2643
        %v2730 = vmul.f32 %v2415, %v2648
        %v2731 = vmul.f32 %v2416, %v2653
        %v2732 = vmul.f32 %v2417, %v2658
        %v2733 = vmul.f32 %v2418, %v2663
        %v2734 = vmul.f32 %v2419, %v2668
        %v2735 = vmul.f32 %v2420, %v2673
        %v2736 = vmul.f32 %v2421, %v2678
        %v2737 = vmul.f32 %v2422, %v2683
        %v2738 = vmul.f32 %v2423, %v2688
        %v2739 = vmul.f32 %v2424, %v2693
        %vm2780 = vcmask 1046528
        %v2781 = vrot.slane %v2695, 1
        %v2782 = vrot.slane %v2696, 1
        %v2783 = vsel %vm2780, %v2781, %v2782
        %v2784 = vrot.slane %v2697, 1
        %v2785 = vsel %vm2780, %v2782, %v2784
        %v2786 = vrot.slane %v2698, 1
        %v2787 = vsel %vm2780, %v2784, %v2786
        %v2788 = vrot.slane %v2699, 1
        %v2789 = vsel %vm2780, %v2786, %v2788
        %v2790 = vrot.slane %v2700, 1
        %v2791 = vsel %vm2780, %v2788, %v2790
        %v2792 = vrot.slane %v2701, 1
        %v2793 = vsel %vm2780, %v2790, %v2792
        %v2794 = vrot.slane %v2702, 1
        %v2795 = vsel %vm2780, %v2792, %v2794
        %v2796 = vrot.slane %v2703, 1
        %v2797 = vsel %vm2780, %v2794, %v2796
        %v2798 = vrot.slane %v2704, 1
        %v2799 = vsel %vm2780, %v2796, %v2798
        %v2800 = vrot.slane %v2705, 1
        %v2801 = vsel %vm2780, %v2798, %v2800
        %v2802 = vrot.slane %v2706, 1
        %v2803 = vsel %vm2780, %v2800, %v2802
        %v2804 = vrot.slane %v2707, 1
        %v2805 = vsel %vm2780, %v2802, %v2804
        %v2806 = vrot.slane %v2708, 1
        %v2807 = vsel %vm2780, %v2804, %v2806
        %v2808 = vrot.slane %v2709, 1
        %v2809 = vsel %vm2780, %v2806, %v2808
        %v2810 = vrot.slane %v2710, 1
        %v2811 = vsel %vm2780, %v2808, %v2810
        %v2812 = vrot.slane %v2711, 1
        %v2813 = vsel %vm2780, %v2810, %v2812
        %v2814 = vrot.slane %v2712, 1
        %v2815 = vsel %vm2780, %v2812, %v2814
        %v2816 = vrot.slane %v2713, 1
        %v2817 = vsel %vm2780, %v2814, %v2816
        %v2818 = vrot.slane %v2714, 1
        %v2819 = vsel %vm2780, %v2816, %v2818
        %v2820 = vrot.slane %v2715, 1
        %v2821 = vsel %vm2780, %v2818, %v2820
        %v2822 = vrot.slane %v2716, 1
        %v2823 = vsel %vm2780, %v2820, %v2822
        %v2824 = vrot.slane %v2717, 1
        %v2825 = vsel %vm2780, %v2822, %v2824
        %v2826 = vrot.slane %v2718, 1
        %v2827 = vsel %vm2780, %v2824, %v2826
        %v2828 = vrot.slane %v2719, 1
        %v2829 = vsel %vm2780, %v2826, %v2828
        %v2830 = vrot.slane %v2720, 1
        %v2831 = vsel %vm2780, %v2828, %v2830
        %v2832 = vrot.slane %v2721, 1
        %v2833 = vsel %vm2780, %v2830, %v2832
        %v2834 = vrot.slane %v2722, 1
        %v2835 = vsel %vm2780, %v2832, %v2834
        %v2836 = vrot.slane %v2723, 1
        %v2837 = vsel %vm2780, %v2834, %v2836
        %v2838 = vrot.slane %v2724, 1
        %v2839 = vsel %vm2780, %v2836, %v2838
        %v2840 = vrot.slane %v2725, 1
        %v2841 = vsel %vm2780, %v2838, %v2840
        %v2842 = vrot.slane %v2726, 1
        %v2843 = vsel %vm2780, %v2840, %v2842
        %v2844 = vrot.slane %v2727, 1
        %v2845 = vsel %vm2780, %v2842, %v2844
        %v2846 = vrot.slane %v2728, 1
        %v2847 = vsel %vm2780, %v2844, %v2846
        %v2848 = vrot.slane %v2729, 1
        %v2849 = vsel %vm2780, %v2846, %v2848
        %v2850 = vrot.slane %v2730, 1
        %v2851 = vsel %vm2780, %v2848, %v2850
        %v2852 = vrot.slane %v2731, 1
        %v2853 = vsel %vm2780, %v2850, %v2852
        %v2854 = vrot.slane %v2732, 1
        %v2855 = vsel %vm2780, %v2852, %v2854
        %v2856 = vrot.slane %v2733, 1
        %v2857 = vsel %vm2780, %v2854, %v2856
        %v2858 = vrot.slane %v2734, 1
        %v2859 = vsel %vm2780, %v2856, %v2858
        %vm2900 = vcmask 1045504
        %v2901 = vrot.slane %v2695, 2
        %v2902 = vrot.slane %v2696, 2
        %v2903 = vsel %vm2900, %v2901, %v2902
        %v2904 = vrot.slane %v2697, 2
        %v2905 = vsel %vm2900, %v2902, %v2904
        %v2906 = vrot.slane %v2698, 2
        %v2907 = vsel %vm2900, %v2904, %v2906
        %v2908 = vrot.slane %v2699, 2
        %v2909 = vsel %vm2900, %v2906, %v2908
        %v2910 = vrot.slane %v2700, 2
        %v2911 = vsel %vm2900, %v2908, %v2910
        %v2912 = vrot.slane %v2701, 2
        %v2913 = vsel %vm2900, %v2910, %v2912
        %v2914 = vrot.slane %v2702, 2
        %v2915 = vsel %vm2900, %v2912, %v2914
        %v2916 = vrot.slane %v2703, 2
        %v2917 = vsel %vm2900, %v2914, %v2916
        %v2918 = vrot.slane %v2704, 2
        %v2919 = vsel %vm2900, %v2916, %v2918
        %v2920 = vrot.slane %v2705, 2
        %v2921 = vsel %vm2900, %v2918, %v2920
        %v2922 = vrot.slane %v2706, 2
        %v2923 = vsel %vm2900, %v2920, %v2922
        %v2924 = vrot.slane %v2707, 2
        %v2925 = vsel %vm2900, %v2922, %v2924
        %v2926 = vrot.slane %v2708, 2
        %v2927 = vsel %vm2900, %v2924, %v2926
        %v2928 = vrot.slane %v2709, 2
        %v2929 = vsel %vm2900, %v2926, %v2928
        %v2930 = vrot.slane %v2710, 2
        %v2931 = vsel %vm2900, %v2928, %v2930
        %v2932 = vrot.slane %v2711, 2
        %v2933 = vsel %vm2900, %v2930, %v2932
        %v2934 = vrot.slane %v2712, 2
        %v2935 = vsel %vm2900, %v2932, %v2934
        %v2936 = vrot.slane %v2713, 2
        %v2937 = vsel %vm2900, %v2934, %v2936
        %v2938 = vrot.slane %v2714, 2
        %v2939 = vsel %vm2900, %v2936, %v2938
        %v2940 = vrot.slane %v2715, 2
        %v2941 = vsel %vm2900, %v2938, %v2940
        %v2942 = vrot.slane %v2716, 2
        %v2943 = vsel %vm2900, %v2940, %v2942
        %v2944 = vrot.slane %v2717, 2
        %v2945 = vsel %vm2900, %v2942, %v2944
        %v2946 = vrot.slane %v2718, 2
        %v2947 = vsel %vm2900, %v2944, %v2946
        %v2948 = vrot.slane %v2719, 2
        %v2949 = vsel %vm2900, %v2946, %v2948
        %v2950 = vrot.slane %v2720, 2
        %v2951 = vsel %vm2900, %v2948, %v2950
        %v2952 = vrot.slane %v2721, 2
        %v2953 = vsel %vm2900, %v2950, %v2952
        %v2954 = vrot.slane %v2722, 2
        %v2955 = vsel %vm2900, %v2952, %v2954
        %v2956 = vrot.slane %v2723, 2
        %v2957 = vsel %vm2900, %v2954, %v2956
        %v2958 = vrot.slane %v2724, 2
        %v2959 = vsel %vm2900, %v2956, %v2958
        %v2960 = vrot.slane %v2725, 2
        %v2961 = vsel %vm2900, %v2958, %v2960
        %v2962 = vrot.slane %v2726, 2
        %v2963 = vsel %vm2900, %v2960, %v2962
        %v2964 = vrot.slane %v2727, 2
        %v2965 = vsel %vm2900, %v2962, %v2964
        %v2966 = vrot.slane %v2728, 2
        %v2967 = vsel %vm2900, %v2964, %v2966
        %v2968 = vrot.slane %v2729, 2
        %v2969 = vsel %vm2900, %v2966, %v2968
        %v2970 = vrot.slane %v2730, 2
        %v2971 = vsel %vm2900, %v2968, %v2970
        %v2972 = vrot.slane %v2731, 2
        %v2973 = vsel %vm2900, %v2970, %v2972
        %v2974 = vrot.slane %v2732, 2
        %v2975 = vsel %vm2900, %v2972, %v2974
        %v2976 = vrot.slane %v2733, 2
        %v2977 = vsel %vm2900, %v2974, %v2976
        %v2978 = vrot.slane %v2734, 2
        %v2979 = vsel %vm2900, %v2976, %v2978
        %vm3022 = vcmask 1043456
        %v3023 = vrot.slane %v2697, 4
        %v3024 = vrot.slane %v2698, 4
        %v3025 = vsel %vm3022, %v3023, %v3024
        %v3026 = vrot.slane %v2699, 4
        %v3027 = vsel %vm3022, %v3024, %v3026
        %v3028 = vrot.slane %v2700, 4
        %v3029 = vsel %vm3022, %v3026, %v3028
        %v3030 = vrot.slane %v2701, 4
        %v3031 = vsel %vm3022, %v3028, %v3030
        %v3032 = vrot.slane %v2702, 4
        %v3033 = vsel %vm3022, %v3030, %v3032
        %v3034 = vrot.slane %v2703, 4
        %v3035 = vsel %vm3022, %v3032, %v3034
        %v3036 = vrot.slane %v2704, 4
        %v3037 = vsel %vm3022, %v3034, %v3036
        %v3038 = vrot.slane %v2705, 4
        %v3039 = vsel %vm3022, %v3036, %v3038
        %v3040 = vrot.slane %v2706, 4
        %v3041 = vsel %vm3022, %v3038, %v3040
        %v3042 = vrot.slane %v2707, 4
        %v3043 = vsel %vm3022, %v3040, %v3042
        %v3044 = vrot.slane %v2708, 4
        %v3045 = vsel %vm3022, %v3042, %v3044
        %v3046 = vrot.slane %v2709, 4
        %v3047 = vsel %vm3022, %v3044, %v3046
        %v3048 = vrot.slane %v2710, 4
        %v3049 = vsel %vm3022, %v3046, %v3048
        %v3050 = vrot.slane %v2711, 4
        %v3051 = vsel %vm3022, %v3048, %v3050
        %v3052 = vrot.slane %v2712, 4
        %v3053 = vsel %vm3022, %v3050, %v3052
        %v3054 = vrot.slane %v2713, 4
        %v3055 = vsel %vm3022, %v3052, %v3054
        %v3056 = vrot.slane %v2714, 4
        %v3057 = vsel %vm3022, %v3054, %v3056
        %v3058 = vrot.slane %v2715, 4
        %v3059 = vsel %vm3022, %v3056, %v3058
        %v3060 = vrot.slane %v2716, 4
        %v3061 = vsel %vm3022, %v3058, %v3060
        %v3062 = vrot.slane %v2717, 4
        %v3063 = vsel %vm3022, %v3060, %v3062
        %v3064 = vrot.slane %v2718, 4
        %v3065 = vsel %vm3022, %v3062, %v3064
        %v3066 = vrot.slane %v2719, 4
        %v3067 = vsel %vm3022, %v3064, %v3066
        %v3068 = vrot.slane %v2720, 4
        %v3069 = vsel %vm3022, %v3066, %v3068
        %v3070 = vrot.slane %v2721, 4
        %v3071 = vsel %vm3022, %v3068, %v3070
        %v3072 = vrot.slane %v2722, 4
        %v3073 = vsel %vm3022, %v3070, %v3072
        %v3074 = vrot.slane %v2723, 4
        %v3075 = vsel %vm3022, %v3072, %v3074
        %v3076 = vrot.slane %v2724, 4
        %v3077 = vsel %vm3022, %v3074, %v3076
        %v3078 = vrot.slane %v2725, 4
        %v3079 = vsel %vm3022, %v3076, %v3078
        %v3080 = vrot.slane %v2726, 4
        %v3081 = vsel %vm3022, %v3078, %v3080
        %v3082 = vrot.slane %v2727, 4
        %v3083 = vsel %vm3022, %v3080, %v3082
        %v3084 = vrot.slane %v2728, 4
        %v3085 = vsel %vm3022, %v3082, %v3084
        %v3086 = vrot.slane %v2729, 4
        %v3087 = vsel %vm3022, %v3084, %v3086
        %v3088 = vrot.slane %v2730, 4
        %v3089 = vsel %vm3022, %v3086, %v3088
        %v3090 = vrot.slane %v2731, 4
        %v3091 = vsel %vm3022, %v3088, %v3090
        %v3092 = vrot.slane %v2732, 4
        %v3093 = vsel %vm3022, %v3090, %v3092
        %v3094 = vrot.slane %v2733, 4
        %v3095 = vsel %vm3022, %v3092, %v3094
        %v3096 = vrot.slane %v2734, 4
        %v3097 = vsel %vm3022, %v3094, %v3096
        %v3098 = vrot.slane %v2735, 4
        %v3099 = vsel %vm3022, %v3096, %v3098
        %v3100 = vrot.slane %v2736, 4
        %v3101 = vsel %vm3022, %v3098, %v3100
        %vm3143 = vcmask 1042432
        %v3144 = vrot.slane %v2697, 5
        %v3145 = vrot.slane %v2698, 5
        %v3146 = vsel %vm3143, %v3144, %v3145
        %v3147 = vrot.slane %v2699, 5
        %v3148 = vsel %vm3143, %v3145, %v3147
        %v3149 = vrot.slane %v2700, 5
        %v3150 = vsel %vm3143, %v3147, %v3149
        %v3151 = vrot.slane %v2701, 5
        %v3152 = vsel %vm3143, %v3149, %v3151
        %v3153 = vrot.slane %v2702, 5
        %v3154 = vsel %vm3143, %v3151, %v3153
        %v3155 = vrot.slane %v2703, 5
        %v3156 = vsel %vm3143, %v3153, %v3155
        %v3157 = vrot.slane %v2704, 5
        %v3158 = vsel %vm3143, %v3155, %v3157
        %v3159 = vrot.slane %v2705, 5
        %v3160 = vsel %vm3143, %v3157, %v3159
        %v3161 = vrot.slane %v2706, 5
        %v3162 = vsel %vm3143, %v3159, %v3161
        %v3163 = vrot.slane %v2707, 5
        %v3164 = vsel %vm3143, %v3161, %v3163
        %v3165 = vrot.slane %v2708, 5
        %v3166 = vsel %vm3143, %v3163, %v3165
        %v3167 = vrot.slane %v2709, 5
        %v3168 = vsel %vm3143, %v3165, %v3167
        %v3169 = vrot.slane %v2710, 5
        %v3170 = vsel %vm3143, %v3167, %v3169
        %v3171 = vrot.slane %v2711, 5
        %v3172 = vsel %vm3143, %v3169, %v3171
        %v3173 = vrot.slane %v2712, 5
        %v3174 = vsel %vm3143, %v3171, %v3173
        %v3175 = vrot.slane %v2713, 5
        %v3176 = vsel %vm3143, %v3173, %v3175
        %v3177 = vrot.slane %v2714, 5
        %v3178 = vsel %vm3143, %v3175, %v3177
        %v3179 = vrot.slane %v2715, 5
        %v3180 = vsel %vm3143, %v3177, %v3179
        %v3181 = vrot.slane %v2716, 5
        %v3182 = vsel %vm3143, %v3179, %v3181
        %v3183 = vrot.slane %v2717, 5
        %v3184 = vsel %vm3143, %v3181, %v3183
        %v3185 = vrot.slane %v2718, 5
        %v3186 = vsel %vm3143, %v3183, %v3185
        %v3187 = vrot.slane %v2719, 5
        %v3188 = vsel %vm3143, %v3185, %v3187
        %v3189 = vrot.slane %v2720, 5
        %v3190 = vsel %vm3143, %v3187, %v3189
        %v3191 = vrot.slane %v2721, 5
        %v3192 = vsel %vm3143, %v3189, %v3191
        %v3193 = vrot.slane %v2722, 5
        %v3194 = vsel %vm3143, %v3191, %v3193
        %v3195 = vrot.slane %v2723, 5
        %v3196 = vsel %vm3143, %v3193, %v3195
        %v3197 = vrot.slane %v2724, 5
        %v3198 = vsel %vm3143, %v3195, %v3197
        %v3199 = vrot.slane %v2725, 5
        %v3200 = vsel %vm3143, %v3197, %v3199
        %v3201 = vrot.slane %v2726, 5
        %v3202 = vsel %vm3143, %v3199, %v3201
        %v3203 = vrot.slane %v2727, 5
        %v3204 = vsel %vm3143, %v3201, %v3203
        %v3205 = vrot.slane %v2728, 5
        %v3206 = vsel %vm3143, %v3203, %v3205
        %v3207 = vrot.slane %v2729, 5
        %v3208 = vsel %vm3143, %v3205, %v3207
        %v3209 = vrot.slane %v2730, 5
        %v3210 = vsel %vm3143, %v3207, %v3209
        %v3211 = vrot.slane %v2731, 5
        %v3212 = vsel %vm3143, %v3209, %v3211
        %v3213 = vrot.slane %v2732, 5
        %v3214 = vsel %vm3143, %v3211, %v3213
        %v3215 = vrot.slane %v2733, 5
        %v3216 = vsel %vm3143, %v3213, %v3215
        %v3217 = vrot.slane %v2734, 5
        %v3218 = vsel %vm3143, %v3215, %v3217
        %v3219 = vrot.slane %v2735, 5
        %v3220 = vsel %vm3143, %v3217, %v3219
        %v3221 = vrot.slane %v2736, 5
        %v3222 = vsel %vm3143, %v3219, %v3221
        %v3223 = vrot.slane %v2737, 5
        %v3224 = vsel %vm3143, %v3221, %v3223
        %vm3265 = vcmask 1041408
        %v3266 = vrot.slane %v2697, 6
        %v3267 = vrot.slane %v2698, 6
        %v3268 = vsel %vm3265, %v3266, %v3267
        %v3269 = vrot.slane %v2699, 6
        %v3270 = vsel %vm3265, %v3267, %v3269
        %v3271 = vrot.slane %v2700, 6
        %v3272 = vsel %vm3265, %v3269, %v3271
        %v3273 = vrot.slane %v2701, 6
        %v3274 = vsel %vm3265, %v3271, %v3273
        %v3275 = vrot.slane %v2702, 6
        %v3276 = vsel %vm3265, %v3273, %v3275
        %v3277 = vrot.slane %v2703, 6
        %v3278 = vsel %vm3265, %v3275, %v3277
        %v3279 = vrot.slane %v2704, 6
        %v3280 = vsel %vm3265, %v3277, %v3279
        %v3281 = vrot.slane %v2705, 6
        %v3282 = vsel %vm3265, %v3279, %v3281
        %v3283 = vrot.slane %v2706, 6
        %v3284 = vsel %vm3265, %v3281, %v3283
        %v3285 = vrot.slane %v2707, 6
        %v3286 = vsel %vm3265, %v3283, %v3285
        %v3287 = vrot.slane %v2708, 6
        %v3288 = vsel %vm3265, %v3285, %v3287
        %v3289 = vrot.slane %v2709, 6
        %v3290 = vsel %vm3265, %v3287, %v3289
        %v3291 = vrot.slane %v2710, 6
        %v3292 = vsel %vm3265, %v3289, %v3291
        %v3293 = vrot.slane %v2711, 6
        %v3294 = vsel %vm3265, %v3291, %v3293
        %v3295 = vrot.slane %v2712, 6
        %v3296 = vsel %vm3265, %v3293, %v3295
        %v3297 = vrot.slane %v2713, 6
        %v3298 = vsel %vm3265, %v3295, %v3297
        %v3299 = vrot.slane %v2714, 6
        %v3300 = vsel %vm3265, %v3297, %v3299
        %v3301 = vrot.slane %v2715, 6
        %v3302 = vsel %vm3265, %v3299, %v3301
        %v3303 = vrot.slane %v2716, 6
        %v3304 = vsel %vm3265, %v3301, %v3303
        %v3305 = vrot.slane %v2717, 6
        %v3306 = vsel %vm3265, %v3303, %v3305
        %v3307 = vrot.slane %v2718, 6
        %v3308 = vsel %vm3265, %v3305, %v3307
        %v3309 = vrot.slane %v2719, 6
        %v3310 = vsel %vm3265, %v3307, %v3309
        %v3311 = vrot.slane %v2720, 6
        %v3312 = vsel %vm3265, %v3309, %v3311
        %v3313 = vrot.slane %v2721, 6
        %v3314 = vsel %vm3265, %v3311, %v3313
        %v3315 = vrot.slane %v2722, 6
        %v3316 = vsel %vm3265, %v3313, %v3315
        %v3317 = vrot.slane %v2723, 6
        %v3318 = vsel %vm3265, %v3315, %v3317
        %v3319 = vrot.slane %v2724, 6
        %v3320 = vsel %vm3265, %v3317, %v3319
        %v3321 = vrot.slane %v2725, 6
        %v3322 = vsel %vm3265, %v3319, %v3321
        %v3323 = vrot.slane %v2726, 6
        %v3324 = vsel %vm3265, %v3321, %v3323
        %v3325 = vrot.slane %v2727, 6
        %v3326 = vsel %vm3265, %v3323, %v3325
        %v3327 = vrot.slane %v2728, 6
        %v3328 = vsel %vm3265, %v3325, %v3327
        %v3329 = vrot.slane %v2729, 6
        %v3330 = vsel %vm3265, %v3327, %v3329
        %v3331 = vrot.slane %v2730, 6
        %v3332 = vsel %vm3265, %v3329, %v3331
        %v3333 = vrot.slane %v2731, 6
        %v3334 = vsel %vm3265, %v3331, %v3333
        %v3335 = vrot.slane %v2732, 6
        %v3336 = vsel %vm3265, %v3333, %v3335
        %v3337 = vrot.slane %v2733, 6
        %v3338 = vsel %vm3265, %v3335, %v3337
        %v3339 = vrot.slane %v2734, 6
        %v3340 = vsel %vm3265, %v3337, %v3339
        %v3341 = vrot.slane %v2735, 6
        %v3342 = vsel %vm3265, %v3339, %v3341
        %v3343 = vrot.slane %v2736, 6
        %v3344 = vsel %vm3265, %v3341, %v3343
        %v3345 = vrot.slane %v2737, 6
        %v3346 = vsel %vm3265, %v3343, %v3345
        %v3389 = vrot.slane %v2735, 1
        %v3390 = vsel %vm2780, %v2858, %v3389
        %v3391 = vrot.slane %v2736, 1
        %v3392 = vsel %vm2780, %v3389, %v3391
        %v3393 = vrot.slane %v2737, 1
        %v3394 = vsel %vm2780, %v3391, %v3393
        %v3395 = vrot.slane %v2738, 1
        %v3396 = vsel %vm2780, %v3393, %v3395
        %v3397 = vrot.slane %v2739, 1
        %v3398 = vsel %vm2780, %v3395, %v3397
        %v3405 = vrot.slane %v2735, 2
        %v3406 = vsel %vm2900, %v2978, %v3405
        %v3407 = vrot.slane %v2736, 2
        %v3408 = vsel %vm2900, %v3405, %v3407
        %v3409 = vrot.slane %v2737, 2
        %v3410 = vsel %vm2900, %v3407, %v3409
        %v3411 = vrot.slane %v2738, 2
        %v3412 = vsel %vm2900, %v3409, %v3411
        %v3413 = vrot.slane %v2739, 2
        %v3414 = vsel %vm2900, %v3411, %v3413
        %v3421 = vld [vmem:[#allocation6] sm:$0xff]
        %v3422 = vld [vmem:[#allocation6 + $0x8] sm:$0xff]
        %v3423 = vld [vmem:[#allocation6 + $0x10] sm:$0xff]
        %v3424 = vld [vmem:[#allocation6 + $0x18] sm:$0xff]
        %v3425 = vld [vmem:[#allocation6 + $0x20] sm:$0xff]
        %v3426 = vld [vmem:[#allocation6 + $0x28] sm:$0xff]
        %v3427 = vld [vmem:[#allocation6 + $0x30] sm:$0xff]
        %v3428 = vld [vmem:[#allocation6 + $0x38] sm:$0xff]
        %v3429 = vld [vmem:[#allocation6 + $0x40] sm:$0xff]
        %v3430 = vld [vmem:[#allocation6 + $0x48] sm:$0xff]
        %v3431 = vld [vmem:[#allocation6 + $0x50] sm:$0xff]
        %v3432 = vld [vmem:[#allocation6 + $0x58] sm:$0xff]
        %v3433 = vld [vmem:[#allocation6 + $0x60] sm:$0xff]
        %v3434 = vld [vmem:[#allocation6 + $0x68] sm:$0xff]
        %v3435 = vld [vmem:[#allocation6 + $0x70] sm:$0xff]
        %v3436 = vld [vmem:[#allocation6 + $0x78] sm:$0xff]
        %v3437 = vld [vmem:[#allocation6 + $0x80] sm:$0xff]
        %v3438 = vld [vmem:[#allocation6 + $0x88] sm:$0xff]
        %v3439 = vld [vmem:[#allocation6 + $0x90] sm:$0xff]
        %v3440 = vld [vmem:[#allocation6 + $0x98] sm:$0xff]
        %v3441 = vld [vmem:[#allocation6 + $0xa0] sm:$0xff]
        %v3442 = vld [vmem:[#allocation6 + $0xa8] sm:$0xff]
        %v3443 = vld [vmem:[#allocation6 + $0xb0] sm:$0xff]
        %v3444 = vld [vmem:[#allocation6 + $0xb8] sm:$0xff]
        %v3445 = vld [vmem:[#allocation6 + $0xc0] sm:$0xff]
        %v3446 = vld [vmem:[#allocation6 + $0xc8] sm:$0xff]
        %v3447 = vld [vmem:[#allocation6 + $0xd0] sm:$0xff]
        %v3448 = vld [vmem:[#allocation6 + $0xd8] sm:$0xff]
        %v3449 = vld [vmem:[#allocation6 + $0xe0] sm:$0xff]
        %v3450 = vld [vmem:[#allocation6 + $0xe8] sm:$0xff]
        %v3451 = vld [vmem:[#allocation6 + $0xf0] sm:$0xff]
        %v3452 = vld [vmem:[#allocation6 + $0xf8] sm:$0xff]
        %v3453 = vld [vmem:[#allocation6 + $0x100] sm:$0xff]
        %v3454 = vld [vmem:[#allocation6 + $0x108] sm:$0xff]
        %v3455 = vld [vmem:[#allocation6 + $0x110] sm:$0xff]
        %v3456 = vld [vmem:[#allocation6 + $0x118] sm:$0xff]
        %v3457 = vld [vmem:[#allocation6 + $0x120] sm:$0xff]
        %v3458 = vld [vmem:[#allocation6 + $0x128] sm:$0xff]
        %v3459 = vld [vmem:[#allocation6 + $0x130] sm:$0xff]
        %v3460 = vld [vmem:[#allocation6 + $0x138] sm:$0xff]
        %v3461 = vld [vmem:[#allocation6 + $0x140] sm:$0xff]
        %v3462 = vld [vmem:[#allocation6 + $0x148] sm:$0xff]
        %v3463 = vld [vmem:[#allocation6 + $0x150] sm:$0xff]
        %v3464 = vld [vmem:[#allocation6 + $0x158] sm:$0xff]
        %v3465 = vld [vmem:[#allocation6 + $0x160] sm:$0xff]
        %v3466 = vld [vmem:[#allocation6 + $0x168] sm:$0xff]
        %v3467 = vld [vmem:[#allocation6 + $0x170] sm:$0xff]
        %v3468 = vld [vmem:[#allocation6 + $0x178] sm:$0xff]
        %v3469 = vld [vmem:[#allocation6 + $0x180] sm:$0xff]
        %v3470 = vld [vmem:[#allocation6 + $0x188] sm:$0xff]
        %v3471 = vld [vmem:[#allocation6 + $0x190] sm:$0xff]
        %v3472 = vld [vmem:[#allocation6 + $0x198] sm:$0xff]
        %v3473 = vld [vmem:[#allocation6 + $0x1a0] sm:$0xff]
        %v3474 = vld [vmem:[#allocation6 + $0x1a8] sm:$0xff]
        %v3475 = vld [vmem:[#allocation6 + $0x1b0] sm:$0xff]
        %v3476 = vld [vmem:[#allocation6 + $0x1b8] sm:$0xff]
        %v3477 = vld [vmem:[#allocation6 + $0x1c0] sm:$0xff]
        %v3478 = vld [vmem:[#allocation6 + $0x1c8] sm:$0xff]
        %v3479 = vld [vmem:[#allocation6 + $0x1d0] sm:$0xff]
        %v3480 = vld [vmem:[#allocation6 + $0x1d8] sm:$0xff]
        %v3481 = vld [vmem:[#allocation6 + $0x1e0] sm:$0xff]
        %v3482 = vld [vmem:[#allocation6 + $0x1e8] sm:$0xff]
        %v3483 = vld [vmem:[#allocation6 + $0x1f0] sm:$0xff]
        %v3484 = vld [vmem:[#allocation6 + $0x1f8] sm:$0xff]
        %v3485 = vld [vmem:[#allocation6 + $0x200] sm:$0xff]
        %v3486 = vld [vmem:[#allocation6 + $0x208] sm:$0xff]
        %v3487 = vld [vmem:[#allocation6 + $0x210] sm:$0xff]
        %v3488 = vld [vmem:[#allocation6 + $0x218] sm:$0xff]
        %v3489 = vld [vmem:[#allocation6 + $0x220] sm:$0xff]
        %v3490 = vld [vmem:[#allocation6 + $0x228] sm:$0xff]
        %v3491 = vld [vmem:[#allocation6 + $0x230] sm:$0xff]
        %v3492 = vld [vmem:[#allocation6 + $0x238] sm:$0xff]
        %v3493 = vld [vmem:[#allocation6 + $0x240] sm:$0xff]
        %v3494 = vld [vmem:[#allocation6 + $0x248] sm:$0xff]
        %v3495 = vld [vmem:[#allocation6 + $0x250] sm:$0xff]
        %v3496 = vld [vmem:[#allocation6 + $0x258] sm:$0xff]
        %v3497 = vld [vmem:[#allocation6 + $0x260] sm:$0xff]
        %v3498 = vld [vmem:[#allocation6 + $0x268] sm:$0xff]
        %v3499 = vld [vmem:[#allocation6 + $0x270] sm:$0xff]
        %v3500 = vld [vmem:[#allocation6 + $0x278] sm:$0xff]
        %v3501 = vld [vmem:[#allocation6 + $0x280] sm:$0xff]
        %v3502 = vld [vmem:[#allocation6 + $0x288] sm:$0xff]
        %v3503 = vld [vmem:[#allocation6 + $0x290] sm:$0xff]
        %v3504 = vld [vmem:[#allocation6 + $0x298] sm:$0xff]
        %v3505 = vld [vmem:[#allocation6 + $0x2a0] sm:$0xff]
        %v3506 = vld [vmem:[#allocation6 + $0x2a8] sm:$0xff]
        %v3507 = vld [vmem:[#allocation6 + $0x2b0] sm:$0xff]
        %v3508 = vld [vmem:[#allocation6 + $0x2b8] sm:$0xff]
        %v3509 = vld [vmem:[#allocation6 + $0x2c0] sm:$0xff]
        %v3510 = vld [vmem:[#allocation6 + $0x2c8] sm:$0xff]
        %v3511 = vld [vmem:[#allocation6 + $0x2d0] sm:$0xff]
        %v3512 = vld [vmem:[#allocation6 + $0x2d8] sm:$0xff]
        %v3513 = vld [vmem:[#allocation6 + $0x2e0] sm:$0xff]
        %v3514 = vld [vmem:[#allocation6 + $0x2e8] sm:$0xff]
        %v3515 = vld [vmem:[#allocation6 + $0x2f0] sm:$0xff]
        %v3516 = vld [vmem:[#allocation6 + $0x2f8] sm:$0xff]
        %v3517 = vld [vmem:[#allocation6 + $0x300] sm:$0xff]
        %v3518 = vld [vmem:[#allocation6 + $0x308] sm:$0xff]
        %v3519 = vld [vmem:[#allocation6 + $0x310] sm:$0xff]
        %v3520 = vld [vmem:[#allocation6 + $0x318] sm:$0xff]
        %v3521 = vld [vmem:[#allocation6 + $0x320] sm:$0xff]
        %v3522 = vld [vmem:[#allocation6 + $0x328] sm:$0xff]
        %v3523 = vld [vmem:[#allocation6 + $0x330] sm:$0xff]
        %v3524 = vld [vmem:[#allocation6 + $0x338] sm:$0xff]
        %v3525 = vld [vmem:[#allocation6 + $0x340] sm:$0xff]
        %v3526 = vld [vmem:[#allocation6 + $0x348] sm:$0xff]
        %v3527 = vld [vmem:[#allocation6 + $0x350] sm:$0xff]
        %v3528 = vld [vmem:[#allocation6 + $0x358] sm:$0xff]
        %v3529 = vld [vmem:[#allocation6 + $0x360] sm:$0xff]
        %v3530 = vld [vmem:[#allocation6 + $0x368] sm:$0xff]
        %v3531 = vld [vmem:[#allocation6 + $0x370] sm:$0xff]
        %v3532 = vld [vmem:[#allocation6 + $0x378] sm:$0xff]
        %v3533 = vld [vmem:[#allocation6 + $0x380] sm:$0xff]
        %v3534 = vld [vmem:[#allocation6 + $0x388] sm:$0xff]
        %v3535 = vld [vmem:[#allocation6 + $0x390] sm:$0xff]
        %v3536 = vld [vmem:[#allocation6 + $0x398] sm:$0xff]
        %v3537 = vld [vmem:[#allocation6 + $0x3a0] sm:$0xff]
        %v3538 = vld [vmem:[#allocation6 + $0x3a8] sm:$0xff]
        %v3539 = vld [vmem:[#allocation6 + $0x3b0] sm:$0xff]
        %v3540 = vld [vmem:[#allocation6 + $0x3b8] sm:$0xff]
        %v3541 = vld [vmem:[#allocation6 + $0x3c0] sm:$0xff]
        %v3542 = vld [vmem:[#allocation6 + $0x3c8] sm:$0xff]
        %v3543 = vld [vmem:[#allocation6 + $0x3d0] sm:$0xff]
        %v3544 = vld [vmem:[#allocation6 + $0x3d8] sm:$0xff]
        %v3545 = vld [vmem:[#allocation6 + $0x3e0] sm:$0xff]
        %v3546 = vld [vmem:[#allocation6 + $0x3e8] sm:$0xff]
        %v3547 = vld [vmem:[#allocation6 + $0x3f0] sm:$0xff]
        %v3548 = vld [vmem:[#allocation6 + $0x3f8] sm:$0xff]
        %v3549 = vld [vmem:[#allocation6 + $0x400] sm:$0xff]
        %v3550 = vld [vmem:[#allocation6 + $0x408] sm:$0xff]
        %v3551 = vld [vmem:[#allocation6 + $0x410] sm:$0xff]
        %v3552 = vld [vmem:[#allocation6 + $0x418] sm:$0xff]
        %v3553 = vld [vmem:[#allocation6 + $0x420] sm:$0xff]
        %v3554 = vld [vmem:[#allocation6 + $0x428] sm:$0xff]
        %v3555 = vld [vmem:[#allocation6 + $0x430] sm:$0xff]
        %v3556 = vld [vmem:[#allocation6 + $0x438] sm:$0xff]
        %v3557 = vld [vmem:[#allocation6 + $0x440] sm:$0xff]
        %v3558 = vld [vmem:[#allocation6 + $0x448] sm:$0xff]
        %v3559 = vld [vmem:[#allocation6 + $0x450] sm:$0xff]
        %v3560 = vld [vmem:[#allocation6 + $0x458] sm:$0xff]
        %v3561 = vld [vmem:[#allocation6 + $0x460] sm:$0xff]
        %v3562 = vld [vmem:[#allocation6 + $0x468] sm:$0xff]
        %v3563 = vld [vmem:[#allocation6 + $0x470] sm:$0xff]
        %v3564 = vld [vmem:[#allocation6 + $0x478] sm:$0xff]
        %3565 = vmatprep.subr.mxu0 0.0
        %3566 = vmatpush1.msra.mxu0 %v3436
        %3567 = vmatprep.subr.mxu0 0.0
        %3568 = vmatpush1.msra.mxu0 %v3435
        %3569 = vmatprep.subr.mxu0 0.0
        %3570 = vmatpush1.msra.mxu0 %v3434
        %3571 = vmatprep.subr.mxu0 0.0
        %3572 = vmatpush1.msra.mxu0 %v3433
        %3573 = vmatprep.subr.mxu0 0.0
        %3574 = vmatpush1.msra.mxu0 %v3432
        %3575 = vmatprep.subr.mxu0 0.0
        %3576 = vmatpush1.msra.mxu0 %v3431
        %3577 = vmatprep.subr.mxu0 0.0
        %3578 = vmatpush1.msra.mxu0 %v3430
        %3579 = vmatprep.subr.mxu0 0.0
        %3580 = vmatpush1.msra.mxu0 %v3429
        %3581 = vmatprep.subr.mxu0 0.0
        %3582 = vmatpush1.msra.mxu0 %v3428
        %3583 = vmatprep.subr.mxu0 0.0
        %3584 = vmatpush1.msra.mxu0 %v3427
        %3585 = vmatprep.subr.mxu0 0.0
        %3586 = vmatpush1.msra.mxu0 %v3426
        %3587 = vmatprep.subr.mxu0 0.0
        %3588 = vmatpush1.msra.mxu0 %v3425
        %3589 = vmatprep.subr.mxu0 0.0
        %3590 = vmatpush1.msra.mxu0 %v3424
        %3591 = vmatprep.subr.mxu0 0.0
        %3592 = vmatpush1.msra.mxu0 %v3423
        %3593 = vmatprep.subr.mxu0 0.0
        %3594 = vmatpush1.msra.mxu0 %v3422
        %3595 = vmatprep.subr.mxu0 0.0
        %3596 = vmatpush1.msra.mxu0 %v3421
        %3597 = vmatprep.subr.mxu0 0.0
        %3598 = vmatpush2.msra.mxu0 %v3452
        %3599 = vmatprep.subr.mxu0 0.0
        %3600 = vmatpush2.msra.mxu0 %v3451
        %3601 = vmatprep.subr.mxu0 0.0
        %3602 = vmatpush2.msra.mxu0 %v3450
        %3603 = vmatprep.subr.mxu0 0.0
        %3604 = vmatpush2.msra.mxu0 %v3449
        %3605 = vmatprep.subr.mxu0 0.0
        %3606 = vmatpush2.msra.mxu0 %v3448
        %3607 = vmatprep.subr.mxu0 0.0
        %3608 = vmatpush2.msra.mxu0 %v3447
        %3609 = vmatprep.subr.mxu0 0.0
        %3610 = vmatpush2.msra.mxu0 %v3446
        %3611 = vmatprep.subr.mxu0 0.0
        %3612 = vmatpush2.msra.mxu0 %v3445
        %3613 = vmatprep.subr.mxu0 0.0
        %3614 = vmatpush2.msra.mxu0 %v3444
        %3615 = vmatprep.subr.mxu0 0.0
        %3616 = vmatpush2.msra.mxu0 %v3443
        %3617 = vmatprep.subr.mxu0 0.0
        %3618 = vmatpush2.msra.mxu0 %v3442
        %3619 = vmatprep.subr.mxu0 0.0
        %3620 = vmatpush2.msra.mxu0 %v3441
        %3621 = vmatprep.subr.mxu0 0.0
        %3622 = vmatpush2.msra.mxu0 %v3440
        %3623 = vmatprep.subr.mxu0 0.0
        %3624 = vmatpush2.msra.mxu0 %v3439
        %3625 = vmatprep.subr.mxu0 0.0
        %3626 = vmatpush2.msra.mxu0 %v3438
        %3627 = vmatprep.subr.mxu0 0.0
        %3628 = vmatpush2.msra.mxu0 %v3437
        %3629 = vmatprep.mubr.f32.mxu0 %v2783
        %3630 = vmatmul.mubr.f32.gmra.mxu0 %v2695
        %v3631 = vpop.f32.mrf.mxu0
        %v3632 = vadd.f32 0.0, %v3631
        %v3633 = vpop.f32.mrf.mxu0
        %3634 = vmatprep.mubr.f32.mxu0 %v2785
        %3635 = vmatmul.mubr.f32.gmra.mxu0 %v2696
        %v3636 = vpop.f32.mrf.mxu0
        %v3637 = vadd.f32 0.0, %v3636
        %v3638 = vpop.f32.mrf.mxu0
        %3639 = vmatprep.mubr.f32.mxu0 %v2787
        %3640 = vmatmul.mubr.f32.gmra.mxu0 %v2697
        %v3641 = vpop.f32.mrf.mxu0
        %v3642 = vadd.f32 0.0, %v3641
        %v3643 = vpop.f32.mrf.mxu0
        %3644 = vmatprep.mubr.f32.mxu0 %v2789
        %3645 = vmatmul.mubr.f32.gmra.mxu0 %v2698
        %v3646 = vpop.f32.mrf.mxu0
        %v3647 = vadd.f32 0.0, %v3646
        %v3648 = vpop.f32.mrf.mxu0
        %3649 = vmatprep.mubr.f32.mxu0 %v2791
        %3650 = vmatmul.mubr.f32.gmra.mxu0 %v2699
        %v3651 = vpop.f32.mrf.mxu0
        %v3652 = vadd.f32 0.0, %v3651
        %v3653 = vpop.f32.mrf.mxu0
        %3654 = vmatprep.mubr.f32.mxu0 %v2793
        %3655 = vmatmul.mubr.f32.gmra.mxu0 %v2700
        %v3656 = vpop.f32.mrf.mxu0
        %v3657 = vadd.f32 0.0, %v3656
        %v3658 = vpop.f32.mrf.mxu0
        %3659 = vmatprep.mubr.f32.mxu0 %v2795
        %3660 = vmatmul.mubr.f32.gmra.mxu0 %v2701
        %v3661 = vpop.f32.mrf.mxu0
        %v3662 = vadd.f32 0.0, %v3661
        %v3663 = vpop.f32.mrf.mxu0
        %3664 = vmatprep.mubr.f32.mxu0 %v2797
        %3665 = vmatmul.mubr.f32.gmra.mxu0 %v2702
        %v3666 = vpop.f32.mrf.mxu0
        %v3667 = vadd.f32 0.0, %v3666
        %v3668 = vpop.f32.mrf.mxu0
        %3669 = vmatprep.mubr.f32.mxu0 %v2799
        %3670 = vmatmul.mubr.f32.gmra.mxu0 %v2703
        %v3671 = vpop.f32.mrf.mxu0
        %v3672 = vadd.f32 0.0, %v3671
        %v3673 = vpop.f32.mrf.mxu0
        %3674 = vmatprep.mubr.f32.mxu0 %v2801
        %3675 = vmatmul.mubr.f32.gmra.mxu0 %v2704
        %v3676 = vpop.f32.mrf.mxu0
        %v3677 = vadd.f32 0.0, %v3676
        %v3678 = vpop.f32.mrf.mxu0
        %3679 = vmatprep.mubr.f32.mxu0 %v2803
        %3680 = vmatmul.mubr.f32.gmra.mxu0 %v2705
        %v3681 = vpop.f32.mrf.mxu0
        %v3682 = vadd.f32 0.0, %v3681
        %v3683 = vpop.f32.mrf.mxu0
        %3684 = vmatprep.mubr.f32.mxu0 %v2805
        %3685 = vmatmul.mubr.f32.gmra.mxu0 %v2706
        %v3686 = vpop.f32.mrf.mxu0
        %v3687 = vadd.f32 0.0, %v3686
        %v3688 = vpop.f32.mrf.mxu0
        %3689 = vmatprep.mubr.f32.mxu0 %v2807
        %3690 = vmatmul.mubr.f32.gmra.mxu0 %v2707
        %v3691 = vpop.f32.mrf.mxu0
        %v3692 = vadd.f32 0.0, %v3691
        %v3693 = vpop.f32.mrf.mxu0
        %3694 = vmatprep.mubr.f32.mxu0 %v2809
        %3695 = vmatmul.mubr.f32.gmra.mxu0 %v2708
        %v3696 = vpop.f32.mrf.mxu0
        %v3697 = vadd.f32 0.0, %v3696
        %v3698 = vpop.f32.mrf.mxu0
        %3699 = vmatprep.mubr.f32.mxu0 %v2811
        %3700 = vmatmul.mubr.f32.gmra.mxu0 %v2709
        %v3701 = vpop.f32.mrf.mxu0
        %v3702 = vadd.f32 0.0, %v3701
        %v3703 = vpop.f32.mrf.mxu0
        %3704 = vmatprep.mubr.f32.mxu0 %v2813
        %3705 = vmatmul.mubr.f32.gmra.mxu0 %v2710
        %v3706 = vpop.f32.mrf.mxu0
        %v3707 = vadd.f32 0.0, %v3706
        %v3708 = vpop.f32.mrf.mxu0
        %3709 = vmatprep.mubr.f32.mxu0 %v2815
        %3710 = vmatmul.mubr.f32.gmra.mxu0 %v2711
        %v3711 = vpop.f32.mrf.mxu0
        %v3712 = vadd.f32 0.0, %v3711
        %v3713 = vpop.f32.mrf.mxu0
        %3714 = vmatprep.mubr.f32.mxu0 %v2817
        %3715 = vmatmul.mubr.f32.gmra.mxu0 %v2712
        %v3716 = vpop.f32.mrf.mxu0
        %v3717 = vadd.f32 0.0, %v3716
        %v3718 = vpop.f32.mrf.mxu0
        %3719 = vmatprep.mubr.f32.mxu0 %v2819
        %3720 = vmatmul.mubr.f32.gmra.mxu0 %v2713
        %v3721 = vpop.f32.mrf.mxu0
        %v3722 = vadd.f32 0.0, %v3721
        %v3723 = vpop.f32.mrf.mxu0
        %3724 = vmatprep.mubr.f32.mxu0 %v2821
        %3725 = vmatmul.mubr.f32.gmra.mxu0 %v2714
        %v3726 = vpop.f32.mrf.mxu0
        %v3727 = vadd.f32 0.0, %v3726
        %v3728 = vpop.f32.mrf.mxu0
        %3729 = vmatprep.mubr.f32.mxu0 %v2823
        %3730 = vmatmul.mubr.f32.gmra.mxu0 %v2715
        %v3731 = vpop.f32.mrf.mxu0
        %v3732 = vadd.f32 0.0, %v3731
        %v3733 = vpop.f32.mrf.mxu0
        %3734 = vmatprep.mubr.f32.mxu0 %v2825
        %3735 = vmatmul.mubr.f32.gmra.mxu0 %v2716
        %v3736 = vpop.f32.mrf.mxu0
        %v3737 = vadd.f32 0.0, %v3736
        %v3738 = vpop.f32.mrf.mxu0
        %3739 = vmatprep.mubr.f32.mxu0 %v2827
        %3740 = vmatmul.mubr.f32.gmra.mxu0 %v2717
        %v3741 = vpop.f32.mrf.mxu0
        %v3742 = vadd.f32 0.0, %v3741
        %v3743 = vpop.f32.mrf.mxu0
        %3744 = vmatprep.mubr.f32.mxu0 %v2829
        %3745 = vmatmul.mubr.f32.gmra.mxu0 %v2718
        %v3746 = vpop.f32.mrf.mxu0
        %v3747 = vadd.f32 0.0, %v3746
        %v3748 = vpop.f32.mrf.mxu0
        %3749 = vmatprep.mubr.f32.mxu0 %v2831
        %3750 = vmatmul.mubr.f32.gmra.mxu0 %v2719
        %v3751 = vpop.f32.mrf.mxu0
        %v3752 = vadd.f32 0.0, %v3751
        %v3753 = vpop.f32.mrf.mxu0
        %3754 = vmatprep.mubr.f32.mxu0 %v2833
        %3755 = vmatmul.mubr.f32.gmra.mxu0 %v2720
        %v3756 = vpop.f32.mrf.mxu0
        %v3757 = vadd.f32 0.0, %v3756
        %v3758 = vpop.f32.mrf.mxu0
        %3759 = vmatprep.mubr.f32.mxu0 %v2835
        %3760 = vmatmul.mubr.f32.gmra.mxu0 %v2721
        %v3761 = vpop.f32.mrf.mxu0
        %v3762 = vadd.f32 0.0, %v3761
        %v3763 = vpop.f32.mrf.mxu0
        %3764 = vmatprep.mubr.f32.mxu0 %v2837
        %3765 = vmatmul.mubr.f32.gmra.mxu0 %v2722
        %v3766 = vpop.f32.mrf.mxu0
        %v3767 = vadd.f32 0.0, %v3766
        %v3768 = vpop.f32.mrf.mxu0
        %3769 = vmatprep.mubr.f32.mxu0 %v2839
        %3770 = vmatmul.mubr.f32.gmra.mxu0 %v2723
        %v3771 = vpop.f32.mrf.mxu0
        %v3772 = vadd.f32 0.0, %v3771
        %v3773 = vpop.f32.mrf.mxu0
        %3774 = vmatprep.mubr.f32.mxu0 %v2841
        %3775 = vmatmul.mubr.f32.gmra.mxu0 %v2724
        %v3776 = vpop.f32.mrf.mxu0
        %v3777 = vadd.f32 0.0, %v3776
        %v3778 = vpop.f32.mrf.mxu0
        %3779 = vmatprep.mubr.f32.mxu0 %v2843
        %3780 = vmatmul.mubr.f32.gmra.mxu0 %v2725
        %v3781 = vpop.f32.mrf.mxu0
        %v3782 = vadd.f32 0.0, %v3781
        %v3783 = vpop.f32.mrf.mxu0
        %3784 = vmatprep.mubr.f32.mxu0 %v2845
        %3785 = vmatmul.mubr.f32.gmra.mxu0 %v2726
        %v3786 = vpop.f32.mrf.mxu0
        %v3787 = vadd.f32 0.0, %v3786
        %v3788 = vpop.f32.mrf.mxu0
        %3789 = vmatprep.mubr.f32.mxu0 %v2847
        %3790 = vmatmul.mubr.f32.gmra.mxu0 %v2727
        %v3791 = vpop.f32.mrf.mxu0
        %v3792 = vadd.f32 0.0, %v3791
        %v3793 = vpop.f32.mrf.mxu0
        %3794 = vmatprep.mubr.f32.mxu0 %v2849
        %3795 = vmatmul.mubr.f32.gmra.mxu0 %v2728
        %v3796 = vpop.f32.mrf.mxu0
        %v3797 = vadd.f32 0.0, %v3796
        %v3798 = vpop.f32.mrf.mxu0
        %3799 = vmatprep.mubr.f32.mxu0 %v2851
        %3800 = vmatmul.mubr.f32.gmra.mxu0 %v2729
        %v3801 = vpop.f32.mrf.mxu0
        %v3802 = vadd.f32 0.0, %v3801
        %v3803 = vpop.f32.mrf.mxu0
        %3804 = vmatprep.mubr.f32.mxu0 %v2853
        %3805 = vmatmul.mubr.f32.gmra.mxu0 %v2730
        %v3806 = vpop.f32.mrf.mxu0
        %v3807 = vadd.f32 0.0, %v3806
        %v3808 = vpop.f32.mrf.mxu0
        %3809 = vmatprep.mubr.f32.mxu0 %v2855
        %3810 = vmatmul.mubr.f32.gmra.mxu0 %v2731
        %v3811 = vpop.f32.mrf.mxu0
        %v3812 = vadd.f32 0.0, %v3811
        %v3813 = vpop.f32.mrf.mxu0
        %3814 = vmatprep.mubr.f32.mxu0 %v2857
        %3815 = vmatmul.mubr.f32.gmra.mxu0 %v2732
        %v3816 = vpop.f32.mrf.mxu0
        %v3817 = vadd.f32 0.0, %v3816
        %v3818 = vpop.f32.mrf.mxu0
        %3819 = vmatprep.mubr.f32.mxu0 %v2859
        %3820 = vmatmul.mubr.f32.gmra.mxu0 %v2733
        %v3821 = vpop.f32.mrf.mxu0
        %v3822 = vadd.f32 0.0, %v3821
        %v3823 = vpop.f32.mrf.mxu0
        %3824 = vmatprep.mubr.f32.mxu0 %v2858
        %3825 = vmatmul.mubr.f32.gmra.mxu0 %v2734
        %v3826 = vpop.f32.mrf.mxu0
        %v3827 = vadd.f32 0.0, %v3826
        %v3828 = vpop.f32.mrf.mxu0
        %3829 = vdwg.mxu0
        %3830 = vmatprep.subr.mxu0 0.0
        %3831 = vmatpush1.msra.mxu0 %v3468
        %3832 = vmatprep.subr.mxu0 0.0
        %3833 = vmatpush1.msra.mxu0 %v3467
        %3834 = vmatprep.subr.mxu0 0.0
        %3835 = vmatpush1.msra.mxu0 %v3466
        %3836 = vmatprep.subr.mxu0 0.0
        %3837 = vmatpush1.msra.mxu0 %v3465
        %3838 = vmatprep.subr.mxu0 0.0
        %3839 = vmatpush1.msra.mxu0 %v3464
        %3840 = vmatprep.subr.mxu0 0.0
        %3841 = vmatpush1.msra.mxu0 %v3463
        %3842 = vmatprep.subr.mxu0 0.0
        %3843 = vmatpush1.msra.mxu0 %v3462
        %3844 = vmatprep.subr.mxu0 0.0
        %3845 = vmatpush1.msra.mxu0 %v3461
        %3846 = vmatprep.subr.mxu0 0.0
        %3847 = vmatpush1.msra.mxu0 %v3460
        %3848 = vmatprep.subr.mxu0 0.0
        %3849 = vmatpush1.msra.mxu0 %v3459
        %3850 = vmatprep.subr.mxu0 0.0
        %3851 = vmatpush1.msra.mxu0 %v3458
        %3852 = vmatprep.subr.mxu0 0.0
        %3853 = vmatpush1.msra.mxu0 %v3457
        %3854 = vmatprep.subr.mxu0 0.0
        %3855 = vmatpush1.msra.mxu0 %v3456
        %3856 = vmatprep.subr.mxu0 0.0
        %3857 = vmatpush1.msra.mxu0 %v3455
        %3858 = vmatprep.subr.mxu0 0.0
        %3859 = vmatpush1.msra.mxu0 %v3454
        %3860 = vmatprep.subr.mxu0 0.0
        %3861 = vmatpush1.msra.mxu0 %v3453
        %3862 = vmatprep.subr.mxu0 0.0
        %3863 = vmatpush2.msra.mxu0 %v3484
        %3864 = vmatprep.subr.mxu0 0.0
        %3865 = vmatpush2.msra.mxu0 %v3483
        %3866 = vmatprep.subr.mxu0 0.0
        %3867 = vmatpush2.msra.mxu0 %v3482
        %3868 = vmatprep.subr.mxu0 0.0
        %3869 = vmatpush2.msra.mxu0 %v3481
        %3870 = vmatprep.subr.mxu0 0.0
        %3871 = vmatpush2.msra.mxu0 %v3480
        %3872 = vmatprep.subr.mxu0 0.0
        %3873 = vmatpush2.msra.mxu0 %v3479
        %3874 = vmatprep.subr.mxu0 0.0
        %3875 = vmatpush2.msra.mxu0 %v3478
        %3876 = vmatprep.subr.mxu0 0.0
        %3877 = vmatpush2.msra.mxu0 %v3477
        %3878 = vmatprep.subr.mxu0 0.0
        %3879 = vmatpush2.msra.mxu0 %v3476
        %3880 = vmatprep.subr.mxu0 0.0
        %3881 = vmatpush2.msra.mxu0 %v3475
        %3882 = vmatprep.subr.mxu0 0.0
        %3883 = vmatpush2.msra.mxu0 %v3474
        %3884 = vmatprep.subr.mxu0 0.0
        %3885 = vmatpush2.msra.mxu0 %v3473
        %3886 = vmatprep.subr.mxu0 0.0
        %3887 = vmatpush2.msra.mxu0 %v3472
        %3888 = vmatprep.subr.mxu0 0.0
        %3889 = vmatpush2.msra.mxu0 %v3471
        %3890 = vmatprep.subr.mxu0 0.0
        %3891 = vmatpush2.msra.mxu0 %v3470
        %3892 = vmatprep.subr.mxu0 0.0
        %3893 = vmatpush2.msra.mxu0 %v3469
        %3894 = vmatprep.mubr.f32.mxu0 %v3025
        %3895 = vmatmul.mubr.f32.gmra.mxu0 %v2903
        %v3896 = vpop.f32.mrf.mxu0
        %v3897 = vadd.f32 %v3632, %v3896
        %v3898 = vpop.f32.mrf.mxu0
        %3899 = vmatprep.mubr.f32.mxu0 %v3027
        %3900 = vmatmul.mubr.f32.gmra.mxu0 %v2905
        %v3901 = vpop.f32.mrf.mxu0
        %v3902 = vadd.f32 %v3637, %v3901
        %v3903 = vpop.f32.mrf.mxu0
        %3904 = vmatprep.mubr.f32.mxu0 %v3029
        %3905 = vmatmul.mubr.f32.gmra.mxu0 %v2907
        %v3906 = vpop.f32.mrf.mxu0
        %v3907 = vadd.f32 %v3642, %v3906
        %v3908 = vpop.f32.mrf.mxu0
        %3909 = vmatprep.mubr.f32.mxu0 %v3031
        %3910 = vmatmul.mubr.f32.gmra.mxu0 %v2909
        %v3911 = vpop.f32.mrf.mxu0
        %v3912 = vadd.f32 %v3647, %v3911
        %v3913 = vpop.f32.mrf.mxu0
        %3914 = vmatprep.mubr.f32.mxu0 %v3033
        %3915 = vmatmul.mubr.f32.gmra.mxu0 %v2911
        %v3916 = vpop.f32.mrf.mxu0
        %v3917 = vadd.f32 %v3652, %v3916
        %v3918 = vpop.f32.mrf.mxu0
        %3919 = vmatprep.mubr.f32.mxu0 %v3035
        %3920 = vmatmul.mubr.f32.gmra.mxu0 %v2913
        %v3921 = vpop.f32.mrf.mxu0
        %v3922 = vadd.f32 %v3657, %v3921
        %v3923 = vpop.f32.mrf.mxu0
        %3924 = vmatprep.mubr.f32.mxu0 %v3037
        %3925 = vmatmul.mubr.f32.gmra.mxu0 %v2915
        %v3926 = vpop.f32.mrf.mxu0
        %v3927 = vadd.f32 %v3662, %v3926
        %v3928 = vpop.f32.mrf.mxu0
        %3929 = vmatprep.mubr.f32.mxu0 %v3039
        %3930 = vmatmul.mubr.f32.gmra.mxu0 %v2917
        %v3931 = vpop.f32.mrf.mxu0
        %v3932 = vadd.f32 %v3667, %v3931
        %v3933 = vpop.f32.mrf.mxu0
        %3934 = vmatprep.mubr.f32.mxu0 %v3041
        %3935 = vmatmul.mubr.f32.gmra.mxu0 %v2919
        %v3936 = vpop.f32.mrf.mxu0
        %v3937 = vadd.f32 %v3672, %v3936
        %v3938 = vpop.f32.mrf.mxu0
        %3939 = vmatprep.mubr.f32.mxu0 %v3043
        %3940 = vmatmul.mubr.f32.gmra.mxu0 %v2921
        %v3941 = vpop.f32.mrf.mxu0
        %v3942 = vadd.f32 %v3677, %v3941
        %v3943 = vpop.f32.mrf.mxu0
        %3944 = vmatprep.mubr.f32.mxu0 %v3045
        %3945 = vmatmul.mubr.f32.gmra.mxu0 %v2923
        %v3946 = vpop.f32.mrf.mxu0
        %v3947 = vadd.f32 %v3682, %v3946
        %v3948 = vpop.f32.mrf.mxu0
        %3949 = vmatprep.mubr.f32.mxu0 %v3047
        %3950 = vmatmul.mubr.f32.gmra.mxu0 %v2925
        %v3951 = vpop.f32.mrf.mxu0
        %v3952 = vadd.f32 %v3687, %v3951
        %v3953 = vpop.f32.mrf.mxu0
        %3954 = vmatprep.mubr.f32.mxu0 %v3049
        %3955 = vmatmul.mubr.f32.gmra.mxu0 %v2927
        %v3956 = vpop.f32.mrf.mxu0
        %v3957 = vadd.f32 %v3692, %v3956
        %v3958 = vpop.f32.mrf.mxu0
        %3959 = vmatprep.mubr.f32.mxu0 %v3051
        %3960 = vmatmul.mubr.f32.gmra.mxu0 %v2929
        %v3961 = vpop.f32.mrf.mxu0
        %v3962 = vadd.f32 %v3697, %v3961
        %v3963 = vpop.f32.mrf.mxu0
        %3964 = vmatprep.mubr.f32.mxu0 %v3053
        %3965 = vmatmul.mubr.f32.gmra.mxu0 %v2931
        %v3966 = vpop.f32.mrf.mxu0
        %v3967 = vadd.f32 %v3702, %v3966
        %v3968 = vpop.f32.mrf.mxu0
        %3969 = vmatprep.mubr.f32.mxu0 %v3055
        %3970 = vmatmul.mubr.f32.gmra.mxu0 %v2933
        %v3971 = vpop.f32.mrf.mxu0
        %v3972 = vadd.f32 %v3707, %v3971
        %v3973 = vpop.f32.mrf.mxu0
        %3974 = vmatprep.mubr.f32.mxu0 %v3057
        %3975 = vmatmul.mubr.f32.gmra.mxu0 %v2935
        %v3976 = vpop.f32.mrf.mxu0
        %v3977 = vadd.f32 %v3712, %v3976
        %v3978 = vpop.f32.mrf.mxu0
        %3979 = vmatprep.mubr.f32.mxu0 %v3059
        %3980 = vmatmul.mubr.f32.gmra.mxu0 %v2937
        %v3981 = vpop.f32.mrf.mxu0
        %v3982 = vadd.f32 %v3717, %v3981
        %v3983 = vpop.f32.mrf.mxu0
        %3984 = vmatprep.mubr.f32.mxu0 %v3061
        %3985 = vmatmul.mubr.f32.gmra.mxu0 %v2939
        %v3986 = vpop.f32.mrf.mxu0
        %v3987 = vadd.f32 %v3722, %v3986
        %v3988 = vpop.f32.mrf.mxu0
        %3989 = vmatprep.mubr.f32.mxu0 %v3063
        %3990 = vmatmul.mubr.f32.gmra.mxu0 %v2941
        %v3991 = vpop.f32.mrf.mxu0
        %v3992 = vadd.f32 %v3727, %v3991
        %v3993 = vpop.f32.mrf.mxu0
        %3994 = vmatprep.mubr.f32.mxu0 %v3065
        %3995 = vmatmul.mubr.f32.gmra.mxu0 %v2943
        %v3996 = vpop.f32.mrf.mxu0
        %v3997 = vadd.f32 %v3732, %v3996
        %v3998 = vpop.f32.mrf.mxu0
        %3999 = vmatprep.mubr.f32.mxu0 %v3067
        %4000 = vmatmul.mubr.f32.gmra.mxu0 %v2945
        %v4001 = vpop.f32.mrf.mxu0
        %v4002 = vadd.f32 %v3737, %v4001
        %v4003 = vpop.f32.mrf.mxu0
        %4004 = vmatprep.mubr.f32.mxu0 %v3069
        %4005 = vmatmul.mubr.f32.gmra.mxu0 %v2947
        %v4006 = vpop.f32.mrf.mxu0
        %v4007 = vadd.f32 %v3742, %v4006
        %v4008 = vpop.f32.mrf.mxu0
        %4009 = vmatprep.mubr.f32.mxu0 %v3071
        %4010 = vmatmul.mubr.f32.gmra.mxu0 %v2949
        %v4011 = vpop.f32.mrf.mxu0
        %v4012 = vadd.f32 %v3747, %v4011
        %v4013 = vpop.f32.mrf.mxu0
        %4014 = vmatprep.mubr.f32.mxu0 %v3073
        %4015 = vmatmul.mubr.f32.gmra.mxu0 %v2951
        %v4016 = vpop.f32.mrf.mxu0
        %v4017 = vadd.f32 %v3752, %v4016
        %v4018 = vpop.f32.mrf.mxu0
        %4019 = vmatprep.mubr.f32.mxu0 %v3075
        %4020 = vmatmul.mubr.f32.gmra.mxu0 %v2953
        %v4021 = vpop.f32.mrf.mxu0
        %v4022 = vadd.f32 %v3757, %v4021
        %v4023 = vpop.f32.mrf.mxu0
        %4024 = vmatprep.mubr.f32.mxu0 %v3077
        %4025 = vmatmul.mubr.f32.gmra.mxu0 %v2955
        %v4026 = vpop.f32.mrf.mxu0
        %v4027 = vadd.f32 %v3762, %v4026
        %v4028 = vpop.f32.mrf.mxu0
        %4029 = vmatprep.mubr.f32.mxu0 %v3079
        %4030 = vmatmul.mubr.f32.gmra.mxu0 %v2957
        %v4031 = vpop.f32.mrf.mxu0
        %v4032 = vadd.f32 %v3767, %v4031
        %v4033 = vpop.f32.mrf.mxu0
        %4034 = vmatprep.mubr.f32.mxu0 %v3081
        %4035 = vmatmul.mubr.f32.gmra.mxu0 %v2959
        %v4036 = vpop.f32.mrf.mxu0
        %v4037 = vadd.f32 %v3772, %v4036
        %v4038 = vpop.f32.mrf.mxu0
        %4039 = vmatprep.mubr.f32.mxu0 %v3083
        %4040 = vmatmul.mubr.f32.gmra.mxu0 %v2961
        %v4041 = vpop.f32.mrf.mxu0
        %v4042 = vadd.f32 %v3777, %v4041
        %v4043 = vpop.f32.mrf.mxu0
        %4044 = vmatprep.mubr.f32.mxu0 %v3085
        %4045 = vmatmul.mubr.f32.gmra.mxu0 %v2963
        %v4046 = vpop.f32.mrf.mxu0
        %v4047 = vadd.f32 %v3782, %v4046
        %v4048 = vpop.f32.mrf.mxu0
        %4049 = vmatprep.mubr.f32.mxu0 %v3087
        %4050 = vmatmul.mubr.f32.gmra.mxu0 %v2965
        %v4051 = vpop.f32.mrf.mxu0
        %v4052 = vadd.f32 %v3787, %v4051
        %v4053 = vpop.f32.mrf.mxu0
        %4054 = vmatprep.mubr.f32.mxu0 %v3089
        %4055 = vmatmul.mubr.f32.gmra.mxu0 %v2967
        %v4056 = vpop.f32.mrf.mxu0
        %v4057 = vadd.f32 %v3792, %v4056
        %v4058 = vpop.f32.mrf.mxu0
        %4059 = vmatprep.mubr.f32.mxu0 %v3091
        %4060 = vmatmul.mubr.f32.gmra.mxu0 %v2969
        %v4061 = vpop.f32.mrf.mxu0
        %v4062 = vadd.f32 %v3797, %v4061
        %v4063 = vpop.f32.mrf.mxu0
        %4064 = vmatprep.mubr.f32.mxu0 %v3093
        %4065 = vmatmul.mubr.f32.gmra.mxu0 %v2971
        %v4066 = vpop.f32.mrf.mxu0
        %v4067 = vadd.f32 %v3802, %v4066
        %v4068 = vpop.f32.mrf.mxu0
        %4069 = vmatprep.mubr.f32.mxu0 %v3095
        %4070 = vmatmul.mubr.f32.gmra.mxu0 %v2973
        %v4071 = vpop.f32.mrf.mxu0
        %v4072 = vadd.f32 %v3807, %v4071
        %v4073 = vpop.f32.mrf.mxu0
        %4074 = vmatprep.mubr.f32.mxu0 %v3097
        %4075 = vmatmul.mubr.f32.gmra.mxu0 %v2975
        %v4076 = vpop.f32.mrf.mxu0
        %v4077 = vadd.f32 %v3812, %v4076
        %v4078 = vpop.f32.mrf.mxu0
        %4079 = vmatprep.mubr.f32.mxu0 %v3099
        %4080 = vmatmul.mubr.f32.gmra.mxu0 %v2977
        %v4081 = vpop.f32.mrf.mxu0
        %v4082 = vadd.f32 %v3817, %v4081
        %v4083 = vpop.f32.mrf.mxu0
        %4084 = vmatprep.mubr.f32.mxu0 %v3101
        %4085 = vmatmul.mubr.f32.gmra.mxu0 %v2979
        %v4086 = vpop.f32.mrf.mxu0
        %v4087 = vadd.f32 %v3822, %v4086
        %v4088 = vpop.f32.mrf.mxu0
        %4089 = vmatprep.mubr.f32.mxu0 %v3100
        %4090 = vmatmul.mubr.f32.gmra.mxu0 %v2978
        %v4091 = vpop.f32.mrf.mxu0
        %v4092 = vadd.f32 %v3827, %v4091
        %v4093 = vpop.f32.mrf.mxu0
        %4094 = vdwg.mxu0
        %4095 = vmatprep.subr.mxu0 0.0
        %4096 = vmatpush1.msra.mxu0 %v3500
        %4097 = vmatprep.subr.mxu0 0.0
        %4098 = vmatpush1.msra.mxu0 %v3499
        %4099 = vmatprep.subr.mxu0 0.0
        %4100 = vmatpush1.msra.mxu0 %v3498
        %4101 = vmatprep.subr.mxu0 0.0
        %4102 = vmatpush1.msra.mxu0 %v3497
        %4103 = vmatprep.subr.mxu0 0.0
        %4104 = vmatpush1.msra.mxu0 %v3496
        %4105 = vmatprep.subr.mxu0 0.0
        %4106 = vmatpush1.msra.mxu0 %v3495
        %4107 = vmatprep.subr.mxu0 0.0
        %4108 = vmatpush1.msra.mxu0 %v3494
        %4109 = vmatprep.subr.mxu0 0.0
        %4110 = vmatpush1.msra.mxu0 %v3493
        %4111 = vmatprep.subr.mxu0 0.0
        %4112 = vmatpush1.msra.mxu0 %v3492
        %4113 = vmatprep.subr.mxu0 0.0
        %4114 = vmatpush1.msra.mxu0 %v3491
        %4115 = vmatprep.subr.mxu0 0.0
        %4116 = vmatpush1.msra.mxu0 %v3490
        %4117 = vmatprep.subr.mxu0 0.0
        %4118 = vmatpush1.msra.mxu0 %v3489
        %4119 = vmatprep.subr.mxu0 0.0
        %4120 = vmatpush1.msra.mxu0 %v3488
        %4121 = vmatprep.subr.mxu0 0.0
        %4122 = vmatpush1.msra.mxu0 %v3487
        %4123 = vmatprep.subr.mxu0 0.0
        %4124 = vmatpush1.msra.mxu0 %v3486
        %4125 = vmatprep.subr.mxu0 0.0
        %4126 = vmatpush1.msra.mxu0 %v3485
        %4127 = vmatprep.subr.mxu0 0.0
        %4128 = vmatpush2.msra.mxu0 %v3516
        %4129 = vmatprep.subr.mxu0 0.0
        %4130 = vmatpush2.msra.mxu0 %v3515
        %4131 = vmatprep.subr.mxu0 0.0
        %4132 = vmatpush2.msra.mxu0 %v3514
        %4133 = vmatprep.subr.mxu0 0.0
        %4134 = vmatpush2.msra.mxu0 %v3513
        %4135 = vmatprep.subr.mxu0 0.0
        %4136 = vmatpush2.msra.mxu0 %v3512
        %4137 = vmatprep.subr.mxu0 0.0
        %4138 = vmatpush2.msra.mxu0 %v3511
        %4139 = vmatprep.subr.mxu0 0.0
        %4140 = vmatpush2.msra.mxu0 %v3510
        %4141 = vmatprep.subr.mxu0 0.0
        %4142 = vmatpush2.msra.mxu0 %v3509
        %4143 = vmatprep.subr.mxu0 0.0
        %4144 = vmatpush2.msra.mxu0 %v3508
        %4145 = vmatprep.subr.mxu0 0.0
        %4146 = vmatpush2.msra.mxu0 %v3507
        %4147 = vmatprep.subr.mxu0 0.0
        %4148 = vmatpush2.msra.mxu0 %v3506
        %4149 = vmatprep.subr.mxu0 0.0
        %4150 = vmatpush2.msra.mxu0 %v3505
        %4151 = vmatprep.subr.mxu0 0.0
        %4152 = vmatpush2.msra.mxu0 %v3504
        %4153 = vmatprep.subr.mxu0 0.0
        %4154 = vmatpush2.msra.mxu0 %v3503
        %4155 = vmatprep.subr.mxu0 0.0
        %4156 = vmatpush2.msra.mxu0 %v3502
        %4157 = vmatprep.subr.mxu0 0.0
        %4158 = vmatpush2.msra.mxu0 %v3501
        %4159 = vmatprep.mubr.f32.mxu0 %v3268
        %4160 = vmatmul.mubr.f32.gmra.mxu0 %v3146
        %v4161 = vpop.f32.mrf.mxu0
        %v4162 = vadd.f32 %v3897, %v4161
        %v4163 = vpop.f32.mrf.mxu0
        %4164 = vmatprep.mubr.f32.mxu0 %v3270
        %4165 = vmatmul.mubr.f32.gmra.mxu0 %v3148
        %v4166 = vpop.f32.mrf.mxu0
        %v4167 = vadd.f32 %v3902, %v4166
        %v4168 = vpop.f32.mrf.mxu0
        %4169 = vmatprep.mubr.f32.mxu0 %v3272
        %4170 = vmatmul.mubr.f32.gmra.mxu0 %v3150
        %v4171 = vpop.f32.mrf.mxu0
        %v4172 = vadd.f32 %v3907, %v4171
        %v4173 = vpop.f32.mrf.mxu0
        %4174 = vmatprep.mubr.f32.mxu0 %v3274
        %4175 = vmatmul.mubr.f32.gmra.mxu0 %v3152
        %v4176 = vpop.f32.mrf.mxu0
        %v4177 = vadd.f32 %v3912, %v4176
        %v4178 = vpop.f32.mrf.mxu0
        %4179 = vmatprep.mubr.f32.mxu0 %v3276
        %4180 = vmatmul.mubr.f32.gmra.mxu0 %v3154
        %v4181 = vpop.f32.mrf.mxu0
        %v4182 = vadd.f32 %v3917, %v4181
        %v4183 = vpop.f32.mrf.mxu0
        %4184 = vmatprep.mubr.f32.mxu0 %v3278
        %4185 = vmatmul.mubr.f32.gmra.mxu0 %v3156
        %v4186 = vpop.f32.mrf.mxu0
        %v4187 = vadd.f32 %v3922, %v4186
        %v4188 = vpop.f32.mrf.mxu0
        %4189 = vmatprep.mubr.f32.mxu0 %v3280
        %4190 = vmatmul.mubr.f32.gmra.mxu0 %v3158
        %v4191 = vpop.f32.mrf.mxu0
        %v4192 = vadd.f32 %v3927, %v4191
        %v4193 = vpop.f32.mrf.mxu0
        %4194 = vmatprep.mubr.f32.mxu0 %v3282
        %4195 = vmatmul.mubr.f32.gmra.mxu0 %v3160
        %v4196 = vpop.f32.mrf.mxu0
        %v4197 = vadd.f32 %v3932, %v4196
        %v4198 = vpop.f32.mrf.mxu0
        %4199 = vmatprep.mubr.f32.mxu0 %v3284
        %4200 = vmatmul.mubr.f32.gmra.mxu0 %v3162
        %v4201 = vpop.f32.mrf.mxu0
        %v4202 = vadd.f32 %v3937, %v4201
        %v4203 = vpop.f32.mrf.mxu0
        %4204 = vmatprep.mubr.f32.mxu0 %v3286
        %4205 = vmatmul.mubr.f32.gmra.mxu0 %v3164
        %v4206 = vpop.f32.mrf.mxu0
        %v4207 = vadd.f32 %v3942, %v4206
        %v4208 = vpop.f32.mrf.mxu0
        %4209 = vmatprep.mubr.f32.mxu0 %v3288
        %4210 = vmatmul.mubr.f32.gmra.mxu0 %v3166
        %v4211 = vpop.f32.mrf.mxu0
        %v4212 = vadd.f32 %v3947, %v4211
        %v4213 = vpop.f32.mrf.mxu0
        %4214 = vmatprep.mubr.f32.mxu0 %v3290
        %4215 = vmatmul.mubr.f32.gmra.mxu0 %v3168
        %v4216 = vpop.f32.mrf.mxu0
        %v4217 = vadd.f32 %v3952, %v4216
        %v4218 = vpop.f32.mrf.mxu0
        %4219 = vmatprep.mubr.f32.mxu0 %v3292
        %4220 = vmatmul.mubr.f32.gmra.mxu0 %v3170
        %v4221 = vpop.f32.mrf.mxu0
        %v4222 = vadd.f32 %v3957, %v4221
        %v4223 = vpop.f32.mrf.mxu0
        %4224 = vmatprep.mubr.f32.mxu0 %v3294
        %4225 = vmatmul.mubr.f32.gmra.mxu0 %v3172
        %v4226 = vpop.f32.mrf.mxu0
        %v4227 = vadd.f32 %v3962, %v4226
        %v4228 = vpop.f32.mrf.mxu0
        %4229 = vmatprep.mubr.f32.mxu0 %v3296
        %4230 = vmatmul.mubr.f32.gmra.mxu0 %v3174
        %v4231 = vpop.f32.mrf.mxu0
        %v4232 = vadd.f32 %v3967, %v4231
        %v4233 = vpop.f32.mrf.mxu0
        %4234 = vmatprep.mubr.f32.mxu0 %v3298
        %4235 = vmatmul.mubr.f32.gmra.mxu0 %v3176
        %v4236 = vpop.f32.mrf.mxu0
        %v4237 = vadd.f32 %v3972, %v4236
        %v4238 = vpop.f32.mrf.mxu0
        %4239 = vmatprep.mubr.f32.mxu0 %v3300
        %4240 = vmatmul.mubr.f32.gmra.mxu0 %v3178
        %v4241 = vpop.f32.mrf.mxu0
        %v4242 = vadd.f32 %v3977, %v4241
        %v4243 = vpop.f32.mrf.mxu0
        %4244 = vmatprep.mubr.f32.mxu0 %v3302
        %4245 = vmatmul.mubr.f32.gmra.mxu0 %v3180
        %v4246 = vpop.f32.mrf.mxu0
        %v4247 = vadd.f32 %v3982, %v4246
        %v4248 = vpop.f32.mrf.mxu0
        %4249 = vmatprep.mubr.f32.mxu0 %v3304
        %4250 = vmatmul.mubr.f32.gmra.mxu0 %v3182
        %v4251 = vpop.f32.mrf.mxu0
        %v4252 = vadd.f32 %v3987, %v4251
        %v4253 = vpop.f32.mrf.mxu0
        %4254 = vmatprep.mubr.f32.mxu0 %v3306
        %4255 = vmatmul.mubr.f32.gmra.mxu0 %v3184
        %v4256 = vpop.f32.mrf.mxu0
        %v4257 = vadd.f32 %v3992, %v4256
        %v4258 = vpop.f32.mrf.mxu0
        %4259 = vmatprep.mubr.f32.mxu0 %v3308
        %4260 = vmatmul.mubr.f32.gmra.mxu0 %v3186
        %v4261 = vpop.f32.mrf.mxu0
        %v4262 = vadd.f32 %v3997, %v4261
        %v4263 = vpop.f32.mrf.mxu0
        %4264 = vmatprep.mubr.f32.mxu0 %v3310
        %4265 = vmatmul.mubr.f32.gmra.mxu0 %v3188
        %v4266 = vpop.f32.mrf.mxu0
        %v4267 = vadd.f32 %v4002, %v4266
        %v4268 = vpop.f32.mrf.mxu0
        %4269 = vmatprep.mubr.f32.mxu0 %v3312
        %4270 = vmatmul.mubr.f32.gmra.mxu0 %v3190
        %v4271 = vpop.f32.mrf.mxu0
        %v4272 = vadd.f32 %v4007, %v4271
        %v4273 = vpop.f32.mrf.mxu0
        %4274 = vmatprep.mubr.f32.mxu0 %v3314
        %4275 = vmatmul.mubr.f32.gmra.mxu0 %v3192
        %v4276 = vpop.f32.mrf.mxu0
        %v4277 = vadd.f32 %v4012, %v4276
        %v4278 = vpop.f32.mrf.mxu0
        %4279 = vmatprep.mubr.f32.mxu0 %v3316
        %4280 = vmatmul.mubr.f32.gmra.mxu0 %v3194
        %v4281 = vpop.f32.mrf.mxu0
        %v4282 = vadd.f32 %v4017, %v4281
        %v4283 = vpop.f32.mrf.mxu0
        %4284 = vmatprep.mubr.f32.mxu0 %v3318
        %4285 = vmatmul.mubr.f32.gmra.mxu0 %v3196
        %v4286 = vpop.f32.mrf.mxu0
        %v4287 = vadd.f32 %v4022, %v4286
        %v4288 = vpop.f32.mrf.mxu0
        %4289 = vmatprep.mubr.f32.mxu0 %v3320
        %4290 = vmatmul.mubr.f32.gmra.mxu0 %v3198
        %v4291 = vpop.f32.mrf.mxu0
        %v4292 = vadd.f32 %v4027, %v4291
        %v4293 = vpop.f32.mrf.mxu0
        %4294 = vmatprep.mubr.f32.mxu0 %v3322
        %4295 = vmatmul.mubr.f32.gmra.mxu0 %v3200
        %v4296 = vpop.f32.mrf.mxu0
        %v4297 = vadd.f32 %v4032, %v4296
        %v4298 = vpop.f32.mrf.mxu0
        %4299 = vmatprep.mubr.f32.mxu0 %v3324
        %4300 = vmatmul.mubr.f32.gmra.mxu0 %v3202
        %v4301 = vpop.f32.mrf.mxu0
        %v4302 = vadd.f32 %v4037, %v4301
        %v4303 = vpop.f32.mrf.mxu0
        %4304 = vmatprep.mubr.f32.mxu0 %v3326
        %4305 = vmatmul.mubr.f32.gmra.mxu0 %v3204
        %v4306 = vpop.f32.mrf.mxu0
        %v4307 = vadd.f32 %v4042, %v4306
        %v4308 = vpop.f32.mrf.mxu0
        %4309 = vmatprep.mubr.f32.mxu0 %v3328
        %4310 = vmatmul.mubr.f32.gmra.mxu0 %v3206
        %v4311 = vpop.f32.mrf.mxu0
        %v4312 = vadd.f32 %v4047, %v4311
        %v4313 = vpop.f32.mrf.mxu0
        %4314 = vmatprep.mubr.f32.mxu0 %v3330
        %4315 = vmatmul.mubr.f32.gmra.mxu0 %v3208
        %v4316 = vpop.f32.mrf.mxu0
        %v4317 = vadd.f32 %v4052, %v4316
        %v4318 = vpop.f32.mrf.mxu0
        %4319 = vmatprep.mubr.f32.mxu0 %v3332
        %4320 = vmatmul.mubr.f32.gmra.mxu0 %v3210
        %v4321 = vpop.f32.mrf.mxu0
        %v4322 = vadd.f32 %v4057, %v4321
        %v4323 = vpop.f32.mrf.mxu0
        %4324 = vmatprep.mubr.f32.mxu0 %v3334
        %4325 = vmatmul.mubr.f32.gmra.mxu0 %v3212
        %v4326 = vpop.f32.mrf.mxu0
        %v4327 = vadd.f32 %v4062, %v4326
        %v4328 = vpop.f32.mrf.mxu0
        %4329 = vmatprep.mubr.f32.mxu0 %v3336
        %4330 = vmatmul.mubr.f32.gmra.mxu0 %v3214
        %v4331 = vpop.f32.mrf.mxu0
        %v4332 = vadd.f32 %v4067, %v4331
        %v4333 = vpop.f32.mrf.mxu0
        %4334 = vmatprep.mubr.f32.mxu0 %v3338
        %4335 = vmatmul.mubr.f32.gmra.mxu0 %v3216
        %v4336 = vpop.f32.mrf.mxu0
        %v4337 = vadd.f32 %v4072, %v4336
        %v4338 = vpop.f32.mrf.mxu0
        %4339 = vmatprep.mubr.f32.mxu0 %v3340
        %4340 = vmatmul.mubr.f32.gmra.mxu0 %v3218
        %v4341 = vpop.f32.mrf.mxu0
        %v4342 = vadd.f32 %v4077, %v4341
        %v4343 = vpop.f32.mrf.mxu0
        %4344 = vmatprep.mubr.f32.mxu0 %v3342
        %4345 = vmatmul.mubr.f32.gmra.mxu0 %v3220
        %v4346 = vpop.f32.mrf.mxu0
        %v4347 = vadd.f32 %v4082, %v4346
        %v4348 = vpop.f32.mrf.mxu0
        %4349 = vmatprep.mubr.f32.mxu0 %v3344
        %4350 = vmatmul.mubr.f32.gmra.mxu0 %v3222
        %v4351 = vpop.f32.mrf.mxu0
        %v4352 = vadd.f32 %v4087, %v4351
        %v4353 = vpop.f32.mrf.mxu0
        %4354 = vmatprep.mubr.f32.mxu0 %v3346
        %4355 = vmatmul.mubr.f32.gmra.mxu0 %v3224
        %v4356 = vpop.f32.mrf.mxu0
        %v4357 = vadd.f32 %v4092, %v4356
        %v4358 = vpop.f32.mrf.mxu0
        %4359 = vdwg.mxu0
        %4360 = vmatprep.subr.mxu0 0.0
        %4361 = vmatpush1.msra.mxu0 %v3532
        %4362 = vmatprep.subr.mxu0 0.0
        %4363 = vmatpush1.msra.mxu0 %v3531
        %4364 = vmatprep.subr.mxu0 0.0
        %4365 = vmatpush1.msra.mxu0 %v3530
        %4366 = vmatprep.subr.mxu0 0.0
        %4367 = vmatpush1.msra.mxu0 %v3529
        %4368 = vmatprep.subr.mxu0 0.0
        %4369 = vmatpush1.msra.mxu0 %v3528
        %4370 = vmatprep.subr.mxu0 0.0
        %4371 = vmatpush1.msra.mxu0 %v3527
        %4372 = vmatprep.subr.mxu0 0.0
        %4373 = vmatpush1.msra.mxu0 %v3526
        %4374 = vmatprep.subr.mxu0 0.0
        %4375 = vmatpush1.msra.mxu0 %v3525
        %4376 = vmatprep.subr.mxu0 0.0
        %4377 = vmatpush1.msra.mxu0 %v3524
        %4378 = vmatprep.subr.mxu0 0.0
        %4379 = vmatpush1.msra.mxu0 %v3523
        %4380 = vmatprep.subr.mxu0 0.0
        %4381 = vmatpush1.msra.mxu0 %v3522
        %4382 = vmatprep.subr.mxu0 0.0
        %4383 = vmatpush1.msra.mxu0 %v3521
        %4384 = vmatprep.subr.mxu0 0.0
        %4385 = vmatpush1.msra.mxu0 %v3520
        %4386 = vmatprep.subr.mxu0 0.0
        %4387 = vmatpush1.msra.mxu0 %v3519
        %4388 = vmatprep.subr.mxu0 0.0
        %4389 = vmatpush1.msra.mxu0 %v3518
        %4390 = vmatprep.subr.mxu0 0.0
        %4391 = vmatpush1.msra.mxu0 %v3517
        %4392 = vmatprep.subr.mxu0 0.0
        %4393 = vmatpush2.msra.mxu0 %v3548
        %4394 = vmatprep.subr.mxu0 0.0
        %4395 = vmatpush2.msra.mxu0 %v3547
        %4396 = vmatprep.subr.mxu0 0.0
        %4397 = vmatpush2.msra.mxu0 %v3546
        %4398 = vmatprep.subr.mxu0 0.0
        %4399 = vmatpush2.msra.mxu0 %v3545
        %4400 = vmatprep.subr.mxu0 0.0
        %4401 = vmatpush2.msra.mxu0 %v3544
        %4402 = vmatprep.subr.mxu0 0.0
        %4403 = vmatpush2.msra.mxu0 %v3543
        %4404 = vmatprep.subr.mxu0 0.0
        %4405 = vmatpush2.msra.mxu0 %v3542
        %4406 = vmatprep.subr.mxu0 0.0
        %4407 = vmatpush2.msra.mxu0 %v3541
        %4408 = vmatprep.subr.mxu0 0.0
        %4409 = vmatpush2.msra.mxu0 %v3540
        %4410 = vmatprep.subr.mxu0 0.0
        %4411 = vmatpush2.msra.mxu0 %v3539
        %4412 = vmatprep.subr.mxu0 0.0
        %4413 = vmatpush2.msra.mxu0 %v3538
        %4414 = vmatprep.subr.mxu0 0.0
        %4415 = vmatpush2.msra.mxu0 %v3537
        %4416 = vmatprep.subr.mxu0 0.0
        %4417 = vmatpush2.msra.mxu0 %v3536
        %4418 = vmatprep.subr.mxu0 0.0
        %4419 = vmatpush2.msra.mxu0 %v3535
        %4420 = vmatprep.subr.mxu0 0.0
        %4421 = vmatpush2.msra.mxu0 %v3534
        %4422 = vmatprep.subr.mxu0 0.0
        %4423 = vmatpush2.msra.mxu0 %v3533
        %4424 = vmatprep.mubr.f32.mxu0 %v2793
        %4425 = vmatmul.mubr.f32.gmra.mxu0 %v2700
        %v4426 = vpop.f32.mrf.mxu0
        %v4427 = vadd.f32 %v4162, %v4426
        %v4428 = vpop.f32.mrf.mxu0
        %4429 = vmatprep.mubr.f32.mxu0 %v2795
        %4430 = vmatmul.mubr.f32.gmra.mxu0 %v2701
        %v4431 = vpop.f32.mrf.mxu0
        %v4432 = vadd.f32 %v4167, %v4431
        %v4433 = vpop.f32.mrf.mxu0
        %4434 = vmatprep.mubr.f32.mxu0 %v2797
        %4435 = vmatmul.mubr.f32.gmra.mxu0 %v2702
        %v4436 = vpop.f32.mrf.mxu0
        %v4437 = vadd.f32 %v4172, %v4436
        %v4438 = vpop.f32.mrf.mxu0
        %4439 = vmatprep.mubr.f32.mxu0 %v2799
        %4440 = vmatmul.mubr.f32.gmra.mxu0 %v2703
        %v4441 = vpop.f32.mrf.mxu0
        %v4442 = vadd.f32 %v4177, %v4441
        %v4443 = vpop.f32.mrf.mxu0
        %4444 = vmatprep.mubr.f32.mxu0 %v2801
        %4445 = vmatmul.mubr.f32.gmra.mxu0 %v2704
        %v4446 = vpop.f32.mrf.mxu0
        %v4447 = vadd.f32 %v4182, %v4446
        %v4448 = vpop.f32.mrf.mxu0
        %4449 = vmatprep.mubr.f32.mxu0 %v2803
        %4450 = vmatmul.mubr.f32.gmra.mxu0 %v2705
        %v4451 = vpop.f32.mrf.mxu0
        %v4452 = vadd.f32 %v4187, %v4451
        %v4453 = vpop.f32.mrf.mxu0
        %4454 = vmatprep.mubr.f32.mxu0 %v2805
        %4455 = vmatmul.mubr.f32.gmra.mxu0 %v2706
        %v4456 = vpop.f32.mrf.mxu0
        %v4457 = vadd.f32 %v4192, %v4456
        %v4458 = vpop.f32.mrf.mxu0
        %4459 = vmatprep.mubr.f32.mxu0 %v2807
        %4460 = vmatmul.mubr.f32.gmra.mxu0 %v2707
        %v4461 = vpop.f32.mrf.mxu0
        %v4462 = vadd.f32 %v4197, %v4461
        %v4463 = vpop.f32.mrf.mxu0
        %4464 = vmatprep.mubr.f32.mxu0 %v2809
        %4465 = vmatmul.mubr.f32.gmra.mxu0 %v2708
        %v4466 = vpop.f32.mrf.mxu0
        %v4467 = vadd.f32 %v4202, %v4466
        %v4468 = vpop.f32.mrf.mxu0
        %4469 = vmatprep.mubr.f32.mxu0 %v2811
        %4470 = vmatmul.mubr.f32.gmra.mxu0 %v2709
        %v4471 = vpop.f32.mrf.mxu0
        %v4472 = vadd.f32 %v4207, %v4471
        %v4473 = vpop.f32.mrf.mxu0
        %4474 = vmatprep.mubr.f32.mxu0 %v2813
        %4475 = vmatmul.mubr.f32.gmra.mxu0 %v2710
        %v4476 = vpop.f32.mrf.mxu0
        %v4477 = vadd.f32 %v4212, %v4476
        %v4478 = vpop.f32.mrf.mxu0
        %4479 = vmatprep.mubr.f32.mxu0 %v2815
        %4480 = vmatmul.mubr.f32.gmra.mxu0 %v2711
        %v4481 = vpop.f32.mrf.mxu0
        %v4482 = vadd.f32 %v4217, %v4481
        %v4483 = vpop.f32.mrf.mxu0
        %4484 = vmatprep.mubr.f32.mxu0 %v2817
        %4485 = vmatmul.mubr.f32.gmra.mxu0 %v2712
        %v4486 = vpop.f32.mrf.mxu0
        %v4487 = vadd.f32 %v4222, %v4486
        %v4488 = vpop.f32.mrf.mxu0
        %4489 = vmatprep.mubr.f32.mxu0 %v2819
        %4490 = vmatmul.mubr.f32.gmra.mxu0 %v2713
        %v4491 = vpop.f32.mrf.mxu0
        %v4492 = vadd.f32 %v4227, %v4491
        %v4493 = vpop.f32.mrf.mxu0
        %4494 = vmatprep.mubr.f32.mxu0 %v2821
        %4495 = vmatmul.mubr.f32.gmra.mxu0 %v2714
        %v4496 = vpop.f32.mrf.mxu0
        %v4497 = vadd.f32 %v4232, %v4496
        %v4498 = vpop.f32.mrf.mxu0
        %4499 = vmatprep.mubr.f32.mxu0 %v2823
        %4500 = vmatmul.mubr.f32.gmra.mxu0 %v2715
        %v4501 = vpop.f32.mrf.mxu0
        %v4502 = vadd.f32 %v4237, %v4501
        %v4503 = vpop.f32.mrf.mxu0
        %4504 = vmatprep.mubr.f32.mxu0 %v2825
        %4505 = vmatmul.mubr.f32.gmra.mxu0 %v2716
        %v4506 = vpop.f32.mrf.mxu0
        %v4507 = vadd.f32 %v4242, %v4506
        %v4508 = vpop.f32.mrf.mxu0
        %4509 = vmatprep.mubr.f32.mxu0 %v2827
        %4510 = vmatmul.mubr.f32.gmra.mxu0 %v2717
        %v4511 = vpop.f32.mrf.mxu0
        %v4512 = vadd.f32 %v4247, %v4511
        %v4513 = vpop.f32.mrf.mxu0
        %4514 = vmatprep.mubr.f32.mxu0 %v2829
        %4515 = vmatmul.mubr.f32.gmra.mxu0 %v2718
        %v4516 = vpop.f32.mrf.mxu0
        %v4517 = vadd.f32 %v4252, %v4516
        %v4518 = vpop.f32.mrf.mxu0
        %4519 = vmatprep.mubr.f32.mxu0 %v2831
        %4520 = vmatmul.mubr.f32.gmra.mxu0 %v2719
        %v4521 = vpop.f32.mrf.mxu0
        %v4522 = vadd.f32 %v4257, %v4521
        %v4523 = vpop.f32.mrf.mxu0
        %4524 = vmatprep.mubr.f32.mxu0 %v2833
        %4525 = vmatmul.mubr.f32.gmra.mxu0 %v2720
        %v4526 = vpop.f32.mrf.mxu0
        %v4527 = vadd.f32 %v4262, %v4526
        %v4528 = vpop.f32.mrf.mxu0
        %4529 = vmatprep.mubr.f32.mxu0 %v2835
        %4530 = vmatmul.mubr.f32.gmra.mxu0 %v2721
        %v4531 = vpop.f32.mrf.mxu0
        %v4532 = vadd.f32 %v4267, %v4531
        %v4533 = vpop.f32.mrf.mxu0
        %4534 = vmatprep.mubr.f32.mxu0 %v2837
        %4535 = vmatmul.mubr.f32.gmra.mxu0 %v2722
        %v4536 = vpop.f32.mrf.mxu0
        %v4537 = vadd.f32 %v4272, %v4536
        %v4538 = vpop.f32.mrf.mxu0
        %4539 = vmatprep.mubr.f32.mxu0 %v2839
        %4540 = vmatmul.mubr.f32.gmra.mxu0 %v2723
        %v4541 = vpop.f32.mrf.mxu0
        %v4542 = vadd.f32 %v4277, %v4541
        %v4543 = vpop.f32.mrf.mxu0
        %4544 = vmatprep.mubr.f32.mxu0 %v2841
        %4545 = vmatmul.mubr.f32.gmra.mxu0 %v2724
        %v4546 = vpop.f32.mrf.mxu0
        %v4547 = vadd.f32 %v4282, %v4546
        %v4548 = vpop.f32.mrf.mxu0
        %4549 = vmatprep.mubr.f32.mxu0 %v2843
        %4550 = vmatmul.mubr.f32.gmra.mxu0 %v2725
        %v4551 = vpop.f32.mrf.mxu0
        %v4552 = vadd.f32 %v4287, %v4551
        %v4553 = vpop.f32.mrf.mxu0
        %4554 = vmatprep.mubr.f32.mxu0 %v2845
        %4555 = vmatmul.mubr.f32.gmra.mxu0 %v2726
        %v4556 = vpop.f32.mrf.mxu0
        %v4557 = vadd.f32 %v4292, %v4556
        %v4558 = vpop.f32.mrf.mxu0
        %4559 = vmatprep.mubr.f32.mxu0 %v2847
        %4560 = vmatmul.mubr.f32.gmra.mxu0 %v2727
        %v4561 = vpop.f32.mrf.mxu0
        %v4562 = vadd.f32 %v4297, %v4561
        %v4563 = vpop.f32.mrf.mxu0
        %4564 = vmatprep.mubr.f32.mxu0 %v2849
        %4565 = vmatmul.mubr.f32.gmra.mxu0 %v2728
        %v4566 = vpop.f32.mrf.mxu0
        %v4567 = vadd.f32 %v4302, %v4566
        %v4568 = vpop.f32.mrf.mxu0
        %4569 = vmatprep.mubr.f32.mxu0 %v2851
        %4570 = vmatmul.mubr.f32.gmra.mxu0 %v2729
        %v4571 = vpop.f32.mrf.mxu0
        %v4572 = vadd.f32 %v4307, %v4571
        %v4573 = vpop.f32.mrf.mxu0
        %4574 = vmatprep.mubr.f32.mxu0 %v2853
        %4575 = vmatmul.mubr.f32.gmra.mxu0 %v2730
        %v4576 = vpop.f32.mrf.mxu0
        %v4577 = vadd.f32 %v4312, %v4576
        %v4578 = vpop.f32.mrf.mxu0
        %4579 = vmatprep.mubr.f32.mxu0 %v2855
        %4580 = vmatmul.mubr.f32.gmra.mxu0 %v2731
        %v4581 = vpop.f32.mrf.mxu0
        %v4582 = vadd.f32 %v4317, %v4581
        %v4583 = vpop.f32.mrf.mxu0
        %4584 = vmatprep.mubr.f32.mxu0 %v2857
        %4585 = vmatmul.mubr.f32.gmra.mxu0 %v2732
        %v4586 = vpop.f32.mrf.mxu0
        %v4587 = vadd.f32 %v4322, %v4586
        %v4588 = vpop.f32.mrf.mxu0
        %4589 = vmatprep.mubr.f32.mxu0 %v2859
        %4590 = vmatmul.mubr.f32.gmra.mxu0 %v2733
        %v4591 = vpop.f32.mrf.mxu0
        %v4592 = vadd.f32 %v4327, %v4591
        %v4593 = vpop.f32.mrf.mxu0
        %4594 = vmatprep.mubr.f32.mxu0 %v3390
        %4595 = vmatmul.mubr.f32.gmra.mxu0 %v2734
        %v4596 = vpop.f32.mrf.mxu0
        %v4597 = vadd.f32 %v4332, %v4596
        %v4598 = vpop.f32.mrf.mxu0
        %4599 = vmatprep.mubr.f32.mxu0 %v3392
        %4600 = vmatmul.mubr.f32.gmra.mxu0 %v2735
        %v4601 = vpop.f32.mrf.mxu0
        %v4602 = vadd.f32 %v4337, %v4601
        %v4603 = vpop.f32.mrf.mxu0
        %4604 = vmatprep.mubr.f32.mxu0 %v3394
        %4605 = vmatmul.mubr.f32.gmra.mxu0 %v2736
        %v4606 = vpop.f32.mrf.mxu0
        %v4607 = vadd.f32 %v4342, %v4606
        %v4608 = vpop.f32.mrf.mxu0
        %4609 = vmatprep.mubr.f32.mxu0 %v3396
        %4610 = vmatmul.mubr.f32.gmra.mxu0 %v2737
        %v4611 = vpop.f32.mrf.mxu0
        %v4612 = vadd.f32 %v4347, %v4611
        %v4613 = vpop.f32.mrf.mxu0
        %4614 = vmatprep.mubr.f32.mxu0 %v3398
        %4615 = vmatmul.mubr.f32.gmra.mxu0 %v2738
        %v4616 = vpop.f32.mrf.mxu0
        %v4617 = vadd.f32 %v4352, %v4616
        %v4618 = vpop.f32.mrf.mxu0
        %4619 = vmatprep.mubr.f32.mxu0 %v3397
        %4620 = vmatmul.mubr.f32.gmra.mxu0 %v2739
        %v4621 = vpop.f32.mrf.mxu0
        %v4622 = vadd.f32 %v4357, %v4621
        %v4623 = vpop.f32.mrf.mxu0
        %4624 = vdwg.mxu0
        %4625 = vmatprep.subr.mxu0 0.0
        %4626 = vmatpush1.msra.mxu0 %v3564
        %4627 = vmatprep.subr.mxu0 0.0
        %4628 = vmatpush1.msra.mxu0 %v3563
        %4629 = vmatprep.subr.mxu0 0.0
        %4630 = vmatpush1.msra.mxu0 %v3562
        %4631 = vmatprep.subr.mxu0 0.0
        %4632 = vmatpush1.msra.mxu0 %v3561
        %4633 = vmatprep.subr.mxu0 0.0
        %4634 = vmatpush1.msra.mxu0 %v3560
        %4635 = vmatprep.subr.mxu0 0.0
        %4636 = vmatpush1.msra.mxu0 %v3559
        %4637 = vmatprep.subr.mxu0 0.0
        %4638 = vmatpush1.msra.mxu0 %v3558
        %4639 = vmatprep.subr.mxu0 0.0
        %4640 = vmatpush1.msra.mxu0 %v3557
        %4641 = vmatprep.subr.mxu0 0.0
        %4642 = vmatpush1.msra.mxu0 %v3556
        %4643 = vmatprep.subr.mxu0 0.0
        %4644 = vmatpush1.msra.mxu0 %v3555
        %4645 = vmatprep.subr.mxu0 0.0
        %4646 = vmatpush1.msra.mxu0 %v3554
        %4647 = vmatprep.subr.mxu0 0.0
        %4648 = vmatpush1.msra.mxu0 %v3553
        %4649 = vmatprep.subr.mxu0 0.0
        %4650 = vmatpush1.msra.mxu0 %v3552
        %4651 = vmatprep.subr.mxu0 0.0
        %4652 = vmatpush1.msra.mxu0 %v3551
        %4653 = vmatprep.subr.mxu0 0.0
        %4654 = vmatpush1.msra.mxu0 %v3550
        %4655 = vmatprep.subr.mxu0 0.0
        %4656 = vmatpush1.msra.mxu0 %v3549
        %4657 = vmatprep.subr.mxu0 0.0
        %4658 = vmatpush2.msra.mxu0 0.0
        %4659 = vmatprep.subr.mxu0 0.0
        %4660 = vmatpush2.msra.mxu0 0.0
        %4661 = vmatprep.subr.mxu0 0.0
        %4662 = vmatpush2.msra.mxu0 0.0
        %4663 = vmatprep.subr.mxu0 0.0
        %4664 = vmatpush2.msra.mxu0 0.0
        %4665 = vmatprep.subr.mxu0 0.0
        %4666 = vmatpush2.msra.mxu0 0.0
        %4667 = vmatprep.subr.mxu0 0.0
        %4668 = vmatpush2.msra.mxu0 0.0
        %4669 = vmatprep.subr.mxu0 0.0
        %4670 = vmatpush2.msra.mxu0 0.0
        %4671 = vmatprep.subr.mxu0 0.0
        %4672 = vmatpush2.msra.mxu0 0.0
        %4673 = vmatprep.subr.mxu0 0.0
        %4674 = vmatpush2.msra.mxu0 0.0
        %4675 = vmatprep.subr.mxu0 0.0
        %4676 = vmatpush2.msra.mxu0 0.0
        %4677 = vmatprep.subr.mxu0 0.0
        %4678 = vmatpush2.msra.mxu0 0.0
        %4679 = vmatprep.subr.mxu0 0.0
        %4680 = vmatpush2.msra.mxu0 0.0
        %4681 = vmatprep.subr.mxu0 0.0
        %4682 = vmatpush2.msra.mxu0 0.0
        %4683 = vmatprep.subr.mxu0 0.0
        %4684 = vmatpush2.msra.mxu0 0.0
        %4685 = vmatprep.subr.mxu0 0.0
        %4686 = vmatpush2.msra.mxu0 0.0
        %4687 = vmatprep.subr.mxu0 0.0
        %4688 = vmatpush2.msra.mxu0 0.0
        %4689 = vmatprep.mubr.f32.mxu0 0.0
        %4690 = vmatmul.mubr.f32.gmra.mxu0 %v2913
        %v4691 = vpop.f32.mrf.mxu0
        %v4692 = vadd.f32 %v4427, %v4691
        %v4693 = vpop.f32.mrf.mxu0
        %4694 = vmatprep.mubr.f32.mxu0 0.0
        %4695 = vmatmul.mubr.f32.gmra.mxu0 %v2915
        %v4696 = vpop.f32.mrf.mxu0
        %v4697 = vadd.f32 %v4432, %v4696
        %v4698 = vpop.f32.mrf.mxu0
        %4699 = vmatprep.mubr.f32.mxu0 0.0
        %4700 = vmatmul.mubr.f32.gmra.mxu0 %v2917
        %v4701 = vpop.f32.mrf.mxu0
        %v4702 = vadd.f32 %v4437, %v4701
        %v4703 = vpop.f32.mrf.mxu0
        %4704 = vmatprep.mubr.f32.mxu0 0.0
        %4705 = vmatmul.mubr.f32.gmra.mxu0 %v2919
        %v4706 = vpop.f32.mrf.mxu0
        %v4707 = vadd.f32 %v4442, %v4706
        %v4708 = vpop.f32.mrf.mxu0
        %4709 = vmatprep.mubr.f32.mxu0 0.0
        %4710 = vmatmul.mubr.f32.gmra.mxu0 %v2921
        %v4711 = vpop.f32.mrf.mxu0
        %v4712 = vadd.f32 %v4447, %v4711
        %v4713 = vpop.f32.mrf.mxu0
        %4714 = vmatprep.mubr.f32.mxu0 0.0
        %4715 = vmatmul.mubr.f32.gmra.mxu0 %v2923
        %v4716 = vpop.f32.mrf.mxu0
        %v4717 = vadd.f32 %v4452, %v4716
        %v4718 = vpop.f32.mrf.mxu0
        %4719 = vmatprep.mubr.f32.mxu0 0.0
        %4720 = vmatmul.mubr.f32.gmra.mxu0 %v2925
        %v4721 = vpop.f32.mrf.mxu0
        %v4722 = vadd.f32 %v4457, %v4721
        %v4723 = vpop.f32.mrf.mxu0
        %4724 = vmatprep.mubr.f32.mxu0 0.0
        %4725 = vmatmul.mubr.f32.gmra.mxu0 %v2927
        %v4726 = vpop.f32.mrf.mxu0
        %v4727 = vadd.f32 %v4462, %v4726
        %v4728 = vpop.f32.mrf.mxu0
        %4729 = vmatprep.mubr.f32.mxu0 0.0
        %4730 = vmatmul.mubr.f32.gmra.mxu0 %v2929
        %v4731 = vpop.f32.mrf.mxu0
        %v4732 = vadd.f32 %v4467, %v4731
        %v4733 = vpop.f32.mrf.mxu0
        %4734 = vmatprep.mubr.f32.mxu0 0.0
        %4735 = vmatmul.mubr.f32.gmra.mxu0 %v2931
        %v4736 = vpop.f32.mrf.mxu0
        %v4737 = vadd.f32 %v4472, %v4736
        %v4738 = vpop.f32.mrf.mxu0
        %4739 = vmatprep.mubr.f32.mxu0 0.0
        %4740 = vmatmul.mubr.f32.gmra.mxu0 %v2933
        %v4741 = vpop.f32.mrf.mxu0
        %v4742 = vadd.f32 %v4477, %v4741
        %v4743 = vpop.f32.mrf.mxu0
        %4744 = vmatprep.mubr.f32.mxu0 0.0
        %4745 = vmatmul.mubr.f32.gmra.mxu0 %v2935
        %v4746 = vpop.f32.mrf.mxu0
        %v4747 = vadd.f32 %v4482, %v4746
        %v4748 = vpop.f32.mrf.mxu0
        %4749 = vmatprep.mubr.f32.mxu0 0.0
        %4750 = vmatmul.mubr.f32.gmra.mxu0 %v2937
        %v4751 = vpop.f32.mrf.mxu0
        %v4752 = vadd.f32 %v4487, %v4751
        %v4753 = vpop.f32.mrf.mxu0
        %4754 = vmatprep.mubr.f32.mxu0 0.0
        %4755 = vmatmul.mubr.f32.gmra.mxu0 %v2939
        %v4756 = vpop.f32.mrf.mxu0
        %v4757 = vadd.f32 %v4492, %v4756
        %v4758 = vpop.f32.mrf.mxu0
        %4759 = vmatprep.mubr.f32.mxu0 0.0
        %4760 = vmatmul.mubr.f32.gmra.mxu0 %v2941
        %v4761 = vpop.f32.mrf.mxu0
        %v4762 = vadd.f32 %v4497, %v4761
        %v4763 = vpop.f32.mrf.mxu0
        %4764 = vmatprep.mubr.f32.mxu0 0.0
        %4765 = vmatmul.mubr.f32.gmra.mxu0 %v2943
        %v4766 = vpop.f32.mrf.mxu0
        %v4767 = vadd.f32 %v4502, %v4766
        %v4768 = vpop.f32.mrf.mxu0
        %4769 = vmatprep.mubr.f32.mxu0 0.0
        %4770 = vmatmul.mubr.f32.gmra.mxu0 %v2945
        %v4771 = vpop.f32.mrf.mxu0
        %v4772 = vadd.f32 %v4507, %v4771
        %v4773 = vpop.f32.mrf.mxu0
        %4774 = vmatprep.mubr.f32.mxu0 0.0
        %4775 = vmatmul.mubr.f32.gmra.mxu0 %v2947
        %v4776 = vpop.f32.mrf.mxu0
        %v4777 = vadd.f32 %v4512, %v4776
        %v4778 = vpop.f32.mrf.mxu0
        %4779 = vmatprep.mubr.f32.mxu0 0.0
        %4780 = vmatmul.mubr.f32.gmra.mxu0 %v2949
        %v4781 = vpop.f32.mrf.mxu0
        %v4782 = vadd.f32 %v4517, %v4781
        %v4783 = vpop.f32.mrf.mxu0
        %4784 = vmatprep.mubr.f32.mxu0 0.0
        %4785 = vmatmul.mubr.f32.gmra.mxu0 %v2951
        %v4786 = vpop.f32.mrf.mxu0
        %v4787 = vadd.f32 %v4522, %v4786
        %v4788 = vpop.f32.mrf.mxu0
        %4789 = vmatprep.mubr.f32.mxu0 0.0
        %4790 = vmatmul.mubr.f32.gmra.mxu0 %v2953
        %v4791 = vpop.f32.mrf.mxu0
        %v4792 = vadd.f32 %v4527, %v4791
        %v4793 = vpop.f32.mrf.mxu0
        %4794 = vmatprep.mubr.f32.mxu0 0.0
        %4795 = vmatmul.mubr.f32.gmra.mxu0 %v2955
        %v4796 = vpop.f32.mrf.mxu0
        %v4797 = vadd.f32 %v4532, %v4796
        %v4798 = vpop.f32.mrf.mxu0
        %4799 = vmatprep.mubr.f32.mxu0 0.0
        %4800 = vmatmul.mubr.f32.gmra.mxu0 %v2957
        %v4801 = vpop.f32.mrf.mxu0
        %v4802 = vadd.f32 %v4537, %v4801
        %v4803 = vpop.f32.mrf.mxu0
        %4804 = vmatprep.mubr.f32.mxu0 0.0
        %4805 = vmatmul.mubr.f32.gmra.mxu0 %v2959
        %v4806 = vpop.f32.mrf.mxu0
        %v4807 = vadd.f32 %v4542, %v4806
        %v4808 = vpop.f32.mrf.mxu0
        %4809 = vmatprep.mubr.f32.mxu0 0.0
        %4810 = vmatmul.mubr.f32.gmra.mxu0 %v2961
        %v4811 = vpop.f32.mrf.mxu0
        %v4812 = vadd.f32 %v4547, %v4811
        %v4813 = vpop.f32.mrf.mxu0
        %4814 = vmatprep.mubr.f32.mxu0 0.0
        %4815 = vmatmul.mubr.f32.gmra.mxu0 %v2963
        %v4816 = vpop.f32.mrf.mxu0
        %v4817 = vadd.f32 %v4552, %v4816
        %v4818 = vpop.f32.mrf.mxu0
        %4819 = vmatprep.mubr.f32.mxu0 0.0
        %4820 = vmatmul.mubr.f32.gmra.mxu0 %v2965
        %v4821 = vpop.f32.mrf.mxu0
        %v4822 = vadd.f32 %v4557, %v4821
        %v4823 = vpop.f32.mrf.mxu0
        %4824 = vmatprep.mubr.f32.mxu0 0.0
        %4825 = vmatmul.mubr.f32.gmra.mxu0 %v2967
        %v4826 = vpop.f32.mrf.mxu0
        %v4827 = vadd.f32 %v4562, %v4826
        %v4828 = vpop.f32.mrf.mxu0
        %4829 = vmatprep.mubr.f32.mxu0 0.0
        %4830 = vmatmul.mubr.f32.gmra.mxu0 %v2969
        %v4831 = vpop.f32.mrf.mxu0
        %v4832 = vadd.f32 %v4567, %v4831
        %v4833 = vpop.f32.mrf.mxu0
        %4834 = vmatprep.mubr.f32.mxu0 0.0
        %4835 = vmatmul.mubr.f32.gmra.mxu0 %v2971
        %v4836 = vpop.f32.mrf.mxu0
        %v4837 = vadd.f32 %v4572, %v4836
        %v4838 = vpop.f32.mrf.mxu0
        %4839 = vmatprep.mubr.f32.mxu0 0.0
        %4840 = vmatmul.mubr.f32.gmra.mxu0 %v2973
        %v4841 = vpop.f32.mrf.mxu0
        %v4842 = vadd.f32 %v4577, %v4841
        %v4843 = vpop.f32.mrf.mxu0
        %4844 = vmatprep.mubr.f32.mxu0 0.0
        %4845 = vmatmul.mubr.f32.gmra.mxu0 %v2975
        %v4846 = vpop.f32.mrf.mxu0
        %v4847 = vadd.f32 %v4582, %v4846
        %v4848 = vpop.f32.mrf.mxu0
        %4849 = vmatprep.mubr.f32.mxu0 0.0
        %4850 = vmatmul.mubr.f32.gmra.mxu0 %v2977
        %v4851 = vpop.f32.mrf.mxu0
        %v4852 = vadd.f32 %v4587, %v4851
        %v4853 = vpop.f32.mrf.mxu0
        %4854 = vmatprep.mubr.f32.mxu0 0.0
        %4855 = vmatmul.mubr.f32.gmra.mxu0 %v2979
        %v4856 = vpop.f32.mrf.mxu0
        %v4857 = vadd.f32 %v4592, %v4856
        %v4858 = vpop.f32.mrf.mxu0
        %4859 = vmatprep.mubr.f32.mxu0 0.0
        %4860 = vmatmul.mubr.f32.gmra.mxu0 %v3406
        %v4861 = vpop.f32.mrf.mxu0
        %v4862 = vadd.f32 %v4597, %v4861
        %v4863 = vpop.f32.mrf.mxu0
        %4864 = vmatprep.mubr.f32.mxu0 0.0
        %4865 = vmatmul.mubr.f32.gmra.mxu0 %v3408
        %v4866 = vpop.f32.mrf.mxu0
        %v4867 = vadd.f32 %v4602, %v4866
        %v4868 = vpop.f32.mrf.mxu0
        %4869 = vmatprep.mubr.f32.mxu0 0.0
        %4870 = vmatmul.mubr.f32.gmra.mxu0 %v3410
        %v4871 = vpop.f32.mrf.mxu0
        %v4872 = vadd.f32 %v4607, %v4871
        %v4873 = vpop.f32.mrf.mxu0
        %4874 = vmatprep.mubr.f32.mxu0 0.0
        %4875 = vmatmul.mubr.f32.gmra.mxu0 %v3412
        %v4876 = vpop.f32.mrf.mxu0
        %v4877 = vadd.f32 %v4612, %v4876
        %v4878 = vpop.f32.mrf.mxu0
        %4879 = vmatprep.mubr.f32.mxu0 0.0
        %4880 = vmatmul.mubr.f32.gmra.mxu0 %v3414
        %v4881 = vpop.f32.mrf.mxu0
        %v4882 = vadd.f32 %v4617, %v4881
        %v4883 = vpop.f32.mrf.mxu0
        %4884 = vmatprep.mubr.f32.mxu0 0.0
        %4885 = vmatmul.mubr.f32.gmra.mxu0 %v3413
        %v4886 = vpop.f32.mrf.mxu0
        %v4887 = vadd.f32 %v4622, %v4886
        %v4888 = vpop.f32.mrf.mxu0
        %4889 = vdwg.mxu0
        %v4890 = vld [vmem:[%s6] sm:$0x1]
        %v4892 = vlaneseq
        %v4893 = vshrl.u32 %v4892, 7
        %v4894 = vsub.s32 0, %v4893
        %v4895 = vrot.slane %v4890, %v4894
        %v4897 = vmul.f32 %v4692, %v4895
        %v4898 = vmul.f32 %v4697, %v4895
        %v4899 = vmul.f32 %v4702, %v4895
        %v4900 = vmul.f32 %v4707, %v4895
        %v4901 = vmul.f32 %v4712, %v4895
        %v4902 = vmul.f32 %v4717, %v4895
        %v4903 = vmul.f32 %v4722, %v4895
        %v4904 = vmul.f32 %v4727, %v4895
        %v4905 = vmul.f32 %v4732, %v4895
        %v4906 = vmul.f32 %v4737, %v4895
        %v4907 = vmul.f32 %v4742, %v4895
        %v4908 = vmul.f32 %v4747, %v4895
        %v4909 = vmul.f32 %v4752, %v4895
        %v4910 = vmul.f32 %v4757, %v4895
        %v4911 = vmul.f32 %v4762, %v4895
        %v4912 = vmul.f32 %v4767, %v4895
        %v4913 = vmul.f32 %v4772, %v4895
        %v4914 = vmul.f32 %v4777, %v4895
        %v4915 = vmul.f32 %v4782, %v4895
        %v4916 = vmul.f32 %v4787, %v4895
        %v4917 = vmul.f32 %v4792, %v4895
        %v4918 = vmul.f32 %v4797, %v4895
        %v4919 = vmul.f32 %v4802, %v4895
        %v4920 = vmul.f32 %v4807, %v4895
        %v4921 = vmul.f32 %v4812, %v4895
        %v4922 = vmul.f32 %v4817, %v4895
        %v4923 = vmul.f32 %v4822, %v4895
        %v4924 = vmul.f32 %v4827, %v4895
        %v4925 = vmul.f32 %v4832, %v4895
        %v4926 = vmul.f32 %v4837, %v4895
        %v4927 = vmul.f32 %v4842, %v4895
        %v4928 = vmul.f32 %v4847, %v4895
        %v4929 = vmul.f32 %v4852, %v4895
        %v4930 = vmul.f32 %v4857, %v4895
        %v4931 = vmul.f32 %v4862, %v4895
        %v4932 = vmul.f32 %v4867, %v4895
        %v4933 = vmul.f32 %v4872, %v4895
        %v4934 = vmul.f32 %v4877, %v4895
        %v4935 = vmul.f32 %v4882, %v4895
        %v4936 = vmul.f32 %v4887, %v4895
        %v4937 = vld [vmem:[%s7] sm:$0x1]
        %v4939 = vlaneseq
        %v4940 = vshrl.u32 %v4939, 7
        %v4941 = vsub.s32 0, %v4940
        %v4942 = vrot.slane %v4937, %v4941
        %v4944 = vadd.f32 %v4897, %v4942
        %v4945 = vadd.f32 %v4898, %v4942
        %v4946 = vadd.f32 %v4899, %v4942
        %v4947 = vadd.f32 %v4900, %v4942
        %v4948 = vadd.f32 %v4901, %v4942
        %v4949 = vadd.f32 %v4902, %v4942
        %v4950 = vadd.f32 %v4903, %v4942
        %v4951 = vadd.f32 %v4904, %v4942
        %v4952 = vadd.f32 %v4905, %v4942
        %v4953 = vadd.f32 %v4906, %v4942
        %v4954 = vadd.f32 %v4907, %v4942
        %v4955 = vadd.f32 %v4908, %v4942
        %v4956 = vadd.f32 %v4909, %v4942
        %v4957 = vadd.f32 %v4910, %v4942
        %v4958 = vadd.f32 %v4911, %v4942
        %v4959 = vadd.f32 %v4912, %v4942
        %v4960 = vadd.f32 %v4913, %v4942
        %v4961 = vadd.f32 %v4914, %v4942
        %v4962 = vadd.f32 %v4915, %v4942
        %v4963 = vadd.f32 %v4916, %v4942
        %v4964 = vadd.f32 %v4917, %v4942
        %v4965 = vadd.f32 %v4918, %v4942
        %v4966 = vadd.f32 %v4919, %v4942
        %v4967 = vadd.f32 %v4920, %v4942
        %v4968 = vadd.f32 %v4921, %v4942
        %v4969 = vadd.f32 %v4922, %v4942
        %v4970 = vadd.f32 %v4923, %v4942
        %v4971 = vadd.f32 %v4924, %v4942
        %v4972 = vadd.f32 %v4925, %v4942
        %v4973 = vadd.f32 %v4926, %v4942
        %v4974 = vadd.f32 %v4927, %v4942
        %v4975 = vadd.f32 %v4928, %v4942
        %v4976 = vadd.f32 %v4929, %v4942
        %v4977 = vadd.f32 %v4930, %v4942
        %v4978 = vadd.f32 %v4931, %v4942
        %v4979 = vadd.f32 %v4932, %v4942
        %v4980 = vadd.f32 %v4933, %v4942
        %v4981 = vadd.f32 %v4934, %v4942
        %v4982 = vadd.f32 %v4935, %v4942
        %v4983 = vadd.f32 %v4936, %v4942
        %v4984 = vld [vmem:[%s309 + $0x2a] sm:$0xff]
        %v4985 = vld [vmem:[%s309 + $0x32] sm:$0xff]
        %v4986 = vld [vmem:[%s309 + $0x3a] sm:$0xff]
        %v4987 = vld [vmem:[%s309 + $0x42] sm:$0xff]
        %v4988 = vld [vmem:[%s309 + $0x4a] sm:$0xff]
        %v4989 = vld [vmem:[%s309 + $0x52] sm:$0xff]
        %v4990 = vld [vmem:[%s309 + $0x5a] sm:$0xff]
        %v4991 = vld [vmem:[%s309 + $0x62] sm:$0xff]
        %v4992 = vld [vmem:[%s309 + $0x6a] sm:$0xff]
        %v4993 = vld [vmem:[%s309 + $0x72] sm:$0xff]
        %v4994 = vld [vmem:[%s309 + $0x7a] sm:$0xff]
        %v4995 = vld [vmem:[%s309 + $0x82] sm:$0xff]
        %v4996 = vld [vmem:[%s309 + $0x8a] sm:$0xff]
        %v4997 = vld [vmem:[%s309 + $0x92] sm:$0xff]
        %v4998 = vld [vmem:[%s309 + $0x9a] sm:$0xff]
        %v4999 = vld [vmem:[%s309 + $0xa2] sm:$0xff]
        %v5000 = vld [vmem:[%s309 + $0xaa] sm:$0xff]
        %v5001 = vld [vmem:[%s309 + $0xb2] sm:$0xff]
        %v5002 = vld [vmem:[%s309 + $0xba] sm:$0xff]
        %v5003 = vld [vmem:[%s309 + $0xc2] sm:$0xff]
        %v5004 = vld [vmem:[%s309 + $0xca] sm:$0xff]
        %v5005 = vld [vmem:[%s309 + $0xd2] sm:$0xff]
        %v5006 = vld [vmem:[%s309 + $0xda] sm:$0xff]
        %v5007 = vld [vmem:[%s309 + $0xe2] sm:$0xff]
        %v5008 = vld [vmem:[%s309 + $0xea] sm:$0xff]
        %v5009 = vld [vmem:[%s309 + $0xf2] sm:$0xff]
        %v5010 = vld [vmem:[%s309 + $0xfa] sm:$0xff]
        %v5011 = vld [vmem:[%s309 + $0x102] sm:$0xff]
        %v5012 = vld [vmem:[%s309 + $0x10a] sm:$0xff]
        %v5013 = vld [vmem:[%s309 + $0x112] sm:$0xff]
        %v5014 = vld [vmem:[%s309 + $0x11a] sm:$0xff]
        %v5015 = vld [vmem:[%s309 + $0x122] sm:$0xff]
        %v5016 = vld [vmem:[%s309 + $0x12a] sm:$0xff]
        %v5017 = vld [vmem:[%s309 + $0x132] sm:$0xff]
        %v5018 = vld [vmem:[%s309 + $0x13a] sm:$0xff]
        %v5019 = vld [vmem:[%s309 + $0x142] sm:$0xff]
        %v5020 = vld [vmem:[%s309 + $0x14a] sm:$0xff]
        %v5021 = vld [vmem:[%s309 + $0x152] sm:$0xff]
        %v5022 = vld [vmem:[%s309 + $0x15a] sm:$0xff]
        %v5023 = vld [vmem:[%s309 + $0x162] sm:$0xf]
        %v5024 = vadd.f32 %v4944, %v4984
        %v5025 = vadd.f32 %v4945, %v4985
        %v5026 = vadd.f32 %v4946, %v4986
        %v5027 = vadd.f32 %v4947, %v4987
        %v5028 = vadd.f32 %v4948, %v4988
        %v5029 = vadd.f32 %v4949, %v4989
        %v5030 = vadd.f32 %v4950, %v4990
        %v5031 = vadd.f32 %v4951, %v4991
        %v5032 = vadd.f32 %v4952, %v4992
        %v5033 = vadd.f32 %v4953, %v4993
        %v5034 = vadd.f32 %v4954, %v4994
        %v5035 = vadd.f32 %v4955, %v4995
        %v5036 = vadd.f32 %v4956, %v4996
        %v5037 = vadd.f32 %v4957, %v4997
        %v5038 = vadd.f32 %v4958, %v4998
        %v5039 = vadd.f32 %v4959, %v4999
        %v5040 = vadd.f32 %v4960, %v5000
        %v5041 = vadd.f32 %v4961, %v5001
        %v5042 = vadd.f32 %v4962, %v5002
        %v5043 = vadd.f32 %v4963, %v5003
        %v5044 = vadd.f32 %v4964, %v5004
        %v5045 = vadd.f32 %v4965, %v5005
        %v5046 = vadd.f32 %v4966, %v5006
        %v5047 = vadd.f32 %v4967, %v5007
        %v5048 = vadd.f32 %v4968, %v5008
        %v5049 = vadd.f32 %v4969, %v5009
        %v5050 = vadd.f32 %v4970, %v5010
        %v5051 = vadd.f32 %v4971, %v5011
        %v5052 = vadd.f32 %v4972, %v5012
        %v5053 = vadd.f32 %v4973, %v5013
        %v5054 = vadd.f32 %v4974, %v5014
        %v5055 = vadd.f32 %v4975, %v5015
        %v5056 = vadd.f32 %v4976, %v5016
        %v5057 = vadd.f32 %v4977, %v5017
        %v5058 = vadd.f32 %v4978, %v5018
        %v5059 = vadd.f32 %v4979, %v5019
        %v5060 = vadd.f32 %v4980, %v5020
        %v5061 = vadd.f32 %v4981, %v5021
        %v5062 = vadd.f32 %v4982, %v5022
        %v5063 = vadd.f32 %v4983, %v5023
        %v5064 = vmax.f32 %v5024, 0.0
        %v5065 = vmax.f32 %v5025, 0.0
        %v5066 = vmax.f32 %v5026, 0.0
        %v5067 = vmax.f32 %v5027, 0.0
        %v5068 = vmax.f32 %v5028, 0.0
        %v5069 = vmax.f32 %v5029, 0.0
        %v5070 = vmax.f32 %v5030, 0.0
        %v5071 = vmax.f32 %v5031, 0.0
        %v5072 = vmax.f32 %v5032, 0.0
        %v5073 = vmax.f32 %v5033, 0.0
        %v5074 = vmax.f32 %v5034, 0.0
        %v5075 = vmax.f32 %v5035, 0.0
        %v5076 = vmax.f32 %v5036, 0.0
        %v5077 = vmax.f32 %v5037, 0.0
        %v5078 = vmax.f32 %v5038, 0.0
        %v5079 = vmax.f32 %v5039, 0.0
        %v5080 = vmax.f32 %v5040, 0.0
        %v5081 = vmax.f32 %v5041, 0.0
        %v5082 = vmax.f32 %v5042, 0.0
        %v5083 = vmax.f32 %v5043, 0.0
        %v5084 = vmax.f32 %v5044, 0.0
        %v5085 = vmax.f32 %v5045, 0.0
        %v5086 = vmax.f32 %v5046, 0.0
        %v5087 = vmax.f32 %v5047, 0.0
        %v5088 = vmax.f32 %v5048, 0.0
        %v5089 = vmax.f32 %v5049, 0.0
        %v5090 = vmax.f32 %v5050, 0.0
        %v5091 = vmax.f32 %v5051, 0.0
        %v5092 = vmax.f32 %v5052, 0.0
        %v5093 = vmax.f32 %v5053, 0.0
        %v5094 = vmax.f32 %v5054, 0.0
        %v5095 = vmax.f32 %v5055, 0.0
        %v5096 = vmax.f32 %v5056, 0.0
        %v5097 = vmax.f32 %v5057, 0.0
        %v5098 = vmax.f32 %v5058, 0.0
        %v5099 = vmax.f32 %v5059, 0.0
        %v5100 = vmax.f32 %v5060, 0.0
        %v5101 = vmax.f32 %v5061, 0.0
        %v5102 = vmax.f32 %v5062, 0.0
        %v5103 = vmax.f32 %v5063, 0.0
        %5104 = vst [vmem:[%s354] sm:$0xff] %v5064
        %5105 = vst [vmem:[%s354 + $0x8] sm:$0xff] %v5065
        %5106 = vst [vmem:[%s354 + $0x10] sm:$0xff] %v5066
        %5107 = vst [vmem:[%s354 + $0x18] sm:$0xff] %v5067
        %5108 = vst [vmem:[%s354 + $0x20] sm:$0xff] %v5068
        %5109 = vst [vmem:[%s354 + $0x28] sm:$0xff] %v5069
        %5110 = vst [vmem:[%s354 + $0x30] sm:$0xff] %v5070
        %5111 = vst [vmem:[%s354 + $0x38] sm:$0xff] %v5071
        %5112 = vst [vmem:[%s354 + $0x40] sm:$0xff] %v5072
        %5113 = vst [vmem:[%s354 + $0x48] sm:$0xff] %v5073
        %5114 = vst [vmem:[%s354 + $0x50] sm:$0xff] %v5074
        %5115 = vst [vmem:[%s354 + $0x58] sm:$0xff] %v5075
        %5116 = vst [vmem:[%s354 + $0x60] sm:$0xff] %v5076
        %5117 = vst [vmem:[%s354 + $0x68] sm:$0xff] %v5077
        %5118 = vst [vmem:[%s354 + $0x70] sm:$0xff] %v5078
        %5119 = vst [vmem:[%s354 + $0x78] sm:$0xff] %v5079
        %5120 = vst [vmem:[%s354 + $0x80] sm:$0xff] %v5080
        %5121 = vst [vmem:[%s354 + $0x88] sm:$0xff] %v5081
        %5122 = vst [vmem:[%s354 + $0x90] sm:$0xff] %v5082
        %5123 = vst [vmem:[%s354 + $0x98] sm:$0xff] %v5083
        %5124 = vst [vmem:[%s354 + $0xa0] sm:$0xff] %v5084
        %5125 = vst [vmem:[%s354 + $0xa8] sm:$0xff] %v5085
        %5126 = vst [vmem:[%s354 + $0xb0] sm:$0xff] %v5086
        %5127 = vst [vmem:[%s354 + $0xb8] sm:$0xff] %v5087
        %5128 = vst [vmem:[%s354 + $0xc0] sm:$0xff] %v5088
        %5129 = vst [vmem:[%s354 + $0xc8] sm:$0xff] %v5089
        %5130 = vst [vmem:[%s354 + $0xd0] sm:$0xff] %v5090
        %5131 = vst [vmem:[%s354 + $0xd8] sm:$0xff] %v5091
        %5132 = vst [vmem:[%s354 + $0xe0] sm:$0xff] %v5092
        %5133 = vst [vmem:[%s354 + $0xe8] sm:$0xff] %v5093
        %5134 = vst [vmem:[%s354 + $0xf0] sm:$0xff] %v5094
        %5135 = vst [vmem:[%s354 + $0xf8] sm:$0xff] %v5095
        %5136 = vst [vmem:[%s354 + $0x100] sm:$0xff] %v5096
        %5137 = vst [vmem:[%s354 + $0x108] sm:$0xff] %v5097
        %5138 = vst [vmem:[%s354 + $0x110] sm:$0xff] %v5098
        %5139 = vst [vmem:[%s354 + $0x118] sm:$0xff] %v5099
        %5140 = vst [vmem:[%s354 + $0x120] sm:$0xff] %v5100
        %5141 = vst [vmem:[%s354 + $0x128] sm:$0xff] %v5101
        %5142 = vst [vmem:[%s354 + $0x130] sm:$0xff] %v5102
        %5143 = vst [vmem:[%s354 + $0x138] sm:$0xf] %v5103
        %p5144 = scmp.lt.s32.totalorder %s23, 1
        %s5145 = scalar_select %p5144, %s23, 1
        %s5146 = smul.addr %s5145, 40
        %s5147 = smul.addr %s5146, 8
        %s5148 = scalar_lea.vmem %s8, %s5147
        // Predicated region
        $region65: #{tpu_custom_call.1} parent=51 // pred_check
          %p5149 = pneg %p214
        $region66: #{tpu_custom_call.1} parent=51 // pred_check_branch
          %5151 = sbr.rel (%p5149) target = $region68
        $region67: #{tpu_custom_call.1} parent=51 // pred_region
          _
        $region68: #{tpu_custom_call.1} parent=51 // pred_fallthru
          _
      $region52: #{tpu_custom_call.1} parent=5 // pred_fallthru
        _
      %p5152 = scmp.le.s32.totalorder 2, %s18
      // Predicated region
      $region69: #{tpu_custom_call.1} parent=5 // pred_check
        %p5153 = pneg %p5152
      $region70: #{tpu_custom_call.1} parent=5 // pred_check_branch
        %5155 = sbr.rel (%p5153) target = $region72
      $region71: #{tpu_custom_call.1} parent=5 // pred_region
        %s5156 = ssub.s32 %s18, 2
        // Predicated region
        $region73: #{tpu_custom_call.1} parent=71 // pred_check
          %p5157 = pneg %p220
        $region74: #{tpu_custom_call.1} parent=71 // pred_check_branch
          %5159 = sbr.rel (%p5157) target = $region76
        $region75: #{tpu_custom_call.1} parent=71 // pred_region
          %p5160 = scmp.lt.s32.totalorder %s24, 1
          %s5161 = scalar_select %p5160, %s24, 1
          %s5162 = smul.addr %s5161, 40
          %s5163 = smul.addr %s5162, 8
          %s5164 = scalar_lea.vmem %s8, %s5163
        $region76: #{tpu_custom_call.1} parent=71 // pred_fallthru
          _
      $region72: #{tpu_custom_call.1} parent=5 // pred_fallthru
        _
    $region6: #{tpu_custom_call.1} parent=1 // loop_footer
      %s22 = sadd.s32 1, %s18
    $region7: #{tpu_custom_call.1} parent=1 // loop_footer_branch
      %17 = sbr.rel target = $region3
    $region8: #{tpu_custom_call.1} parent=1 // loop_exit
      _
    %5165 = vsyncpa [#allocation3], 1
    %s5166 = scalar_lea.sflag [#allocation3], 1
    %5167 = vsyncpa %s5166, 1
    %5168 = vsyncpa [#allocation5], 1

</llo_original>
